<compile_context>
chip_gen: v7x
topology: tpu7x:2x2x1
jax: 0.10.0
libtpu: 0.0.40
codegen_flags: <defaults>
</compile_context>

<pallas_src>
import functools

import jax
import jax.numpy as jnp
from jax.experimental import pallas as pl
from jax.experimental.pallas import tpu as pltpu


_PARALLEL1 = pltpu.CompilerParams(dimension_semantics=("parallel",))


def _round_up(x, m):
    return ((x + m - 1) // m) * m


# ----------------------------- Pallas kernels ------------------------------

def _conv_pool_kernel(x_ref, w_ref, b_ref, o_ref):
    """conv (one MXU matmul) + bias + ReLU + 2x2 maxpool for G images.

    x_ref: (G, 4, Rp, K) bf16  pool-window-major im2col patches (Rp % 16 == 0)
    w_ref: (K, C)        bf16
    b_ref: (1, C)        f32
    o_ref: (G, Rp, C)    bf16
    """
    G, P, Rp, K = x_ref.shape
    C = w_ref.shape[1]
    # Collapse (G,4,Rp) into one big M dimension -> a single MXU push.
    x2 = x_ref[...].reshape(G * P * Rp, K)                 # layout-free collapse
    y = jnp.dot(x2, w_ref[...], preferred_element_type=jnp.float32)
    y = y.reshape(G, P, Rp, C)
    # 2x2 max-pool == max over the 4 pool-window slabs (bias/ReLU commute).
    best = jnp.maximum(jnp.maximum(y[:, 0], y[:, 1]),
                       jnp.maximum(y[:, 2], y[:, 3]))
    o_ref[...] = jnp.maximum(best + b_ref[...], 0.0).astype(o_ref.dtype)


def _fc_head_kernel(x_ref, w1_ref, b1_ref, m_ref, w2_ref, b2_ref, o_ref):
    """fc1 + ReLU + dropout(0.5, inverted) + final_fc, fused.

    x_ref:  (TM, 1600) bf16    w1_ref: (1600, 128) bf16   b1_ref: (1, 128) f32
    m_ref:  (TM, 128)  f32 dropout scale mask (0.0 or 2.0)
    w2_ref: (128, NP)  bf16 (lane-padded)                  b2_ref: (1, NP) f32
    o_ref:  (TM, NP)   f32  (lane-dense, sliced to output_dim outside)
    """
    h = jnp.dot(x_ref[...], w1_ref[...], preferred_element_type=jnp.float32)
    h = jnp.maximum(h + b1_ref[...], 0.0) * m_ref[...]
    o = jnp.dot(h.astype(w2_ref.dtype), w2_ref[...],
                preferred_element_type=jnp.float32) + b2_ref[...]
    o_ref[...] = o.astype(o_ref.dtype)


# ------------------------------ Pallas wrappers -----------------------------

def conv_relu_pool(cols, w, b, *, g):
    """cols: (N,4,Rp,K) bf16; w: (K,C) bf16; b: (1,C) f32 -> (N,Rp,C) bf16."""
    N, P, Rp, K = cols.shape
    C = w.shape[1]
    grid_n = pl.cdiv(N, g)
    return pl.pallas_call(
        _conv_pool_kernel,
        out_shape=jax.ShapeDtypeStruct((N, Rp, C), jnp.bfloat16),
        grid=(grid_n,),
        in_specs=[
            pl.BlockSpec((g, P, Rp, K), lambda i: (i, 0, 0, 0)),
            pl.BlockSpec((K, C), lambda i: (0, 0)),
            pl.BlockSpec((1, C), lambda i: (0, 0)),
        ],
        out_specs=pl.BlockSpec((g, Rp, C), lambda i: (i, 0, 0)),
        compiler_params=_PARALLEL1,
    )(cols, w, b)


def fc_head(flat, mask, w1, b1, w2p, b2p, out_dim):
    """flat: (M,1600) bf16; mask: (M,128) f32; w2p/b2p lane-padded to NP."""
    M, K = flat.shape
    H = w1.shape[1]
    NP = w2p.shape[1]
    TM = M if M <= 256 else 256          # fills the 256-wide MXU on v6e/v7x
    grid_m = pl.cdiv(M, TM)
    out = pl.pallas_call(
        _fc_head_kernel,
        out_shape=jax.ShapeDtypeStruct((M, NP), jnp.float32),
        grid=(grid_m,),
        in_specs=[
            pl.BlockSpec((TM, K), lambda i: (i, 0)),
            pl.BlockSpec((K, H), lambda i: (0, 0)),
            pl.BlockSpec((1, H), lambda i: (0, 0)),
            pl.BlockSpec((TM, H), lambda i: (i, 0)),
            pl.BlockSpec((H, NP), lambda i: (0, 0)),
            pl.BlockSpec((1, NP), lambda i: (0, 0)),
        ],
        out_specs=pl.BlockSpec((TM, NP), lambda i: (i, 0)),
        compiler_params=_PARALLEL1,
    )(flat, w1, b1, mask, w2p, b2p)
    return out[:, :out_dim]


# -------------------------------- JAX glue ----------------------------------

def pool_im2col(x, kh, kw, poh, pow_, rows_pad, out_dtype):
    """Pool-window-major im2col: (N,H,W,C) -> (N, 4, rows_pad, kh*kw*C).

    Window p = 2*a + b corresponds to conv position (2*py + a, 2*px + b) of a
    2x2/stride-2 floor-mode pool over the conv output.  Patch feature order is
    (kh, kw, C), matching an HWIO weight reshaped to (kh*kw*C, Cout).  Rows are
    zero-padded to rows_pad (multiple of 16) so the kernel-side collapse of
    (G,4,Rp,K) -> (G*4*Rp,K) is layout-free.
    """
    N, H, W, C = x.shape
    wins = []
    for a in range(2):
        for b in range(2):
            patches = []
            for di in range(kh):
                for dj in range(kw):
                    ys, xs = a + di, b + dj
                    patches.append(
                        x[:, ys:ys + 2 * (poh - 1) + 1:2,
                          xs:xs + 2 * (pow_ - 1) + 1:2, :])
            p = jnp.stack(patches, axis=3)             # (N,poh,pow,kh*kw,C)
            wins.append(p.reshape(N, poh * pow_, kh * kw * C))
    cols = jnp.stack(wins, axis=1).astype(out_dtype)   # (N,4,rows,K)
    pad = rows_pad - poh * pow_
    if pad:
        cols = jnp.pad(cols, ((0, 0), (0, 0), (0, pad), (0, 0)))
    return cols


def init_params(key, output_dim):
    # Deterministic synthetic init (Uniform(-1/sqrt(fan_in), 1/sqrt(fan_in)),
    # same family as PyTorch's default Conv/Linear init).
    # NOTE: fc1_w rows are stored in (H, W, C)-flatten order -- the NCHW
    # .view(N,-1) permutation of the PyTorch module is folded into the weight
    # at init; loading real PyTorch weights would require permuting fc1_w rows.
    ks = jax.random.split(key, 8)

    def init(k, shape, fan_in):
        bound = 1.0 / float(fan_in) ** 0.5
        return jax.random.uniform(k, shape, jnp.float32, -bound, bound)

    return {
        "conv1_w": init(ks[0], (3, 3, 1, 32), 9),              # HWIO
        "conv1_b": init(ks[1], (32,), 9),
        "conv2_w": init(ks[2], (3, 3, 32, 64), 9 * 32),        # HWIO
        "conv2_b": init(ks[3], (64,), 9 * 32),
        "fc1_w":   init(ks[4], (64 * 5 * 5, 128), 64 * 5 * 5),
        "fc1_b":   init(ks[5], (128,), 64 * 5 * 5),
        "final_w": init(ks[6], (128, output_dim), 128),
        "final_b": init(ks[7], (output_dim,), 128),
    }


def pack_params(p):
    """One-time weight prep (reshape / bf16 cast / lane-pad), out of hot path."""
    out_dim = p["final_w"].shape[1]
    NP = _round_up(out_dim, 128)
    w2p = jnp.zeros((128, NP), jnp.float32).at[:, :out_dim].set(p["final_w"])
    b2p = jnp.zeros((1, NP), jnp.float32).at[0, :out_dim].set(p["final_b"])
    return {
        "conv1_w": p["conv1_w"].reshape(9, 32).astype(jnp.bfloat16),
        "conv1_b": p["conv1_b"].reshape(1, 32),
        "conv2_w": p["conv2_w"].reshape(288, 64).astype(jnp.bfloat16),
        "conv2_b": p["conv2_b"].reshape(1, 64),
        "fc1_w":   p["fc1_w"].astype(jnp.bfloat16),
        "fc1_b":   p["fc1_b"].reshape(1, 128),
        "final_w": w2p.astype(jnp.bfloat16),
        "final_b": b2p,
    }


@functools.partial(jax.jit, static_argnames=("out_dim",))
def forward(params, x_nchw, dropout_key, *, out_dim):
    N = x_nchw.shape[0]
    x = x_nchw.reshape(N, 28, 28, 1).astype(jnp.bfloat16)   # NCHW C=1 -> NHWC
    g = min(N, 32)                                           # images per grid step

    # conv1 (1->32, 3x3) + ReLU + 2x2 pool : 28x28x1 -> 13x13x32 (fused kernel)
    cols1 = pool_im2col(x, 3, 3, 13, 13, rows_pad=176, out_dtype=jnp.bfloat16)
    p1 = conv_relu_pool(cols1, params["conv1_w"], params["conv1_b"], g=g)
    p1 = p1[:, :169, :].reshape(N, 13, 13, 32)               # bf16

    # conv2 (32->64, 3x3) + ReLU + 2x2 pool : 13x13x32 -> 5x5x64 (fused kernel)
    cols2 = pool_im2col(p1, 3, 3, 5, 5, rows_pad=32, out_dtype=jnp.bfloat16)
    p2 = conv_relu_pool(cols2, params["conv2_w"], params["conv2_b"], g=g)

    # Flatten in (H, W, C) order (fc1_w rows stored in this order).
    flat = p2[:, :25, :].reshape(N, 5 * 5 * 64)              # (N,1600) bf16

    # Dropout mask (p=0.5, inverted scaling) generated outside the kernel:
    # pltpu.prng_* has no interpret-mode lowering; the mask is only N x 128.
    keep = jax.random.bernoulli(dropout_key, 0.5, (N, 128))
    mask = keep.astype(jnp.float32) * 2.0

    # fc1 + ReLU + dropout + final_fc, fused in one kernel (lane-dense output).
    return fc_head(flat, mask, params["fc1_w"], params["fc1_b"],
                   params["final_w"], params["final_b"], out_dim)


if __name__ == "__main__":
    key = jax.random.PRNGKey(0)
    k_param, k_input, k_drop = jax.random.split(key, 3)

    output_dim = 10
    params = pack_params(init_params(k_param, output_dim))

    # Architecture fixes the spatial size: 28x28x1 -> 5x5x64 before fc1.
    x = jax.random.normal(k_input, (2, 1, 28, 28), dtype=jnp.float32)

    logits = forward(params, x, k_drop, out_dim=output_dim)
    jax.block_until_ready(logits)
    assert logits.shape == (2, output_dim)
    print("KERNEL_OK")
</pallas_src>

<mosaic_0001>
module attributes {stable_mosaic.version = 11 : i64} {
  func.func @_conv_pool_kernel(%arg0: i32, %arg1: memref<2x4x176x9xbf16, #tpu.memory_space<vmem>>, %arg2: memref<9x32xbf16, #tpu.memory_space<vmem>>, %arg3: memref<1x32xf32, #tpu.memory_space<vmem>>, %arg4: memref<2x176x32xbf16, #tpu.memory_space<vmem>>) attributes {dimension_semantics = [#tpu.dimension_semantics<parallel>], iteration_bounds = array<i64: 1>, scalar_prefetch = 0 : i64, scratch_operands = 0 : i64, tpu.core_type = #tpu.core_type<tc>, window_params = [{transform_indices = @transform_0, window_bounds = array<i64: 2, 4, 176, 9>}, {pipeline_mode = #tpu.pipeline_mode<synchronous>, transform_indices = @transform_1, window_bounds = array<i64: 9, 32>}, {pipeline_mode = #tpu.pipeline_mode<synchronous>, transform_indices = @transform_2, window_bounds = array<i64: 1, 32>}, {transform_indices = @transform_3, window_bounds = array<i64: 2, 176, 32>}]} {
    %c0 = arith.constant 0 : index
    %c0_0 = arith.constant 0 : index
    %c0_1 = arith.constant 0 : index
    %c0_2 = arith.constant 0 : index
    %0 = vector.load %arg1[%c0, %c0_0, %c0_1, %c0_2] : memref<2x4x176x9xbf16, #tpu.memory_space<vmem>>, vector<2x4x176x9xbf16>
    %1 = vector.shape_cast %0 : vector<2x4x176x9xbf16> to vector<1408x9xbf16>
    %c0_3 = arith.constant 0 : index
    %c0_4 = arith.constant 0 : index
    %2 = vector.load %arg2[%c0_3, %c0_4] : memref<9x32xbf16, #tpu.memory_space<vmem>>, vector<9x32xbf16>
    %cst = arith.constant dense<0.000000e+00> : vector<1408x32xf32>
    %3 = tpu.matmul %1, %2, %cst {dimension_numbers = #tpu.dot_dimension_numbers<[1], [0], [0], [1], [0, 0, 1, 1], [], []>} : vector<1408x9xbf16>, vector<9x32xbf16>, vector<1408x32xf32> -> vector<1408x32xf32>
    %4 = vector.shape_cast %3 : vector<1408x32xf32> to vector<2x4x176x32xf32>
    %5 = vector.extract_strided_slice %4 {offsets = [0, 0, 0, 0], sizes = [2, 1, 176, 32], strides = [1, 1, 1, 1]} : vector<2x4x176x32xf32> to vector<2x1x176x32xf32>
    %6 = vector.shape_cast %5 : vector<2x1x176x32xf32> to vector<2x176x32xf32>
    %7 = vector.extract_strided_slice %4 {offsets = [0, 1, 0, 0], sizes = [2, 1, 176, 32], strides = [1, 1, 1, 1]} : vector<2x4x176x32xf32> to vector<2x1x176x32xf32>
    %8 = vector.shape_cast %7 : vector<2x1x176x32xf32> to vector<2x176x32xf32>
    %9 = arith.maximumf %6, %8 : vector<2x176x32xf32>
    %10 = vector.extract_strided_slice %4 {offsets = [0, 2, 0, 0], sizes = [2, 1, 176, 32], strides = [1, 1, 1, 1]} : vector<2x4x176x32xf32> to vector<2x1x176x32xf32>
    %11 = vector.shape_cast %10 : vector<2x1x176x32xf32> to vector<2x176x32xf32>
    %12 = vector.extract_strided_slice %4 {offsets = [0, 3, 0, 0], sizes = [2, 1, 176, 32], strides = [1, 1, 1, 1]} : vector<2x4x176x32xf32> to vector<2x1x176x32xf32>
    %13 = vector.shape_cast %12 : vector<2x1x176x32xf32> to vector<2x176x32xf32>
    %14 = arith.maximumf %11, %13 : vector<2x176x32xf32>
    %15 = arith.maximumf %9, %14 : vector<2x176x32xf32>
    %c0_5 = arith.constant 0 : index
    %c0_6 = arith.constant 0 : index
    %16 = vector.load %arg3[%c0_5, %c0_6] : memref<1x32xf32, #tpu.memory_space<vmem>>, vector<1x32xf32>
    %17 = vector.shape_cast %16 : vector<1x32xf32> to vector<1x1x32xf32>
    %18 = vector.broadcast %17 : vector<1x1x32xf32> to vector<2x176x32xf32>
    %19 = arith.addf %15, %18 : vector<2x176x32xf32>
    %cst_7 = arith.constant 0.000000e+00 : f32
    %20 = vector.broadcast %cst_7 : f32 to vector<2x176x32xf32>
    %21 = arith.maximumf %19, %20 : vector<2x176x32xf32>
    %22 = arith.truncf %21 : vector<2x176x32xf32> to vector<2x176x32xbf16>
    %c0_8 = arith.constant 0 : index
    %c0_9 = arith.constant 0 : index
    %c0_10 = arith.constant 0 : index
    %23 = vector.load %arg4[%c0_8, %c0_9, %c0_10] : memref<2x176x32xbf16, #tpu.memory_space<vmem>>, vector<2x176x32xbf16>
    tpu.vector_store %arg4[%c0_8, %c0_9, %c0_10], %22 {strides = array<i32>} : memref<2x176x32xbf16, #tpu.memory_space<vmem>>, vector<2x176x32xbf16>,
    return
  }
  func.func @transform_0(%arg0: i32) -> (i32, i32, i32, i32) {
    %c0_i32 = arith.constant 0 : i32
    %c0_i32_0 = arith.constant 0 : i32
    %c0_i32_1 = arith.constant 0 : i32
    %c0_i32_2 = arith.constant 0 : i32
    return %arg0, %c0_i32, %c0_i32_0, %c0_i32_1 : i32, i32, i32, i32
  }
  func.func @transform_1(%arg0: i32) -> (i32, i32) {
    %c0_i32 = arith.constant 0 : i32
    %c0_i32_0 = arith.constant 0 : i32
    %c0_i32_1 = arith.constant 0 : i32
    return %c0_i32, %c0_i32_0 : i32, i32
  }
  func.func @transform_2(%arg0: i32) -> (i32, i32) {
    %c0_i32 = arith.constant 0 : i32
    %c0_i32_0 = arith.constant 0 : i32
    %c0_i32_1 = arith.constant 0 : i32
    return %c0_i32, %c0_i32_0 : i32, i32
  }
  func.func @transform_3(%arg0: i32) -> (i32, i32, i32) {
    %c0_i32 = arith.constant 0 : i32
    %c0_i32_0 = arith.constant 0 : i32
    %c0_i32_1 = arith.constant 0 : i32
    return %arg0, %c0_i32, %c0_i32_0 : i32, i32, i32
  }
}

module attributes {stable_mosaic.version = 11 : i64} {
  func.func @_conv_pool_kernel(%arg0: i32, %arg1: memref<2x4x32x288xbf16, #tpu.memory_space<vmem>>, %arg2: memref<288x64xbf16, #tpu.memory_space<vmem>>, %arg3: memref<1x64xf32, #tpu.memory_space<vmem>>, %arg4: memref<2x32x64xbf16, #tpu.memory_space<vmem>>) attributes {dimension_semantics = [#tpu.dimension_semantics<parallel>], iteration_bounds = array<i64: 1>, scalar_prefetch = 0 : i64, scratch_operands = 0 : i64, tpu.core_type = #tpu.core_type<tc>, window_params = [{transform_indices = @transform_0, window_bounds = array<i64: 2, 4, 32, 288>}, {pipeline_mode = #tpu.pipeline_mode<synchronous>, transform_indices = @transform_1, window_bounds = array<i64: 288, 64>}, {pipeline_mode = #tpu.pipeline_mode<synchronous>, transform_indices = @transform_2, window_bounds = array<i64: 1, 64>}, {transform_indices = @transform_3, window_bounds = array<i64: 2, 32, 64>}]} {
    %c0 = arith.constant 0 : index
    %c0_0 = arith.constant 0 : index
    %c0_1 = arith.constant 0 : index
    %c0_2 = arith.constant 0 : index
    %0 = vector.load %arg1[%c0, %c0_0, %c0_1, %c0_2] : memref<2x4x32x288xbf16, #tpu.memory_space<vmem>>, vector<2x4x32x288xbf16>
    %1 = vector.shape_cast %0 : vector<2x4x32x288xbf16> to vector<256x288xbf16>
    %c0_3 = arith.constant 0 : index
    %c0_4 = arith.constant 0 : index
    %2 = vector.load %arg2[%c0_3, %c0_4] : memref<288x64xbf16, #tpu.memory_space<vmem>>, vector<288x64xbf16>
    %cst = arith.constant dense<0.000000e+00> : vector<256x64xf32>
    %3 = tpu.matmul %1, %2, %cst {dimension_numbers = #tpu.dot_dimension_numbers<[1], [0], [0], [1], [0, 0, 1, 1], [], []>} : vector<256x288xbf16>, vector<288x64xbf16>, vector<256x64xf32> -> vector<256x64xf32>
    %4 = vector.shape_cast %3 : vector<256x64xf32> to vector<2x4x32x64xf32>
    %5 = vector.extract_strided_slice %4 {offsets = [0, 0, 0, 0], sizes = [2, 1, 32, 64], strides = [1, 1, 1, 1]} : vector<2x4x32x64xf32> to vector<2x1x32x64xf32>
    %6 = vector.shape_cast %5 : vector<2x1x32x64xf32> to vector<2x32x64xf32>
    %7 = vector.extract_strided_slice %4 {offsets = [0, 1, 0, 0], sizes = [2, 1, 32, 64], strides = [1, 1, 1, 1]} : vector<2x4x32x64xf32> to vector<2x1x32x64xf32>
    %8 = vector.shape_cast %7 : vector<2x1x32x64xf32> to vector<2x32x64xf32>
    %9 = arith.maximumf %6, %8 : vector<2x32x64xf32>
    %10 = vector.extract_strided_slice %4 {offsets = [0, 2, 0, 0], sizes = [2, 1, 32, 64], strides = [1, 1, 1, 1]} : vector<2x4x32x64xf32> to vector<2x1x32x64xf32>
    %11 = vector.shape_cast %10 : vector<2x1x32x64xf32> to vector<2x32x64xf32>
    %12 = vector.extract_strided_slice %4 {offsets = [0, 3, 0, 0], sizes = [2, 1, 32, 64], strides = [1, 1, 1, 1]} : vector<2x4x32x64xf32> to vector<2x1x32x64xf32>
    %13 = vector.shape_cast %12 : vector<2x1x32x64xf32> to vector<2x32x64xf32>
    %14 = arith.maximumf %11, %13 : vector<2x32x64xf32>
    %15 = arith.maximumf %9, %14 : vector<2x32x64xf32>
    %c0_5 = arith.constant 0 : index
    %c0_6 = arith.constant 0 : index
    %16 = vector.load %arg3[%c0_5, %c0_6] : memref<1x64xf32, #tpu.memory_space<vmem>>, vector<1x64xf32>
    %17 = vector.shape_cast %16 : vector<1x64xf32> to vector<1x1x64xf32>
    %18 = vector.broadcast %17 : vector<1x1x64xf32> to vector<2x32x64xf32>
    %19 = arith.addf %15, %18 : vector<2x32x64xf32>
    %cst_7 = arith.constant 0.000000e+00 : f32
    %20 = vector.broadcast %cst_7 : f32 to vector<2x32x64xf32>
    %21 = arith.maximumf %19, %20 : vector<2x32x64xf32>
    %22 = arith.truncf %21 : vector<2x32x64xf32> to vector<2x32x64xbf16>
    %c0_8 = arith.constant 0 : index
    %c0_9 = arith.constant 0 : index
    %c0_10 = arith.constant 0 : index
    %23 = vector.load %arg4[%c0_8, %c0_9, %c0_10] : memref<2x32x64xbf16, #tpu.memory_space<vmem>>, vector<2x32x64xbf16>
    tpu.vector_store %arg4[%c0_8, %c0_9, %c0_10], %22 {strides = array<i32>} : memref<2x32x64xbf16, #tpu.memory_space<vmem>>, vector<2x32x64xbf16>,
    return
  }
  func.func @transform_0(%arg0: i32) -> (i32, i32, i32, i32) {
    %c0_i32 = arith.constant 0 : i32
    %c0_i32_0 = arith.constant 0 : i32
    %c0_i32_1 = arith.constant 0 : i32
    %c0_i32_2 = arith.constant 0 : i32
    return %arg0, %c0_i32, %c0_i32_0, %c0_i32_1 : i32, i32, i32, i32
  }
  func.func @transform_1(%arg0: i32) -> (i32, i32) {
    %c0_i32 = arith.constant 0 : i32
    %c0_i32_0 = arith.constant 0 : i32
    %c0_i32_1 = arith.constant 0 : i32
    return %c0_i32, %c0_i32_0 : i32, i32
  }
  func.func @transform_2(%arg0: i32) -> (i32, i32) {
    %c0_i32 = arith.constant 0 : i32
    %c0_i32_0 = arith.constant 0 : i32
    %c0_i32_1 = arith.constant 0 : i32
    return %c0_i32, %c0_i32_0 : i32, i32
  }
  func.func @transform_3(%arg0: i32) -> (i32, i32, i32) {
    %c0_i32 = arith.constant 0 : i32
    %c0_i32_0 = arith.constant 0 : i32
    %c0_i32_1 = arith.constant 0 : i32
    return %arg0, %c0_i32, %c0_i32_0 : i32, i32, i32
  }
}

module attributes {stable_mosaic.version = 11 : i64} {
  func.func @_fc_head_kernel(%arg0: i32, %arg1: memref<2x1600xbf16, #tpu.memory_space<vmem>>, %arg2: memref<1600x128xbf16, #tpu.memory_space<vmem>>, %arg3: memref<1x128xf32, #tpu.memory_space<vmem>>, %arg4: memref<2x128xf32, #tpu.memory_space<vmem>>, %arg5: memref<128x128xbf16, #tpu.memory_space<vmem>>, %arg6: memref<1x128xf32, #tpu.memory_space<vmem>>, %arg7: memref<2x128xf32, #tpu.memory_space<vmem>>) attributes {dimension_semantics = [#tpu.dimension_semantics<parallel>], iteration_bounds = array<i64: 1>, scalar_prefetch = 0 : i64, scratch_operands = 0 : i64, tpu.core_type = #tpu.core_type<tc>, window_params = [{transform_indices = @transform_0, window_bounds = array<i64: 2, 1600>}, {pipeline_mode = #tpu.pipeline_mode<synchronous>, transform_indices = @transform_1, window_bounds = array<i64: 1600, 128>}, {pipeline_mode = #tpu.pipeline_mode<synchronous>, transform_indices = @transform_2, window_bounds = array<i64: 1, 128>}, {transform_indices = @transform_3, window_bounds = array<i64: 2, 128>}, {pipeline_mode = #tpu.pipeline_mode<synchronous>, transform_indices = @transform_4, window_bounds = array<i64: 128, 128>}, {pipeline_mode = #tpu.pipeline_mode<synchronous>, transform_indices = @transform_5, window_bounds = array<i64: 1, 128>}, {transform_indices = @transform_6, window_bounds = array<i64: 2, 128>}]} {
    %c0 = arith.constant 0 : index
    %c0_0 = arith.constant 0 : index
    %0 = vector.load %arg1[%c0, %c0_0] : memref<2x1600xbf16, #tpu.memory_space<vmem>>, vector<2x1600xbf16>
    %c0_1 = arith.constant 0 : index
    %c0_2 = arith.constant 0 : index
    %1 = vector.load %arg2[%c0_1, %c0_2] : memref<1600x128xbf16, #tpu.memory_space<vmem>>, vector<1600x128xbf16>
    %cst = arith.constant dense<0.000000e+00> : vector<2x128xf32>
    %2 = tpu.matmul %0, %1, %cst {dimension_numbers = #tpu.dot_dimension_numbers<[1], [0], [0], [1], [0, 0, 1, 1], [], []>} : vector<2x1600xbf16>, vector<1600x128xbf16>, vector<2x128xf32> -> vector<2x128xf32>
    %c0_3 = arith.constant 0 : index
    %c0_4 = arith.constant 0 : index
    %3 = vector.load %arg3[%c0_3, %c0_4] : memref<1x128xf32, #tpu.memory_space<vmem>>, vector<1x128xf32>
    %4 = vector.broadcast %3 : vector<1x128xf32> to vector<2x128xf32>
    %5 = arith.addf %2, %4 : vector<2x128xf32>
    %cst_5 = arith.constant 0.000000e+00 : f32
    %6 = vector.broadcast %cst_5 : f32 to vector<2x128xf32>
    %7 = arith.maximumf %5, %6 : vector<2x128xf32>
    %c0_6 = arith.constant 0 : index
    %c0_7 = arith.constant 0 : index
    %8 = vector.load %arg4[%c0_6, %c0_7] : memref<2x128xf32, #tpu.memory_space<vmem>>, vector<2x128xf32>
    %9 = arith.mulf %7, %8 : vector<2x128xf32>
    %10 = arith.truncf %9 : vector<2x128xf32> to vector<2x128xbf16>
    %c0_8 = arith.constant 0 : index
    %c0_9 = arith.constant 0 : index
    %11 = vector.load %arg5[%c0_8, %c0_9] : memref<128x128xbf16, #tpu.memory_space<vmem>>, vector<128x128xbf16>
    %cst_10 = arith.constant dense<0.000000e+00> : vector<2x128xf32>
    %12 = tpu.matmul %10, %11, %cst_10 {dimension_numbers = #tpu.dot_dimension_numbers<[1], [0], [0], [1], [0, 0, 1, 1], [], []>} : vector<2x128xbf16>, vector<128x128xbf16>, vector<2x128xf32> -> vector<2x128xf32>
    %c0_11 = arith.constant 0 : index
    %c0_12 = arith.constant 0 : index
    %13 = vector.load %arg6[%c0_11, %c0_12] : memref<1x128xf32, #tpu.memory_space<vmem>>, vector<1x128xf32>
    %14 = vector.broadcast %13 : vector<1x128xf32> to vector<2x128xf32>
    %15 = arith.addf %12, %14 : vector<2x128xf32>
    %c0_13 = arith.constant 0 : index
    %c0_14 = arith.constant 0 : index
    %16 = vector.load %arg7[%c0_13, %c0_14] : memref<2x128xf32, #tpu.memory_space<vmem>>, vector<2x128xf32>
    tpu.vector_store %arg7[%c0_13, %c0_14], %15 {strides = array<i32>} : memref<2x128xf32, #tpu.memory_space<vmem>>, vector<2x128xf32>,
    return
  }
  func.func @transform_0(%arg0: i32) -> (i32, i32) {
    %c0_i32 = arith.constant 0 : i32
    %c0_i32_0 = arith.constant 0 : i32
    return %arg0, %c0_i32 : i32, i32
  }
  func.func @transform_1(%arg0: i32) -> (i32, i32) {
    %c0_i32 = arith.constant 0 : i32
    %c0_i32_0 = arith.constant 0 : i32
    %c0_i32_1 = arith.constant 0 : i32
    return %c0_i32, %c0_i32_0 : i32, i32
  }
  func.func @transform_2(%arg0: i32) -> (i32, i32) {
    %c0_i32 = arith.constant 0 : i32
    %c0_i32_0 = arith.constant 0 : i32
    %c0_i32_1 = arith.constant 0 : i32
    return %c0_i32, %c0_i32_0 : i32, i32
  }
  func.func @transform_3(%arg0: i32) -> (i32, i32) {
    %c0_i32 = arith.constant 0 : i32
    %c0_i32_0 = arith.constant 0 : i32
    return %arg0, %c0_i32 : i32, i32
  }
  func.func @transform_4(%arg0: i32) -> (i32, i32) {
    %c0_i32 = arith.constant 0 : i32
    %c0_i32_0 = arith.constant 0 : i32
    %c0_i32_1 = arith.constant 0 : i32
    return %c0_i32, %c0_i32_0 : i32, i32
  }
  func.func @transform_5(%arg0: i32) -> (i32, i32) {
    %c0_i32 = arith.constant 0 : i32
    %c0_i32_0 = arith.constant 0 : i32
    %c0_i32_1 = arith.constant 0 : i32
    return %c0_i32, %c0_i32_0 : i32, i32
  }
  func.func @transform_6(%arg0: i32) -> (i32, i32) {
    %c0_i32 = arith.constant 0 : i32
    %c0_i32_0 = arith.constant 0 : i32
    return %arg0, %c0_i32 : i32, i32
  }
}

</mosaic_0001>

<llo_original>
// kernel: forward.3
$region0: #{forward.3}
  #allocation0 [shape = 'u32[]', space=smem, size = 0x4, offset = 0x4, fixed_abs, tag = 'smem constant byte address 0x4 - core index']
  #allocation1 [shape = 'u32[144,128]{1,0:T(1,128)}', space=vmem, size = 0x12000, scoped, tag = 'internal scratch']
  %s0 = inlined_call_operand.vmem [shape: bf16[2,4,176,9], index: 0, kind: input, shape index: {}]
  %s1 = inlined_call_operand.vmem [shape: bf16[9,32], index: 1, kind: input, shape index: {}]
  %s2 = inlined_call_operand.vmem [shape: f32[1,32], index: 2, kind: input, shape index: {}]
  %s3 = inlined_call_operand.vmem [shape: bf16[2,176,32], index: 3, kind: output, shape index: {}]
  %s4 = sld [smem:[#allocation0]]
  $region22: #{forward.3} parent=0
    _
  %s6 = ssub.s32 1, %s4
  %s7 = scalar_select 0, %s6, %s4
  // Predicated region
  $region2: #{forward.3} parent=0 // pred_check
    _
  $region3: #{forward.3} parent=0 // pred_check_branch
    %9 = sbr.rel (0) target = $region5
  $region4: #{forward.3} parent=0 // pred_region
    _
  $region5: #{forward.3} parent=0 // pred_fallthru
    _
  // Predicated region
  $region6: #{forward.3} parent=0 // pred_check
    _
  $region7: #{forward.3} parent=0 // pred_check_branch
    %11 = sbr.rel (0) target = $region9
  $region8: #{forward.3} parent=0 // pred_region
    _
  $region9: #{forward.3} parent=0 // pred_fallthru
    _
  // Predicated region
  $region10: #{forward.3} parent=0 // pred_check
    _
  $region11: #{forward.3} parent=0 // pred_check_branch
    %13 = sbr.rel (0) target = $region13
  $region12: #{forward.3} parent=0 // pred_region
    _
  $region13: #{forward.3} parent=0 // pred_fallthru
    _
  %v15 = vld [vmem:[%s0] sm:$0xf]
  %v16 = vld [vmem:[%s0 + $0x4] sm:$0xf]
  %v17 = vld [vmem:[%s0 + $0x8] sm:$0xf]
  %v18 = vld [vmem:[%s0 + $0xc] sm:$0xf]
  %v19 = vld [vmem:[%s0 + $0x10] sm:$0xf]
  %v20 = vld [vmem:[%s0 + $0x14] sm:$0xf]
  %v21 = vld [vmem:[%s0 + $0x18] sm:$0xf]
  %v22 = vld [vmem:[%s0 + $0x1c] sm:$0xf]
  %v23 = vld [vmem:[%s0 + $0x20] sm:$0xf]
  %v24 = vld [vmem:[%s0 + $0x24] sm:$0xf]
  %v25 = vld [vmem:[%s0 + $0x28] sm:$0xf]
  %v26 = vld [vmem:[%s0 + $0x2c] sm:$0xf]
  %v27 = vld [vmem:[%s0 + $0x30] sm:$0xf]
  %v28 = vld [vmem:[%s0 + $0x34] sm:$0xf]
  %v29 = vld [vmem:[%s0 + $0x38] sm:$0xf]
  %v30 = vld [vmem:[%s0 + $0x3c] sm:$0xf]
  %v31 = vld [vmem:[%s0 + $0x40] sm:$0xf]
  %v32 = vld [vmem:[%s0 + $0x44] sm:$0xf]
  %v33 = vld [vmem:[%s0 + $0x48] sm:$0xf]
  %v34 = vld [vmem:[%s0 + $0x4c] sm:$0xf]
  %v35 = vld [vmem:[%s0 + $0x50] sm:$0xf]
  %v36 = vld [vmem:[%s0 + $0x54] sm:$0xf]
  %v37 = vld [vmem:[%s0 + $0x58] sm:$0xf]
  %v38 = vld [vmem:[%s0 + $0x5c] sm:$0xf]
  %v39 = vld [vmem:[%s0 + $0x60] sm:$0xf]
  %v40 = vld [vmem:[%s0 + $0x64] sm:$0xf]
  %v41 = vld [vmem:[%s0 + $0x68] sm:$0xf]
  %v42 = vld [vmem:[%s0 + $0x6c] sm:$0xf]
  %v43 = vld [vmem:[%s0 + $0x70] sm:$0xf]
  %v44 = vld [vmem:[%s0 + $0x74] sm:$0xf]
  %v45 = vld [vmem:[%s0 + $0x78] sm:$0xf]
  %v46 = vld [vmem:[%s0 + $0x7c] sm:$0xf]
  %v47 = vld [vmem:[%s0 + $0x80] sm:$0xf]
  %v48 = vld [vmem:[%s0 + $0x84] sm:$0xf]
  %v49 = vld [vmem:[%s0 + $0x88] sm:$0xf]
  %v50 = vld [vmem:[%s0 + $0x8c] sm:$0xf]
  %v51 = vld [vmem:[%s0 + $0x90] sm:$0xf]
  %v52 = vld [vmem:[%s0 + $0x94] sm:$0xf]
  %v53 = vld [vmem:[%s0 + $0x98] sm:$0xf]
  %v54 = vld [vmem:[%s0 + $0x9c] sm:$0xf]
  %v55 = vld [vmem:[%s0 + $0xa0] sm:$0xf]
  %v56 = vld [vmem:[%s0 + $0xa4] sm:$0xf]
  %v57 = vld [vmem:[%s0 + $0xa8] sm:$0xf]
  %v58 = vld [vmem:[%s0 + $0xac] sm:$0xf]
  %v59 = vld [vmem:[%s0 + $0xb0] sm:$0xf]
  %v60 = vld [vmem:[%s0 + $0xb4] sm:$0xf]
  %v61 = vld [vmem:[%s0 + $0xb8] sm:$0xf]
  %v62 = vld [vmem:[%s0 + $0xbc] sm:$0xf]
  %v63 = vld [vmem:[%s0 + $0xc0] sm:$0xf]
  %v64 = vld [vmem:[%s0 + $0xc4] sm:$0xf]
  %v65 = vld [vmem:[%s0 + $0xc8] sm:$0xf]
  %v66 = vld [vmem:[%s0 + $0xcc] sm:$0xf]
  %v67 = vld [vmem:[%s0 + $0xd0] sm:$0xf]
  %v68 = vld [vmem:[%s0 + $0xd4] sm:$0xf]
  %v69 = vld [vmem:[%s0 + $0xd8] sm:$0xf]
  %v70 = vld [vmem:[%s0 + $0xdc] sm:$0xf]
  %v71 = vld [vmem:[%s0 + $0xe0] sm:$0xf]
  %v72 = vld [vmem:[%s0 + $0xe4] sm:$0xf]
  %v73 = vld [vmem:[%s0 + $0xe8] sm:$0xf]
  %v74 = vld [vmem:[%s0 + $0xec] sm:$0xf]
  %v75 = vld [vmem:[%s0 + $0xf0] sm:$0xf]
  %v76 = vld [vmem:[%s0 + $0xf4] sm:$0xf]
  %v77 = vld [vmem:[%s0 + $0xf8] sm:$0xf]
  %v78 = vld [vmem:[%s0 + $0xfc] sm:$0xf]
  %v79 = vld [vmem:[%s0 + $0x100] sm:$0xf]
  %v80 = vld [vmem:[%s0 + $0x104] sm:$0xf]
  %v81 = vld [vmem:[%s0 + $0x108] sm:$0xf]
  %v82 = vld [vmem:[%s0 + $0x10c] sm:$0xf]
  %v83 = vld [vmem:[%s0 + $0x110] sm:$0xf]
  %v84 = vld [vmem:[%s0 + $0x114] sm:$0xf]
  %v85 = vld [vmem:[%s0 + $0x118] sm:$0xf]
  %v86 = vld [vmem:[%s0 + $0x11c] sm:$0xf]
  %v87 = vld [vmem:[%s0 + $0x120] sm:$0xf]
  %v88 = vld [vmem:[%s0 + $0x124] sm:$0xf]
  %v89 = vld [vmem:[%s0 + $0x128] sm:$0xf]
  %v90 = vld [vmem:[%s0 + $0x12c] sm:$0xf]
  %v91 = vld [vmem:[%s0 + $0x130] sm:$0xf]
  %v92 = vld [vmem:[%s0 + $0x134] sm:$0xf]
  %v93 = vld [vmem:[%s0 + $0x138] sm:$0xf]
  %v94 = vld [vmem:[%s0 + $0x13c] sm:$0xf]
  %v95 = vld [vmem:[%s0 + $0x140] sm:$0xf]
  %v96 = vld [vmem:[%s0 + $0x144] sm:$0xf]
  %v97 = vld [vmem:[%s0 + $0x148] sm:$0xf]
  %v98 = vld [vmem:[%s0 + $0x14c] sm:$0xf]
  %v99 = vld [vmem:[%s0 + $0x150] sm:$0xf]
  %v100 = vld [vmem:[%s0 + $0x154] sm:$0xf]
  %v101 = vld [vmem:[%s0 + $0x158] sm:$0xf]
  %v102 = vld [vmem:[%s0 + $0x15c] sm:$0xf]
  %v103 = vld [vmem:[%s0 + $0x160] sm:$0xf]
  %v104 = vld [vmem:[%s0 + $0x164] sm:$0xf]
  %v105 = vld [vmem:[%s0 + $0x168] sm:$0xf]
  %v106 = vld [vmem:[%s0 + $0x16c] sm:$0xf]
  %v107 = vld [vmem:[%s0 + $0x170] sm:$0xf]
  %v108 = vld [vmem:[%s0 + $0x174] sm:$0xf]
  %v109 = vld [vmem:[%s0 + $0x178] sm:$0xf]
  %v110 = vld [vmem:[%s0 + $0x17c] sm:$0xf]
  %v111 = vld [vmem:[%s0 + $0x180] sm:$0xf]
  %v112 = vld [vmem:[%s0 + $0x184] sm:$0xf]
  %v113 = vld [vmem:[%s0 + $0x188] sm:$0xf]
  %v114 = vld [vmem:[%s0 + $0x18c] sm:$0xf]
  %v115 = vld [vmem:[%s0 + $0x190] sm:$0xf]
  %v116 = vld [vmem:[%s0 + $0x194] sm:$0xf]
  %v117 = vld [vmem:[%s0 + $0x198] sm:$0xf]
  %v118 = vld [vmem:[%s0 + $0x19c] sm:$0xf]
  %v119 = vld [vmem:[%s0 + $0x1a0] sm:$0xf]
  %v120 = vld [vmem:[%s0 + $0x1a4] sm:$0xf]
  %v121 = vld [vmem:[%s0 + $0x1a8] sm:$0xf]
  %v122 = vld [vmem:[%s0 + $0x1ac] sm:$0xf]
  %v123 = vld [vmem:[%s0 + $0x1b0] sm:$0xf]
  %v124 = vld [vmem:[%s0 + $0x1b4] sm:$0xf]
  %v125 = vld [vmem:[%s0 + $0x1b8] sm:$0xf]
  %v126 = vld [vmem:[%s0 + $0x1bc] sm:$0xf]
  %v127 = vld [vmem:[%s0 + $0x1c0] sm:$0xf]
  %v128 = vld [vmem:[%s0 + $0x1c4] sm:$0xf]
  %v129 = vld [vmem:[%s0 + $0x1c8] sm:$0xf]
  %v130 = vld [vmem:[%s0 + $0x1cc] sm:$0xf]
  %v131 = vld [vmem:[%s0 + $0x1d0] sm:$0xf]
  %v132 = vld [vmem:[%s0 + $0x1d4] sm:$0xf]
  %v133 = vld [vmem:[%s0 + $0x1d8] sm:$0xf]
  %v134 = vld [vmem:[%s0 + $0x1dc] sm:$0xf]
  %v135 = vld [vmem:[%s0 + $0x1e0] sm:$0xf]
  %v136 = vld [vmem:[%s0 + $0x1e4] sm:$0xf]
  %v137 = vld [vmem:[%s0 + $0x1e8] sm:$0xf]
  %v138 = vld [vmem:[%s0 + $0x1ec] sm:$0xf]
  %v139 = vld [vmem:[%s0 + $0x1f0] sm:$0xf]
  %v140 = vld [vmem:[%s0 + $0x1f4] sm:$0xf]
  %v141 = vld [vmem:[%s0 + $0x1f8] sm:$0xf]
  %v142 = vld [vmem:[%s0 + $0x1fc] sm:$0xf]
  %v143 = vld [vmem:[%s0 + $0x200] sm:$0xf]
  %v144 = vld [vmem:[%s0 + $0x204] sm:$0xf]
  %v145 = vld [vmem:[%s0 + $0x208] sm:$0xf]
  %v146 = vld [vmem:[%s0 + $0x20c] sm:$0xf]
  %v147 = vld [vmem:[%s0 + $0x210] sm:$0xf]
  %v148 = vld [vmem:[%s0 + $0x214] sm:$0xf]
  %v149 = vld [vmem:[%s0 + $0x218] sm:$0xf]
  %v150 = vld [vmem:[%s0 + $0x21c] sm:$0xf]
  %v151 = vld [vmem:[%s0 + $0x220] sm:$0xf]
  %v152 = vld [vmem:[%s0 + $0x224] sm:$0xf]
  %v153 = vld [vmem:[%s0 + $0x228] sm:$0xf]
  %v154 = vld [vmem:[%s0 + $0x22c] sm:$0xf]
  %v155 = vld [vmem:[%s0 + $0x230] sm:$0xf]
  %v156 = vld [vmem:[%s0 + $0x234] sm:$0xf]
  %v157 = vld [vmem:[%s0 + $0x238] sm:$0xf]
  %v158 = vld [vmem:[%s0 + $0x23c] sm:$0xf]
  %v159 = vld [vmem:[%s0 + $0x240] sm:$0xf]
  %v160 = vld [vmem:[%s0 + $0x244] sm:$0xf]
  %v161 = vld [vmem:[%s0 + $0x248] sm:$0xf]
  %v162 = vld [vmem:[%s0 + $0x24c] sm:$0xf]
  %v163 = vld [vmem:[%s0 + $0x250] sm:$0xf]
  %v164 = vld [vmem:[%s0 + $0x254] sm:$0xf]
  %v165 = vld [vmem:[%s0 + $0x258] sm:$0xf]
  %v166 = vld [vmem:[%s0 + $0x25c] sm:$0xf]
  %v167 = vld [vmem:[%s0 + $0x260] sm:$0xf]
  %v168 = vld [vmem:[%s0 + $0x264] sm:$0xf]
  %v169 = vld [vmem:[%s0 + $0x268] sm:$0xf]
  %v170 = vld [vmem:[%s0 + $0x26c] sm:$0xf]
  %v171 = vld [vmem:[%s0 + $0x270] sm:$0xf]
  %v172 = vld [vmem:[%s0 + $0x274] sm:$0xf]
  %v173 = vld [vmem:[%s0 + $0x278] sm:$0xf]
  %v174 = vld [vmem:[%s0 + $0x27c] sm:$0xf]
  %v175 = vld [vmem:[%s0 + $0x280] sm:$0xf]
  %v176 = vld [vmem:[%s0 + $0x284] sm:$0xf]
  %v177 = vld [vmem:[%s0 + $0x288] sm:$0xf]
  %v178 = vld [vmem:[%s0 + $0x28c] sm:$0xf]
  %v179 = vld [vmem:[%s0 + $0x290] sm:$0xf]
  %v180 = vld [vmem:[%s0 + $0x294] sm:$0xf]
  %v181 = vld [vmem:[%s0 + $0x298] sm:$0xf]
  %v182 = vld [vmem:[%s0 + $0x29c] sm:$0xf]
  %v183 = vld [vmem:[%s0 + $0x2a0] sm:$0xf]
  %v184 = vld [vmem:[%s0 + $0x2a4] sm:$0xf]
  %v185 = vld [vmem:[%s0 + $0x2a8] sm:$0xf]
  %v186 = vld [vmem:[%s0 + $0x2ac] sm:$0xf]
  %v187 = vld [vmem:[%s0 + $0x2b0] sm:$0xf]
  %v188 = vld [vmem:[%s0 + $0x2b4] sm:$0xf]
  %v189 = vld [vmem:[%s0 + $0x2b8] sm:$0xf]
  %v190 = vld [vmem:[%s0 + $0x2bc] sm:$0xf]
  %v191 = vld [vmem:[%s1] sm:$0xf]
  %v192 = vld [vmem:[%s1 + $0x4] sm:$0x1]
  %v369 = vunpack.c.l.b16 %v15
  %v370 = vunpack.c.l.b16 %v16
  %v371 = vunpack.c.l.b16 %v17
  %v372 = vunpack.c.l.b16 %v18
  %v373 = vunpack.c.l.b16 %v19
  %v374 = vunpack.c.l.b16 %v20
  %v375 = vunpack.c.l.b16 %v21
  %v376 = vunpack.c.l.b16 %v22
  %v377 = vunpack.c.l.b16 %v23
  %v378 = vunpack.c.l.b16 %v24
  %v379 = vunpack.c.l.b16 %v25
  %v380 = vunpack.c.l.b16 %v26
  %v381 = vunpack.c.l.b16 %v27
  %v382 = vunpack.c.l.b16 %v28
  %v383 = vunpack.c.l.b16 %v29
  %v384 = vunpack.c.l.b16 %v30
  %v385 = vunpack.c.l.b16 %v31
  %v386 = vunpack.c.l.b16 %v32
  %v387 = vunpack.c.l.b16 %v33
  %v388 = vunpack.c.l.b16 %v34
  %v389 = vunpack.c.l.b16 %v35
  %v390 = vunpack.c.l.b16 %v36
  %v391 = vunpack.c.l.b16 %v37
  %v392 = vunpack.c.l.b16 %v38
  %v393 = vunpack.c.l.b16 %v39
  %v394 = vunpack.c.l.b16 %v40
  %v395 = vunpack.c.l.b16 %v41
  %v396 = vunpack.c.l.b16 %v42
  %v397 = vunpack.c.l.b16 %v43
  %v398 = vunpack.c.l.b16 %v44
  %v399 = vunpack.c.l.b16 %v45
  %v400 = vunpack.c.l.b16 %v46
  %v401 = vunpack.c.l.b16 %v47
  %v402 = vunpack.c.l.b16 %v48
  %v403 = vunpack.c.l.b16 %v49
  %v404 = vunpack.c.l.b16 %v50
  %v405 = vunpack.c.l.b16 %v51
  %v406 = vunpack.c.l.b16 %v52
  %v407 = vunpack.c.l.b16 %v53
  %v408 = vunpack.c.l.b16 %v54
  %v409 = vunpack.c.l.b16 %v55
  %v410 = vunpack.c.l.b16 %v56
  %v411 = vunpack.c.l.b16 %v57
  %v412 = vunpack.c.l.b16 %v58
  %v413 = vunpack.c.l.b16 %v59
  %v414 = vunpack.c.l.b16 %v60
  %v415 = vunpack.c.l.b16 %v61
  %v416 = vunpack.c.l.b16 %v62
  %v417 = vunpack.c.l.b16 %v63
  %v418 = vunpack.c.l.b16 %v64
  %v419 = vunpack.c.l.b16 %v65
  %v420 = vunpack.c.l.b16 %v66
  %v421 = vunpack.c.l.b16 %v67
  %v422 = vunpack.c.l.b16 %v68
  %v423 = vunpack.c.l.b16 %v69
  %v424 = vunpack.c.l.b16 %v70
  %v425 = vunpack.c.l.b16 %v71
  %v426 = vunpack.c.l.b16 %v72
  %v427 = vunpack.c.l.b16 %v73
  %v428 = vunpack.c.l.b16 %v74
  %v429 = vunpack.c.l.b16 %v75
  %v430 = vunpack.c.l.b16 %v76
  %v431 = vunpack.c.l.b16 %v77
  %v432 = vunpack.c.l.b16 %v78
  %v433 = vunpack.c.l.b16 %v79
  %v434 = vunpack.c.l.b16 %v80
  %v435 = vunpack.c.l.b16 %v81
  %v436 = vunpack.c.l.b16 %v82
  %v437 = vunpack.c.l.b16 %v83
  %v438 = vunpack.c.l.b16 %v84
  %v439 = vunpack.c.l.b16 %v85
  %v440 = vunpack.c.l.b16 %v86
  %v441 = vunpack.c.l.b16 %v87
  %v442 = vunpack.c.l.b16 %v88
  %v443 = vunpack.c.l.b16 %v89
  %v444 = vunpack.c.l.b16 %v90
  %v445 = vunpack.c.l.b16 %v91
  %v446 = vunpack.c.l.b16 %v92
  %v447 = vunpack.c.l.b16 %v93
  %v448 = vunpack.c.l.b16 %v94
  %v449 = vunpack.c.l.b16 %v95
  %v450 = vunpack.c.l.b16 %v96
  %v451 = vunpack.c.l.b16 %v97
  %v452 = vunpack.c.l.b16 %v98
  %v453 = vunpack.c.l.b16 %v99
  %v454 = vunpack.c.l.b16 %v100
  %v455 = vunpack.c.l.b16 %v101
  %v456 = vunpack.c.l.b16 %v102
  %v457 = vunpack.c.l.b16 %v103
  %v458 = vunpack.c.l.b16 %v104
  %v459 = vunpack.c.l.b16 %v105
  %v460 = vunpack.c.l.b16 %v106
  %v461 = vunpack.c.l.b16 %v107
  %v462 = vunpack.c.l.b16 %v108
  %v463 = vunpack.c.l.b16 %v109
  %v464 = vunpack.c.l.b16 %v110
  %v465 = vunpack.c.l.b16 %v111
  %v466 = vunpack.c.l.b16 %v112
  %v467 = vunpack.c.l.b16 %v113
  %v468 = vunpack.c.l.b16 %v114
  %v469 = vunpack.c.l.b16 %v115
  %v470 = vunpack.c.l.b16 %v116
  %v471 = vunpack.c.l.b16 %v117
  %v472 = vunpack.c.l.b16 %v118
  %v473 = vunpack.c.l.b16 %v119
  %v474 = vunpack.c.l.b16 %v120
  %v475 = vunpack.c.l.b16 %v121
  %v476 = vunpack.c.l.b16 %v122
  %v477 = vunpack.c.l.b16 %v123
  %v478 = vunpack.c.l.b16 %v124
  %v479 = vunpack.c.l.b16 %v125
  %v480 = vunpack.c.l.b16 %v126
  %v481 = vunpack.c.l.b16 %v127
  %v482 = vunpack.c.l.b16 %v128
  %v483 = vunpack.c.l.b16 %v129
  %v484 = vunpack.c.l.b16 %v130
  %v485 = vunpack.c.l.b16 %v131
  %v486 = vunpack.c.l.b16 %v132
  %v487 = vunpack.c.l.b16 %v133
  %v488 = vunpack.c.l.b16 %v134
  %v489 = vunpack.c.l.b16 %v135
  %v490 = vunpack.c.l.b16 %v136
  %v491 = vunpack.c.l.b16 %v137
  %v492 = vunpack.c.l.b16 %v138
  %v493 = vunpack.c.l.b16 %v139
  %v494 = vunpack.c.l.b16 %v140
  %v495 = vunpack.c.l.b16 %v141
  %v496 = vunpack.c.l.b16 %v142
  %v497 = vunpack.c.l.b16 %v143
  %v498 = vunpack.c.l.b16 %v144
  %v499 = vunpack.c.l.b16 %v145
  %v500 = vunpack.c.l.b16 %v146
  %v501 = vunpack.c.l.b16 %v147
  %v502 = vunpack.c.l.b16 %v148
  %v503 = vunpack.c.l.b16 %v149
  %v504 = vunpack.c.l.b16 %v150
  %v505 = vunpack.c.l.b16 %v151
  %v506 = vunpack.c.l.b16 %v152
  %v507 = vunpack.c.l.b16 %v153
  %v508 = vunpack.c.l.b16 %v154
  %v509 = vunpack.c.l.b16 %v155
  %v510 = vunpack.c.l.b16 %v156
  %v511 = vunpack.c.l.b16 %v157
  %v512 = vunpack.c.l.b16 %v158
  %v513 = vunpack.c.l.b16 %v159
  %v514 = vunpack.c.l.b16 %v160
  %v515 = vunpack.c.l.b16 %v161
  %v516 = vunpack.c.l.b16 %v162
  %v517 = vunpack.c.l.b16 %v163
  %v518 = vunpack.c.l.b16 %v164
  %v519 = vunpack.c.l.b16 %v165
  %v520 = vunpack.c.l.b16 %v166
  %v521 = vunpack.c.l.b16 %v167
  %v522 = vunpack.c.l.b16 %v168
  %v523 = vunpack.c.l.b16 %v169
  %v524 = vunpack.c.l.b16 %v170
  %v525 = vunpack.c.l.b16 %v171
  %v526 = vunpack.c.l.b16 %v172
  %v527 = vunpack.c.l.b16 %v173
  %v528 = vunpack.c.l.b16 %v174
  %v529 = vunpack.c.l.b16 %v175
  %v530 = vunpack.c.l.b16 %v176
  %v531 = vunpack.c.l.b16 %v177
  %v532 = vunpack.c.l.b16 %v178
  %v533 = vunpack.c.l.b16 %v179
  %v534 = vunpack.c.l.b16 %v180
  %v535 = vunpack.c.l.b16 %v181
  %v536 = vunpack.c.l.b16 %v182
  %v537 = vunpack.c.l.b16 %v183
  %v538 = vunpack.c.l.b16 %v184
  %v539 = vunpack.c.l.b16 %v185
  %v540 = vunpack.c.l.b16 %v186
  %v541 = vunpack.c.l.b16 %v187
  %v542 = vunpack.c.l.b16 %v188
  %v543 = vunpack.c.l.b16 %v189
  %v544 = vunpack.c.l.b16 %v190
  %v545 = vpack.c.b16 %v370, %v369
  %v546 = vpack.c.b16 %v372, %v371
  %v547 = vpack.c.b16 %v374, %v373
  %v548 = vpack.c.b16 %v376, %v375
  %v549 = vpack.c.b16 %v378, %v377
  %v550 = vpack.c.b16 %v380, %v379
  %v551 = vpack.c.b16 %v382, %v381
  %v552 = vpack.c.b16 %v384, %v383
  %v553 = vpack.c.b16 %v386, %v385
  %v554 = vpack.c.b16 %v388, %v387
  %v555 = vpack.c.b16 %v390, %v389
  %v556 = vpack.c.b16 %v392, %v391
  %v557 = vpack.c.b16 %v394, %v393
  %v558 = vpack.c.b16 %v396, %v395
  %v559 = vpack.c.b16 %v398, %v397
  %v560 = vpack.c.b16 %v400, %v399
  %v561 = vpack.c.b16 %v402, %v401
  %v562 = vpack.c.b16 %v404, %v403
  %v563 = vpack.c.b16 %v406, %v405
  %v564 = vpack.c.b16 %v408, %v407
  %v565 = vpack.c.b16 %v410, %v409
  %v566 = vpack.c.b16 %v412, %v411
  %v567 = vpack.c.b16 %v414, %v413
  %v568 = vpack.c.b16 %v416, %v415
  %v569 = vpack.c.b16 %v418, %v417
  %v570 = vpack.c.b16 %v420, %v419
  %v571 = vpack.c.b16 %v422, %v421
  %v572 = vpack.c.b16 %v424, %v423
  %v573 = vpack.c.b16 %v426, %v425
  %v574 = vpack.c.b16 %v428, %v427
  %v575 = vpack.c.b16 %v430, %v429
  %v576 = vpack.c.b16 %v432, %v431
  %v577 = vpack.c.b16 %v434, %v433
  %v578 = vpack.c.b16 %v436, %v435
  %v579 = vpack.c.b16 %v438, %v437
  %v580 = vpack.c.b16 %v440, %v439
  %v581 = vpack.c.b16 %v442, %v441
  %v582 = vpack.c.b16 %v444, %v443
  %v583 = vpack.c.b16 %v446, %v445
  %v584 = vpack.c.b16 %v448, %v447
  %v585 = vpack.c.b16 %v450, %v449
  %v586 = vpack.c.b16 %v452, %v451
  %v587 = vpack.c.b16 %v454, %v453
  %v588 = vpack.c.b16 %v456, %v455
  %v589 = vpack.c.b16 %v458, %v457
  %v590 = vpack.c.b16 %v460, %v459
  %v591 = vpack.c.b16 %v462, %v461
  %v592 = vpack.c.b16 %v464, %v463
  %v593 = vpack.c.b16 %v466, %v465
  %v594 = vpack.c.b16 %v468, %v467
  %v595 = vpack.c.b16 %v470, %v469
  %v596 = vpack.c.b16 %v472, %v471
  %v597 = vpack.c.b16 %v474, %v473
  %v598 = vpack.c.b16 %v476, %v475
  %v599 = vpack.c.b16 %v478, %v477
  %v600 = vpack.c.b16 %v480, %v479
  %v601 = vpack.c.b16 %v482, %v481
  %v602 = vpack.c.b16 %v484, %v483
  %v603 = vpack.c.b16 %v486, %v485
  %v604 = vpack.c.b16 %v488, %v487
  %v605 = vpack.c.b16 %v490, %v489
  %v606 = vpack.c.b16 %v492, %v491
  %v607 = vpack.c.b16 %v494, %v493
  %v608 = vpack.c.b16 %v496, %v495
  %v609 = vpack.c.b16 %v498, %v497
  %v610 = vpack.c.b16 %v500, %v499
  %v611 = vpack.c.b16 %v502, %v501
  %v612 = vpack.c.b16 %v504, %v503
  %v613 = vpack.c.b16 %v506, %v505
  %v614 = vpack.c.b16 %v508, %v507
  %v615 = vpack.c.b16 %v510, %v509
  %v616 = vpack.c.b16 %v512, %v511
  %v617 = vpack.c.b16 %v514, %v513
  %v618 = vpack.c.b16 %v516, %v515
  %v619 = vpack.c.b16 %v518, %v517
  %v620 = vpack.c.b16 %v520, %v519
  %v621 = vpack.c.b16 %v522, %v521
  %v622 = vpack.c.b16 %v524, %v523
  %v623 = vpack.c.b16 %v526, %v525
  %v624 = vpack.c.b16 %v528, %v527
  %v625 = vpack.c.b16 %v530, %v529
  %v626 = vpack.c.b16 %v532, %v531
  %v627 = vpack.c.b16 %v534, %v533
  %v628 = vpack.c.b16 %v536, %v535
  %v629 = vpack.c.b16 %v538, %v537
  %v630 = vpack.c.b16 %v540, %v539
  %v631 = vpack.c.b16 %v542, %v541
  %v632 = vpack.c.b16 %v544, %v543
  %v635 = vunpack.c.l.b16 %v191
  %v636 = vunpack.c.l.b16 %v192
  %v637 = vpack.c.b16 %v636, %v635
  %vm638 = vcmask 72704
  %v640 = vsel %vm638, %v545, 0
  %v643 = vsel %vm638, %v546, 0
  %v646 = vsel %vm638, %v547, 0
  %v649 = vsel %vm638, %v548, 0
  %v652 = vsel %vm638, %v549, 0
  %v655 = vsel %vm638, %v550, 0
  %v658 = vsel %vm638, %v551, 0
  %v661 = vsel %vm638, %v552, 0
  %v664 = vsel %vm638, %v553, 0
  %v667 = vsel %vm638, %v554, 0
  %v670 = vsel %vm638, %v555, 0
  %v673 = vsel %vm638, %v556, 0
  %v676 = vsel %vm638, %v557, 0
  %v679 = vsel %vm638, %v558, 0
  %v682 = vsel %vm638, %v559, 0
  %v685 = vsel %vm638, %v560, 0
  %v688 = vsel %vm638, %v561, 0
  %v691 = vsel %vm638, %v562, 0
  %v694 = vsel %vm638, %v563, 0
  %v697 = vsel %vm638, %v564, 0
  %v700 = vsel %vm638, %v565, 0
  %v703 = vsel %vm638, %v566, 0
  %v706 = vsel %vm638, %v567, 0
  %v709 = vsel %vm638, %v568, 0
  %v712 = vsel %vm638, %v569, 0
  %v715 = vsel %vm638, %v570, 0
  %v718 = vsel %vm638, %v571, 0
  %v721 = vsel %vm638, %v572, 0
  %v724 = vsel %vm638, %v573, 0
  %v727 = vsel %vm638, %v574, 0
  %v730 = vsel %vm638, %v575, 0
  %v733 = vsel %vm638, %v576, 0
  %v736 = vsel %vm638, %v577, 0
  %v739 = vsel %vm638, %v578, 0
  %v742 = vsel %vm638, %v579, 0
  %v745 = vsel %vm638, %v580, 0
  %v748 = vsel %vm638, %v581, 0
  %v751 = vsel %vm638, %v582, 0
  %v754 = vsel %vm638, %v583, 0
  %v757 = vsel %vm638, %v584, 0
  %v760 = vsel %vm638, %v585, 0
  %v763 = vsel %vm638, %v586, 0
  %v766 = vsel %vm638, %v587, 0
  %v769 = vsel %vm638, %v588, 0
  %v772 = vsel %vm638, %v589, 0
  %v775 = vsel %vm638, %v590, 0
  %v778 = vsel %vm638, %v591, 0
  %v781 = vsel %vm638, %v592, 0
  %v784 = vsel %vm638, %v593, 0
  %v787 = vsel %vm638, %v594, 0
  %v790 = vsel %vm638, %v595, 0
  %v793 = vsel %vm638, %v596, 0
  %v796 = vsel %vm638, %v597, 0
  %v799 = vsel %vm638, %v598, 0
  %v802 = vsel %vm638, %v599, 0
  %v805 = vsel %vm638, %v600, 0
  %v808 = vsel %vm638, %v601, 0
  %v811 = vsel %vm638, %v602, 0
  %v814 = vsel %vm638, %v603, 0
  %v817 = vsel %vm638, %v604, 0
  %v820 = vsel %vm638, %v605, 0
  %v823 = vsel %vm638, %v606, 0
  %v826 = vsel %vm638, %v607, 0
  %v829 = vsel %vm638, %v608, 0
  %v832 = vsel %vm638, %v609, 0
  %v835 = vsel %vm638, %v610, 0
  %v838 = vsel %vm638, %v611, 0
  %v841 = vsel %vm638, %v612, 0
  %v844 = vsel %vm638, %v613, 0
  %v847 = vsel %vm638, %v614, 0
  %v850 = vsel %vm638, %v615, 0
  %v853 = vsel %vm638, %v616, 0
  %v856 = vsel %vm638, %v617, 0
  %v859 = vsel %vm638, %v618, 0
  %v862 = vsel %vm638, %v619, 0
  %v865 = vsel %vm638, %v620, 0
  %v868 = vsel %vm638, %v621, 0
  %v871 = vsel %vm638, %v622, 0
  %v874 = vsel %vm638, %v623, 0
  %v877 = vsel %vm638, %v624, 0
  %v880 = vsel %vm638, %v625, 0
  %v883 = vsel %vm638, %v626, 0
  %v886 = vsel %vm638, %v627, 0
  %v889 = vsel %vm638, %v628, 0
  %v892 = vsel %vm638, %v629, 0
  %v895 = vsel %vm638, %v630, 0
  %v898 = vsel %vm638, %v631, 0
  %v901 = vsel %vm638, %v632, 0
  %vm903 = vcmask 1043456
  %vm904 = vcmask 1044480
  %v905 = vsel %vm903, 4294967295, 65535
  %v906 = vsel %vm904, %v905, 0
  %v908 = vand.u32 %v637, %v906
  %910 = vmatprep.subr.bf16.mxu0 0
  %911 = vmatpush1.bf16.msra.mxu0 %v908
  %912 = vmatprep.subr.bf16.mxu0 0
  %913 = vmatpush1.bf16.msra.mxu0 0
  %914 = vmatprep.subr.bf16.mxu0 0
  %915 = vmatpush1.bf16.msra.mxu0 0
  %916 = vmatprep.subr.bf16.mxu0 0
  %917 = vmatpush1.bf16.msra.mxu0 0
  %918 = vmatprep.subr.bf16.mxu0 0
  %919 = vmatpush1.bf16.msra.mxu0 0
  %920 = vmatprep.subr.bf16.mxu0 0
  %921 = vmatpush1.bf16.msra.mxu0 0
  %922 = vmatprep.subr.bf16.mxu0 0
  %923 = vmatpush1.bf16.msra.mxu0 0
  %924 = vmatprep.subr.bf16.mxu0 0
  %925 = vmatpush1.bf16.msra.mxu0 0
  %926 = vmatprep.subr.bf16.mxu0 0
  %927 = vmatpush1.bf16.msra.mxu0 0
  %928 = vmatprep.subr.bf16.mxu0 0
  %929 = vmatpush1.bf16.msra.mxu0 0
  %930 = vmatprep.subr.bf16.mxu0 0
  %931 = vmatpush1.bf16.msra.mxu0 0
  %932 = vmatprep.subr.bf16.mxu0 0
  %933 = vmatpush1.bf16.msra.mxu0 0
  %934 = vmatprep.subr.bf16.mxu0 0
  %935 = vmatpush1.bf16.msra.mxu0 0
  %936 = vmatprep.subr.bf16.mxu0 0
  %937 = vmatpush1.bf16.msra.mxu0 0
  %938 = vmatprep.subr.bf16.mxu0 0
  %939 = vmatpush1.bf16.msra.mxu0 0
  %940 = vmatprep.subr.bf16.mxu0 0
  %941 = vmatpush1.bf16.msra.mxu0 0
  %942 = vmatprep.mubr.bf16.mxu0 0
  %943 = vmatmul.mubr.bf16.gmra.mrb[0].mxu0 %v640
  %v944 = vpop.f32.mrb[0].mxu0
  %v945 = vadd.f32 0.0, %v944
  %v946 = vpop.f32.mrb[0].mxu0
  %v947 = vpop.f32.mrb[0].mxu0
  %v948 = vadd.f32 0.0, %v947
  %v949 = vpop.f32.mrb[0].mxu0
  %950 = vmatprep.mubr.bf16.mxu0 0
  %951 = vmatmul.mubr.bf16.gmra.mrb[0].mxu0 %v643
  %v952 = vpop.f32.mrb[0].mxu0
  %v953 = vadd.f32 0.0, %v952
  %v954 = vpop.f32.mrb[0].mxu0
  %v955 = vpop.f32.mrb[0].mxu0
  %v956 = vadd.f32 0.0, %v955
  %v957 = vpop.f32.mrb[0].mxu0
  %958 = vmatprep.mubr.bf16.mxu0 0
  %959 = vmatmul.mubr.bf16.gmra.mrb[0].mxu0 %v646
  %v960 = vpop.f32.mrb[0].mxu0
  %v961 = vadd.f32 0.0, %v960
  %v962 = vpop.f32.mrb[0].mxu0
  %v963 = vpop.f32.mrb[0].mxu0
  %v964 = vadd.f32 0.0, %v963
  %v965 = vpop.f32.mrb[0].mxu0
  %966 = vmatprep.mubr.bf16.mxu0 0
  %967 = vmatmul.mubr.bf16.gmra.mrb[0].mxu0 %v649
  %v968 = vpop.f32.mrb[0].mxu0
  %v969 = vadd.f32 0.0, %v968
  %v970 = vpop.f32.mrb[0].mxu0
  %v971 = vpop.f32.mrb[0].mxu0
  %v972 = vadd.f32 0.0, %v971
  %v973 = vpop.f32.mrb[0].mxu0
  %974 = vmatprep.mubr.bf16.mxu0 0
  %975 = vmatmul.mubr.bf16.gmra.mrb[0].mxu0 %v652
  %v976 = vpop.f32.mrb[0].mxu0
  %v977 = vadd.f32 0.0, %v976
  %v978 = vpop.f32.mrb[0].mxu0
  %v979 = vpop.f32.mrb[0].mxu0
  %v980 = vadd.f32 0.0, %v979
  %v981 = vpop.f32.mrb[0].mxu0
  %982 = vmatprep.mubr.bf16.mxu0 0
  %983 = vmatmul.mubr.bf16.gmra.mrb[0].mxu0 %v655
  %v984 = vpop.f32.mrb[0].mxu0
  %v985 = vadd.f32 0.0, %v984
  %v986 = vpop.f32.mrb[0].mxu0
  %v987 = vpop.f32.mrb[0].mxu0
  %v988 = vadd.f32 0.0, %v987
  %v989 = vpop.f32.mrb[0].mxu0
  %990 = vmatprep.mubr.bf16.mxu0 0
  %991 = vmatmul.mubr.bf16.gmra.mrb[0].mxu0 %v658
  %v992 = vpop.f32.mrb[0].mxu0
  %v993 = vadd.f32 0.0, %v992
  %v994 = vpop.f32.mrb[0].mxu0
  %v995 = vpop.f32.mrb[0].mxu0
  %v996 = vadd.f32 0.0, %v995
  %v997 = vpop.f32.mrb[0].mxu0
  %998 = vmatprep.mubr.bf16.mxu0 0
  %999 = vmatmul.mubr.bf16.gmra.mrb[0].mxu0 %v661
  %v1000 = vpop.f32.mrb[0].mxu0
  %v1001 = vadd.f32 0.0, %v1000
  %v1002 = vpop.f32.mrb[0].mxu0
  %v1003 = vpop.f32.mrb[0].mxu0
  %v1004 = vadd.f32 0.0, %v1003
  %v1005 = vpop.f32.mrb[0].mxu0
  %1006 = vmatprep.mubr.bf16.mxu0 0
  %1007 = vmatmul.mubr.bf16.gmra.mrb[0].mxu0 %v664
  %v1008 = vpop.f32.mrb[0].mxu0
  %v1009 = vadd.f32 0.0, %v1008
  %v1010 = vpop.f32.mrb[0].mxu0
  %v1011 = vpop.f32.mrb[0].mxu0
  %v1012 = vadd.f32 0.0, %v1011
  %v1013 = vpop.f32.mrb[0].mxu0
  %1014 = vmatprep.mubr.bf16.mxu0 0
  %1015 = vmatmul.mubr.bf16.gmra.mrb[0].mxu0 %v667
  %v1016 = vpop.f32.mrb[0].mxu0
  %v1017 = vadd.f32 0.0, %v1016
  %v1018 = vpop.f32.mrb[0].mxu0
  %v1019 = vpop.f32.mrb[0].mxu0
  %v1020 = vadd.f32 0.0, %v1019
  %v1021 = vpop.f32.mrb[0].mxu0
  %1022 = vmatprep.mubr.bf16.mxu0 0
  %1023 = vmatmul.mubr.bf16.gmra.mrb[0].mxu0 %v670
  %v1024 = vpop.f32.mrb[0].mxu0
  %v1025 = vadd.f32 0.0, %v1024
  %v1026 = vpop.f32.mrb[0].mxu0
  %v1027 = vpop.f32.mrb[0].mxu0
  %v1028 = vadd.f32 0.0, %v1027
  %v1029 = vpop.f32.mrb[0].mxu0
  %1030 = vmatprep.mubr.bf16.mxu0 0
  %1031 = vmatmul.mubr.bf16.gmra.mrb[0].mxu0 %v673
  %v1032 = vpop.f32.mrb[0].mxu0
  %v1033 = vadd.f32 0.0, %v1032
  %v1034 = vpop.f32.mrb[0].mxu0
  %v1035 = vpop.f32.mrb[0].mxu0
  %v1036 = vadd.f32 0.0, %v1035
  %v1037 = vpop.f32.mrb[0].mxu0
  %1038 = vmatprep.mubr.bf16.mxu0 0
  %1039 = vmatmul.mubr.bf16.gmra.mrb[0].mxu0 %v676
  %v1040 = vpop.f32.mrb[0].mxu0
  %v1041 = vadd.f32 0.0, %v1040
  %v1042 = vpop.f32.mrb[0].mxu0
  %v1043 = vpop.f32.mrb[0].mxu0
  %v1044 = vadd.f32 0.0, %v1043
  %v1045 = vpop.f32.mrb[0].mxu0
  %1046 = vmatprep.mubr.bf16.mxu0 0
  %1047 = vmatmul.mubr.bf16.gmra.mrb[0].mxu0 %v679
  %v1048 = vpop.f32.mrb[0].mxu0
  %v1049 = vadd.f32 0.0, %v1048
  %v1050 = vpop.f32.mrb[0].mxu0
  %v1051 = vpop.f32.mrb[0].mxu0
  %v1052 = vadd.f32 0.0, %v1051
  %v1053 = vpop.f32.mrb[0].mxu0
  %1054 = vmatprep.mubr.bf16.mxu0 0
  %1055 = vmatmul.mubr.bf16.gmra.mrb[0].mxu0 %v682
  %v1056 = vpop.f32.mrb[0].mxu0
  %v1057 = vadd.f32 0.0, %v1056
  %v1058 = vpop.f32.mrb[0].mxu0
  %v1059 = vpop.f32.mrb[0].mxu0
  %v1060 = vadd.f32 0.0, %v1059
  %v1061 = vpop.f32.mrb[0].mxu0
  %1062 = vmatprep.mubr.bf16.mxu0 0
  %1063 = vmatmul.mubr.bf16.gmra.mrb[0].mxu0 %v685
  %v1064 = vpop.f32.mrb[0].mxu0
  %v1065 = vadd.f32 0.0, %v1064
  %v1066 = vpop.f32.mrb[0].mxu0
  %v1067 = vpop.f32.mrb[0].mxu0
  %v1068 = vadd.f32 0.0, %v1067
  %v1069 = vpop.f32.mrb[0].mxu0
  %1070 = vmatprep.mubr.bf16.mxu0 0
  %1071 = vmatmul.mubr.bf16.gmra.mrb[0].mxu0 %v688
  %v1072 = vpop.f32.mrb[0].mxu0
  %v1073 = vadd.f32 0.0, %v1072
  %v1074 = vpop.f32.mrb[0].mxu0
  %v1075 = vpop.f32.mrb[0].mxu0
  %v1076 = vadd.f32 0.0, %v1075
  %v1077 = vpop.f32.mrb[0].mxu0
  %1078 = vmatprep.mubr.bf16.mxu0 0
  %1079 = vmatmul.mubr.bf16.gmra.mrb[0].mxu0 %v691
  %v1080 = vpop.f32.mrb[0].mxu0
  %v1081 = vadd.f32 0.0, %v1080
  %v1082 = vpop.f32.mrb[0].mxu0
  %v1083 = vpop.f32.mrb[0].mxu0
  %v1084 = vadd.f32 0.0, %v1083
  %v1085 = vpop.f32.mrb[0].mxu0
  %1086 = vmatprep.mubr.bf16.mxu0 0
  %1087 = vmatmul.mubr.bf16.gmra.mrb[0].mxu0 %v694
  %v1088 = vpop.f32.mrb[0].mxu0
  %v1089 = vadd.f32 0.0, %v1088
  %v1090 = vpop.f32.mrb[0].mxu0
  %v1091 = vpop.f32.mrb[0].mxu0
  %v1092 = vadd.f32 0.0, %v1091
  %v1093 = vpop.f32.mrb[0].mxu0
  %1094 = vmatprep.mubr.bf16.mxu0 0
  %1095 = vmatmul.mubr.bf16.gmra.mrb[0].mxu0 %v697
  %v1096 = vpop.f32.mrb[0].mxu0
  %v1097 = vadd.f32 0.0, %v1096
  %v1098 = vpop.f32.mrb[0].mxu0
  %v1099 = vpop.f32.mrb[0].mxu0
  %v1100 = vadd.f32 0.0, %v1099
  %v1101 = vpop.f32.mrb[0].mxu0
  %1102 = vmatprep.mubr.bf16.mxu0 0
  %1103 = vmatmul.mubr.bf16.gmra.mrb[0].mxu0 %v700
  %v1104 = vpop.f32.mrb[0].mxu0
  %v1105 = vadd.f32 0.0, %v1104
  %v1106 = vpop.f32.mrb[0].mxu0
  %v1107 = vpop.f32.mrb[0].mxu0
  %v1108 = vadd.f32 0.0, %v1107
  %v1109 = vpop.f32.mrb[0].mxu0
  %1110 = vmatprep.mubr.bf16.mxu0 0
  %1111 = vmatmul.mubr.bf16.gmra.mrb[0].mxu0 %v703
  %v1112 = vpop.f32.mrb[0].mxu0
  %v1113 = vadd.f32 0.0, %v1112
  %v1114 = vpop.f32.mrb[0].mxu0
  %v1115 = vpop.f32.mrb[0].mxu0
  %v1116 = vadd.f32 0.0, %v1115
  %v1117 = vpop.f32.mrb[0].mxu0
  %1118 = vmatprep.mubr.bf16.mxu0 0
  %1119 = vmatmul.mubr.bf16.gmra.mrb[0].mxu0 %v706
  %v1120 = vpop.f32.mrb[0].mxu0
  %v1121 = vadd.f32 0.0, %v1120
  %v1122 = vpop.f32.mrb[0].mxu0
  %v1123 = vpop.f32.mrb[0].mxu0
  %v1124 = vadd.f32 0.0, %v1123
  %v1125 = vpop.f32.mrb[0].mxu0
  %1126 = vmatprep.mubr.bf16.mxu0 0
  %1127 = vmatmul.mubr.bf16.gmra.mrb[0].mxu0 %v709
  %v1128 = vpop.f32.mrb[0].mxu0
  %v1129 = vadd.f32 0.0, %v1128
  %v1130 = vpop.f32.mrb[0].mxu0
  %v1131 = vpop.f32.mrb[0].mxu0
  %v1132 = vadd.f32 0.0, %v1131
  %v1133 = vpop.f32.mrb[0].mxu0
  %1134 = vmatprep.mubr.bf16.mxu0 0
  %1135 = vmatmul.mubr.bf16.gmra.mrb[0].mxu0 %v712
  %v1136 = vpop.f32.mrb[0].mxu0
  %v1137 = vadd.f32 0.0, %v1136
  %v1138 = vpop.f32.mrb[0].mxu0
  %v1139 = vpop.f32.mrb[0].mxu0
  %v1140 = vadd.f32 0.0, %v1139
  %v1141 = vpop.f32.mrb[0].mxu0
  %1142 = vmatprep.mubr.bf16.mxu0 0
  %1143 = vmatmul.mubr.bf16.gmra.mrb[0].mxu0 %v715
  %v1144 = vpop.f32.mrb[0].mxu0
  %v1145 = vadd.f32 0.0, %v1144
  %v1146 = vpop.f32.mrb[0].mxu0
  %v1147 = vpop.f32.mrb[0].mxu0
  %v1148 = vadd.f32 0.0, %v1147
  %v1149 = vpop.f32.mrb[0].mxu0
  %1150 = vmatprep.mubr.bf16.mxu0 0
  %1151 = vmatmul.mubr.bf16.gmra.mrb[0].mxu0 %v718
  %v1152 = vpop.f32.mrb[0].mxu0
  %v1153 = vadd.f32 0.0, %v1152
  %v1154 = vpop.f32.mrb[0].mxu0
  %v1155 = vpop.f32.mrb[0].mxu0
  %v1156 = vadd.f32 0.0, %v1155
  %v1157 = vpop.f32.mrb[0].mxu0
  %1158 = vmatprep.mubr.bf16.mxu0 0
  %1159 = vmatmul.mubr.bf16.gmra.mrb[0].mxu0 %v721
  %v1160 = vpop.f32.mrb[0].mxu0
  %v1161 = vadd.f32 0.0, %v1160
  %v1162 = vpop.f32.mrb[0].mxu0
  %v1163 = vpop.f32.mrb[0].mxu0
  %v1164 = vadd.f32 0.0, %v1163
  %v1165 = vpop.f32.mrb[0].mxu0
  %1166 = vmatprep.mubr.bf16.mxu0 0
  %1167 = vmatmul.mubr.bf16.gmra.mrb[0].mxu0 %v724
  %v1168 = vpop.f32.mrb[0].mxu0
  %v1169 = vadd.f32 0.0, %v1168
  %v1170 = vpop.f32.mrb[0].mxu0
  %v1171 = vpop.f32.mrb[0].mxu0
  %v1172 = vadd.f32 0.0, %v1171
  %v1173 = vpop.f32.mrb[0].mxu0
  %1174 = vmatprep.mubr.bf16.mxu0 0
  %1175 = vmatmul.mubr.bf16.gmra.mrb[0].mxu0 %v727
  %v1176 = vpop.f32.mrb[0].mxu0
  %v1177 = vadd.f32 0.0, %v1176
  %v1178 = vpop.f32.mrb[0].mxu0
  %v1179 = vpop.f32.mrb[0].mxu0
  %v1180 = vadd.f32 0.0, %v1179
  %v1181 = vpop.f32.mrb[0].mxu0
  %1182 = vmatprep.mubr.bf16.mxu0 0
  %1183 = vmatmul.mubr.bf16.gmra.mrb[0].mxu0 %v730
  %v1184 = vpop.f32.mrb[0].mxu0
  %v1185 = vadd.f32 0.0, %v1184
  %v1186 = vpop.f32.mrb[0].mxu0
  %v1187 = vpop.f32.mrb[0].mxu0
  %v1188 = vadd.f32 0.0, %v1187
  %v1189 = vpop.f32.mrb[0].mxu0
  %1190 = vmatprep.mubr.bf16.mxu0 0
  %1191 = vmatmul.mubr.bf16.gmra.mrb[0].mxu0 %v733
  %v1192 = vpop.f32.mrb[0].mxu0
  %v1193 = vadd.f32 0.0, %v1192
  %v1194 = vpop.f32.mrb[0].mxu0
  %v1195 = vpop.f32.mrb[0].mxu0
  %v1196 = vadd.f32 0.0, %v1195
  %v1197 = vpop.f32.mrb[0].mxu0
  %1198 = vmatprep.mubr.bf16.mxu0 0
  %1199 = vmatmul.mubr.bf16.gmra.mrb[0].mxu0 %v736
  %v1200 = vpop.f32.mrb[0].mxu0
  %v1201 = vadd.f32 0.0, %v1200
  %v1202 = vpop.f32.mrb[0].mxu0
  %v1203 = vpop.f32.mrb[0].mxu0
  %v1204 = vadd.f32 0.0, %v1203
  %v1205 = vpop.f32.mrb[0].mxu0
  %1206 = vmatprep.mubr.bf16.mxu0 0
  %1207 = vmatmul.mubr.bf16.gmra.mrb[0].mxu0 %v739
  %v1208 = vpop.f32.mrb[0].mxu0
  %v1209 = vadd.f32 0.0, %v1208
  %v1210 = vpop.f32.mrb[0].mxu0
  %v1211 = vpop.f32.mrb[0].mxu0
  %v1212 = vadd.f32 0.0, %v1211
  %v1213 = vpop.f32.mrb[0].mxu0
  %1214 = vmatprep.mubr.bf16.mxu0 0
  %1215 = vmatmul.mubr.bf16.gmra.mrb[0].mxu0 %v742
  %v1216 = vpop.f32.mrb[0].mxu0
  %v1217 = vadd.f32 0.0, %v1216
  %v1218 = vpop.f32.mrb[0].mxu0
  %v1219 = vpop.f32.mrb[0].mxu0
  %v1220 = vadd.f32 0.0, %v1219
  %v1221 = vpop.f32.mrb[0].mxu0
  %1222 = vmatprep.mubr.bf16.mxu0 0
  %1223 = vmatmul.mubr.bf16.gmra.mrb[0].mxu0 %v745
  %v1224 = vpop.f32.mrb[0].mxu0
  %v1225 = vadd.f32 0.0, %v1224
  %v1226 = vpop.f32.mrb[0].mxu0
  %v1227 = vpop.f32.mrb[0].mxu0
  %v1228 = vadd.f32 0.0, %v1227
  %v1229 = vpop.f32.mrb[0].mxu0
  %1230 = vmatprep.mubr.bf16.mxu0 0
  %1231 = vmatmul.mubr.bf16.gmra.mrb[0].mxu0 %v748
  %v1232 = vpop.f32.mrb[0].mxu0
  %v1233 = vadd.f32 0.0, %v1232
  %v1234 = vpop.f32.mrb[0].mxu0
  %v1235 = vpop.f32.mrb[0].mxu0
  %v1236 = vadd.f32 0.0, %v1235
  %v1237 = vpop.f32.mrb[0].mxu0
  %1238 = vmatprep.mubr.bf16.mxu0 0
  %1239 = vmatmul.mubr.bf16.gmra.mrb[0].mxu0 %v751
  %v1240 = vpop.f32.mrb[0].mxu0
  %v1241 = vadd.f32 0.0, %v1240
  %v1242 = vpop.f32.mrb[0].mxu0
  %v1243 = vpop.f32.mrb[0].mxu0
  %v1244 = vadd.f32 0.0, %v1243
  %v1245 = vpop.f32.mrb[0].mxu0
  %1246 = vmatprep.mubr.bf16.mxu0 0
  %1247 = vmatmul.mubr.bf16.gmra.mrb[0].mxu0 %v754
  %v1248 = vpop.f32.mrb[0].mxu0
  %v1249 = vadd.f32 0.0, %v1248
  %v1250 = vpop.f32.mrb[0].mxu0
  %v1251 = vpop.f32.mrb[0].mxu0
  %v1252 = vadd.f32 0.0, %v1251
  %v1253 = vpop.f32.mrb[0].mxu0
  %1254 = vmatprep.mubr.bf16.mxu0 0
  %1255 = vmatmul.mubr.bf16.gmra.mrb[0].mxu0 %v757
  %v1256 = vpop.f32.mrb[0].mxu0
  %v1257 = vadd.f32 0.0, %v1256
  %v1258 = vpop.f32.mrb[0].mxu0
  %v1259 = vpop.f32.mrb[0].mxu0
  %v1260 = vadd.f32 0.0, %v1259
  %v1261 = vpop.f32.mrb[0].mxu0
  %1262 = vmatprep.mubr.bf16.mxu0 0
  %1263 = vmatmul.mubr.bf16.gmra.mrb[0].mxu0 %v760
  %v1264 = vpop.f32.mrb[0].mxu0
  %v1265 = vadd.f32 0.0, %v1264
  %v1266 = vpop.f32.mrb[0].mxu0
  %v1267 = vpop.f32.mrb[0].mxu0
  %v1268 = vadd.f32 0.0, %v1267
  %v1269 = vpop.f32.mrb[0].mxu0
  %1270 = vmatprep.mubr.bf16.mxu0 0
  %1271 = vmatmul.mubr.bf16.gmra.mrb[0].mxu0 %v763
  %v1272 = vpop.f32.mrb[0].mxu0
  %v1273 = vadd.f32 0.0, %v1272
  %v1274 = vpop.f32.mrb[0].mxu0
  %v1275 = vpop.f32.mrb[0].mxu0
  %v1276 = vadd.f32 0.0, %v1275
  %v1277 = vpop.f32.mrb[0].mxu0
  %1278 = vmatprep.mubr.bf16.mxu0 0
  %1279 = vmatmul.mubr.bf16.gmra.mrb[0].mxu0 %v766
  %v1280 = vpop.f32.mrb[0].mxu0
  %v1281 = vadd.f32 0.0, %v1280
  %v1282 = vpop.f32.mrb[0].mxu0
  %v1283 = vpop.f32.mrb[0].mxu0
  %v1284 = vadd.f32 0.0, %v1283
  %v1285 = vpop.f32.mrb[0].mxu0
  %1286 = vmatprep.mubr.bf16.mxu0 0
  %1287 = vmatmul.mubr.bf16.gmra.mrb[0].mxu0 %v769
  %v1288 = vpop.f32.mrb[0].mxu0
  %v1289 = vadd.f32 0.0, %v1288
  %v1290 = vpop.f32.mrb[0].mxu0
  %v1291 = vpop.f32.mrb[0].mxu0
  %v1292 = vadd.f32 0.0, %v1291
  %v1293 = vpop.f32.mrb[0].mxu0
  %1294 = vmatprep.mubr.bf16.mxu0 0
  %1295 = vmatmul.mubr.bf16.gmra.mrb[0].mxu0 %v772
  %v1296 = vpop.f32.mrb[0].mxu0
  %v1297 = vadd.f32 0.0, %v1296
  %v1298 = vpop.f32.mrb[0].mxu0
  %v1299 = vpop.f32.mrb[0].mxu0
  %v1300 = vadd.f32 0.0, %v1299
  %v1301 = vpop.f32.mrb[0].mxu0
  %1302 = vmatprep.mubr.bf16.mxu0 0
  %1303 = vmatmul.mubr.bf16.gmra.mrb[0].mxu0 %v775
  %v1304 = vpop.f32.mrb[0].mxu0
  %v1305 = vadd.f32 0.0, %v1304
  %v1306 = vpop.f32.mrb[0].mxu0
  %v1307 = vpop.f32.mrb[0].mxu0
  %v1308 = vadd.f32 0.0, %v1307
  %v1309 = vpop.f32.mrb[0].mxu0
  %1310 = vmatprep.mubr.bf16.mxu0 0
  %1311 = vmatmul.mubr.bf16.gmra.mrb[0].mxu0 %v778
  %v1312 = vpop.f32.mrb[0].mxu0
  %v1313 = vadd.f32 0.0, %v1312
  %v1314 = vpop.f32.mrb[0].mxu0
  %v1315 = vpop.f32.mrb[0].mxu0
  %v1316 = vadd.f32 0.0, %v1315
  %v1317 = vpop.f32.mrb[0].mxu0
  %1318 = vmatprep.mubr.bf16.mxu0 0
  %1319 = vmatmul.mubr.bf16.gmra.mrb[0].mxu0 %v781
  %v1320 = vpop.f32.mrb[0].mxu0
  %v1321 = vadd.f32 0.0, %v1320
  %v1322 = vpop.f32.mrb[0].mxu0
  %v1323 = vpop.f32.mrb[0].mxu0
  %v1324 = vadd.f32 0.0, %v1323
  %v1325 = vpop.f32.mrb[0].mxu0
  %1326 = vmatprep.mubr.bf16.mxu0 0
  %1327 = vmatmul.mubr.bf16.gmra.mrb[0].mxu0 %v784
  %v1328 = vpop.f32.mrb[0].mxu0
  %v1329 = vadd.f32 0.0, %v1328
  %v1330 = vpop.f32.mrb[0].mxu0
  %v1331 = vpop.f32.mrb[0].mxu0
  %v1332 = vadd.f32 0.0, %v1331
  %v1333 = vpop.f32.mrb[0].mxu0
  %1334 = vmatprep.mubr.bf16.mxu0 0
  %1335 = vmatmul.mubr.bf16.gmra.mrb[0].mxu0 %v787
  %v1336 = vpop.f32.mrb[0].mxu0
  %v1337 = vadd.f32 0.0, %v1336
  %v1338 = vpop.f32.mrb[0].mxu0
  %v1339 = vpop.f32.mrb[0].mxu0
  %v1340 = vadd.f32 0.0, %v1339
  %v1341 = vpop.f32.mrb[0].mxu0
  %1342 = vmatprep.mubr.bf16.mxu0 0
  %1343 = vmatmul.mubr.bf16.gmra.mrb[0].mxu0 %v790
  %v1344 = vpop.f32.mrb[0].mxu0
  %v1345 = vadd.f32 0.0, %v1344
  %v1346 = vpop.f32.mrb[0].mxu0
  %v1347 = vpop.f32.mrb[0].mxu0
  %v1348 = vadd.f32 0.0, %v1347
  %v1349 = vpop.f32.mrb[0].mxu0
  %1350 = vmatprep.mubr.bf16.mxu0 0
  %1351 = vmatmul.mubr.bf16.gmra.mrb[0].mxu0 %v793
  %v1352 = vpop.f32.mrb[0].mxu0
  %v1353 = vadd.f32 0.0, %v1352
  %v1354 = vpop.f32.mrb[0].mxu0
  %v1355 = vpop.f32.mrb[0].mxu0
  %v1356 = vadd.f32 0.0, %v1355
  %v1357 = vpop.f32.mrb[0].mxu0
  %1358 = vmatprep.mubr.bf16.mxu0 0
  %1359 = vmatmul.mubr.bf16.gmra.mrb[0].mxu0 %v796
  %v1360 = vpop.f32.mrb[0].mxu0
  %v1361 = vadd.f32 0.0, %v1360
  %v1362 = vpop.f32.mrb[0].mxu0
  %v1363 = vpop.f32.mrb[0].mxu0
  %v1364 = vadd.f32 0.0, %v1363
  %v1365 = vpop.f32.mrb[0].mxu0
  %1366 = vmatprep.mubr.bf16.mxu0 0
  %1367 = vmatmul.mubr.bf16.gmra.mrb[0].mxu0 %v799
  %v1368 = vpop.f32.mrb[0].mxu0
  %v1369 = vadd.f32 0.0, %v1368
  %v1370 = vpop.f32.mrb[0].mxu0
  %v1371 = vpop.f32.mrb[0].mxu0
  %v1372 = vadd.f32 0.0, %v1371
  %v1373 = vpop.f32.mrb[0].mxu0
  %1374 = vmatprep.mubr.bf16.mxu0 0
  %1375 = vmatmul.mubr.bf16.gmra.mrb[0].mxu0 %v802
  %v1376 = vpop.f32.mrb[0].mxu0
  %v1377 = vadd.f32 0.0, %v1376
  %v1378 = vpop.f32.mrb[0].mxu0
  %v1379 = vpop.f32.mrb[0].mxu0
  %v1380 = vadd.f32 0.0, %v1379
  %v1381 = vpop.f32.mrb[0].mxu0
  %1382 = vmatprep.mubr.bf16.mxu0 0
  %1383 = vmatmul.mubr.bf16.gmra.mrb[0].mxu0 %v805
  %v1384 = vpop.f32.mrb[0].mxu0
  %v1385 = vadd.f32 0.0, %v1384
  %v1386 = vpop.f32.mrb[0].mxu0
  %v1387 = vpop.f32.mrb[0].mxu0
  %v1388 = vadd.f32 0.0, %v1387
  %v1389 = vpop.f32.mrb[0].mxu0
  %1390 = vmatprep.mubr.bf16.mxu0 0
  %1391 = vmatmul.mubr.bf16.gmra.mrb[0].mxu0 %v808
  %v1392 = vpop.f32.mrb[0].mxu0
  %v1393 = vadd.f32 0.0, %v1392
  %v1394 = vpop.f32.mrb[0].mxu0
  %v1395 = vpop.f32.mrb[0].mxu0
  %v1396 = vadd.f32 0.0, %v1395
  %v1397 = vpop.f32.mrb[0].mxu0
  %1398 = vmatprep.mubr.bf16.mxu0 0
  %1399 = vmatmul.mubr.bf16.gmra.mrb[0].mxu0 %v811
  %v1400 = vpop.f32.mrb[0].mxu0
  %v1401 = vadd.f32 0.0, %v1400
  %v1402 = vpop.f32.mrb[0].mxu0
  %v1403 = vpop.f32.mrb[0].mxu0
  %v1404 = vadd.f32 0.0, %v1403
  %v1405 = vpop.f32.mrb[0].mxu0
  %1406 = vmatprep.mubr.bf16.mxu0 0
  %1407 = vmatmul.mubr.bf16.gmra.mrb[0].mxu0 %v814
  %v1408 = vpop.f32.mrb[0].mxu0
  %v1409 = vadd.f32 0.0, %v1408
  %v1410 = vpop.f32.mrb[0].mxu0
  %v1411 = vpop.f32.mrb[0].mxu0
  %v1412 = vadd.f32 0.0, %v1411
  %v1413 = vpop.f32.mrb[0].mxu0
  %1414 = vmatprep.mubr.bf16.mxu0 0
  %1415 = vmatmul.mubr.bf16.gmra.mrb[0].mxu0 %v817
  %v1416 = vpop.f32.mrb[0].mxu0
  %v1417 = vadd.f32 0.0, %v1416
  %v1418 = vpop.f32.mrb[0].mxu0
  %v1419 = vpop.f32.mrb[0].mxu0
  %v1420 = vadd.f32 0.0, %v1419
  %v1421 = vpop.f32.mrb[0].mxu0
  %1422 = vmatprep.mubr.bf16.mxu0 0
  %1423 = vmatmul.mubr.bf16.gmra.mrb[0].mxu0 %v820
  %v1424 = vpop.f32.mrb[0].mxu0
  %v1425 = vadd.f32 0.0, %v1424
  %v1426 = vpop.f32.mrb[0].mxu0
  %v1427 = vpop.f32.mrb[0].mxu0
  %v1428 = vadd.f32 0.0, %v1427
  %v1429 = vpop.f32.mrb[0].mxu0
  %1430 = vmatprep.mubr.bf16.mxu0 0
  %1431 = vmatmul.mubr.bf16.gmra.mrb[0].mxu0 %v823
  %v1432 = vpop.f32.mrb[0].mxu0
  %v1433 = vadd.f32 0.0, %v1432
  %v1434 = vpop.f32.mrb[0].mxu0
  %v1435 = vpop.f32.mrb[0].mxu0
  %v1436 = vadd.f32 0.0, %v1435
  %v1437 = vpop.f32.mrb[0].mxu0
  %1438 = vmatprep.mubr.bf16.mxu0 0
  %1439 = vmatmul.mubr.bf16.gmra.mrb[0].mxu0 %v826
  %v1440 = vpop.f32.mrb[0].mxu0
  %v1441 = vadd.f32 0.0, %v1440
  %v1442 = vpop.f32.mrb[0].mxu0
  %v1443 = vpop.f32.mrb[0].mxu0
  %v1444 = vadd.f32 0.0, %v1443
  %v1445 = vpop.f32.mrb[0].mxu0
  %1446 = vmatprep.mubr.bf16.mxu0 0
  %1447 = vmatmul.mubr.bf16.gmra.mrb[0].mxu0 %v829
  %v1448 = vpop.f32.mrb[0].mxu0
  %v1449 = vadd.f32 0.0, %v1448
  %v1450 = vpop.f32.mrb[0].mxu0
  %v1451 = vpop.f32.mrb[0].mxu0
  %v1452 = vadd.f32 0.0, %v1451
  %v1453 = vpop.f32.mrb[0].mxu0
  %1454 = vmatprep.mubr.bf16.mxu0 0
  %1455 = vmatmul.mubr.bf16.gmra.mrb[0].mxu0 %v832
  %v1456 = vpop.f32.mrb[0].mxu0
  %v1457 = vadd.f32 0.0, %v1456
  %v1458 = vpop.f32.mrb[0].mxu0
  %v1459 = vpop.f32.mrb[0].mxu0
  %v1460 = vadd.f32 0.0, %v1459
  %v1461 = vpop.f32.mrb[0].mxu0
  %1462 = vmatprep.mubr.bf16.mxu0 0
  %1463 = vmatmul.mubr.bf16.gmra.mrb[0].mxu0 %v835
  %v1464 = vpop.f32.mrb[0].mxu0
  %v1465 = vadd.f32 0.0, %v1464
  %v1466 = vpop.f32.mrb[0].mxu0
  %v1467 = vpop.f32.mrb[0].mxu0
  %v1468 = vadd.f32 0.0, %v1467
  %v1469 = vpop.f32.mrb[0].mxu0
  %1470 = vmatprep.mubr.bf16.mxu0 0
  %1471 = vmatmul.mubr.bf16.gmra.mrb[0].mxu0 %v838
  %v1472 = vpop.f32.mrb[0].mxu0
  %v1473 = vadd.f32 0.0, %v1472
  %v1474 = vpop.f32.mrb[0].mxu0
  %v1475 = vpop.f32.mrb[0].mxu0
  %v1476 = vadd.f32 0.0, %v1475
  %v1477 = vpop.f32.mrb[0].mxu0
  %1478 = vmatprep.mubr.bf16.mxu0 0
  %1479 = vmatmul.mubr.bf16.gmra.mrb[0].mxu0 %v841
  %v1480 = vpop.f32.mrb[0].mxu0
  %v1481 = vadd.f32 0.0, %v1480
  %v1482 = vpop.f32.mrb[0].mxu0
  %v1483 = vpop.f32.mrb[0].mxu0
  %v1484 = vadd.f32 0.0, %v1483
  %v1485 = vpop.f32.mrb[0].mxu0
  %1486 = vmatprep.mubr.bf16.mxu0 0
  %1487 = vmatmul.mubr.bf16.gmra.mrb[0].mxu0 %v844
  %v1488 = vpop.f32.mrb[0].mxu0
  %v1489 = vadd.f32 0.0, %v1488
  %v1490 = vpop.f32.mrb[0].mxu0
  %v1491 = vpop.f32.mrb[0].mxu0
  %v1492 = vadd.f32 0.0, %v1491
  %v1493 = vpop.f32.mrb[0].mxu0
  %1494 = vmatprep.mubr.bf16.mxu0 0
  %1495 = vmatmul.mubr.bf16.gmra.mrb[0].mxu0 %v847
  %v1496 = vpop.f32.mrb[0].mxu0
  %v1497 = vadd.f32 0.0, %v1496
  %v1498 = vpop.f32.mrb[0].mxu0
  %v1499 = vpop.f32.mrb[0].mxu0
  %v1500 = vadd.f32 0.0, %v1499
  %v1501 = vpop.f32.mrb[0].mxu0
  %1502 = vmatprep.mubr.bf16.mxu0 0
  %1503 = vmatmul.mubr.bf16.gmra.mrb[0].mxu0 %v850
  %v1504 = vpop.f32.mrb[0].mxu0
  %v1505 = vadd.f32 0.0, %v1504
  %v1506 = vpop.f32.mrb[0].mxu0
  %v1507 = vpop.f32.mrb[0].mxu0
  %v1508 = vadd.f32 0.0, %v1507
  %v1509 = vpop.f32.mrb[0].mxu0
  %1510 = vmatprep.mubr.bf16.mxu0 0
  %1511 = vmatmul.mubr.bf16.gmra.mrb[0].mxu0 %v853
  %v1512 = vpop.f32.mrb[0].mxu0
  %v1513 = vadd.f32 0.0, %v1512
  %v1514 = vpop.f32.mrb[0].mxu0
  %v1515 = vpop.f32.mrb[0].mxu0
  %v1516 = vadd.f32 0.0, %v1515
  %v1517 = vpop.f32.mrb[0].mxu0
  %1518 = vmatprep.mubr.bf16.mxu0 0
  %1519 = vmatmul.mubr.bf16.gmra.mrb[0].mxu0 %v856
  %v1520 = vpop.f32.mrb[0].mxu0
  %v1521 = vadd.f32 0.0, %v1520
  %v1522 = vpop.f32.mrb[0].mxu0
  %v1523 = vpop.f32.mrb[0].mxu0
  %v1524 = vadd.f32 0.0, %v1523
  %v1525 = vpop.f32.mrb[0].mxu0
  %1526 = vmatprep.mubr.bf16.mxu0 0
  %1527 = vmatmul.mubr.bf16.gmra.mrb[0].mxu0 %v859
  %v1528 = vpop.f32.mrb[0].mxu0
  %v1529 = vadd.f32 0.0, %v1528
  %v1530 = vpop.f32.mrb[0].mxu0
  %v1531 = vpop.f32.mrb[0].mxu0
  %v1532 = vadd.f32 0.0, %v1531
  %v1533 = vpop.f32.mrb[0].mxu0
  %1534 = vmatprep.mubr.bf16.mxu0 0
  %1535 = vmatmul.mubr.bf16.gmra.mrb[0].mxu0 %v862
  %v1536 = vpop.f32.mrb[0].mxu0
  %v1537 = vadd.f32 0.0, %v1536
  %v1538 = vpop.f32.mrb[0].mxu0
  %v1539 = vpop.f32.mrb[0].mxu0
  %v1540 = vadd.f32 0.0, %v1539
  %v1541 = vpop.f32.mrb[0].mxu0
  %1542 = vmatprep.mubr.bf16.mxu0 0
  %1543 = vmatmul.mubr.bf16.gmra.mrb[0].mxu0 %v865
  %v1544 = vpop.f32.mrb[0].mxu0
  %v1545 = vadd.f32 0.0, %v1544
  %v1546 = vpop.f32.mrb[0].mxu0
  %v1547 = vpop.f32.mrb[0].mxu0
  %v1548 = vadd.f32 0.0, %v1547
  %v1549 = vpop.f32.mrb[0].mxu0
  %1550 = vmatprep.mubr.bf16.mxu0 0
  %1551 = vmatmul.mubr.bf16.gmra.mrb[0].mxu0 %v868
  %v1552 = vpop.f32.mrb[0].mxu0
  %v1553 = vadd.f32 0.0, %v1552
  %v1554 = vpop.f32.mrb[0].mxu0
  %v1555 = vpop.f32.mrb[0].mxu0
  %v1556 = vadd.f32 0.0, %v1555
  %v1557 = vpop.f32.mrb[0].mxu0
  %1558 = vmatprep.mubr.bf16.mxu0 0
  %1559 = vmatmul.mubr.bf16.gmra.mrb[0].mxu0 %v871
  %v1560 = vpop.f32.mrb[0].mxu0
  %v1561 = vadd.f32 0.0, %v1560
  %v1562 = vpop.f32.mrb[0].mxu0
  %v1563 = vpop.f32.mrb[0].mxu0
  %v1564 = vadd.f32 0.0, %v1563
  %v1565 = vpop.f32.mrb[0].mxu0
  %1566 = vmatprep.mubr.bf16.mxu0 0
  %1567 = vmatmul.mubr.bf16.gmra.mrb[0].mxu0 %v874
  %v1568 = vpop.f32.mrb[0].mxu0
  %v1569 = vadd.f32 0.0, %v1568
  %v1570 = vpop.f32.mrb[0].mxu0
  %v1571 = vpop.f32.mrb[0].mxu0
  %v1572 = vadd.f32 0.0, %v1571
  %v1573 = vpop.f32.mrb[0].mxu0
  %1574 = vmatprep.mubr.bf16.mxu0 0
  %1575 = vmatmul.mubr.bf16.gmra.mrb[0].mxu0 %v877
  %v1576 = vpop.f32.mrb[0].mxu0
  %v1577 = vadd.f32 0.0, %v1576
  %v1578 = vpop.f32.mrb[0].mxu0
  %v1579 = vpop.f32.mrb[0].mxu0
  %v1580 = vadd.f32 0.0, %v1579
  %v1581 = vpop.f32.mrb[0].mxu0
  %1582 = vmatprep.mubr.bf16.mxu0 0
  %1583 = vmatmul.mubr.bf16.gmra.mrb[0].mxu0 %v880
  %v1584 = vpop.f32.mrb[0].mxu0
  %v1585 = vadd.f32 0.0, %v1584
  %v1586 = vpop.f32.mrb[0].mxu0
  %v1587 = vpop.f32.mrb[0].mxu0
  %v1588 = vadd.f32 0.0, %v1587
  %v1589 = vpop.f32.mrb[0].mxu0
  %1590 = vmatprep.mubr.bf16.mxu0 0
  %1591 = vmatmul.mubr.bf16.gmra.mrb[0].mxu0 %v883
  %v1592 = vpop.f32.mrb[0].mxu0
  %v1593 = vadd.f32 0.0, %v1592
  %v1594 = vpop.f32.mrb[0].mxu0
  %v1595 = vpop.f32.mrb[0].mxu0
  %v1596 = vadd.f32 0.0, %v1595
  %v1597 = vpop.f32.mrb[0].mxu0
  %1598 = vmatprep.mubr.bf16.mxu0 0
  %1599 = vmatmul.mubr.bf16.gmra.mrb[0].mxu0 %v886
  %v1600 = vpop.f32.mrb[0].mxu0
  %v1601 = vadd.f32 0.0, %v1600
  %v1602 = vpop.f32.mrb[0].mxu0
  %v1603 = vpop.f32.mrb[0].mxu0
  %v1604 = vadd.f32 0.0, %v1603
  %v1605 = vpop.f32.mrb[0].mxu0
  %1606 = vmatprep.mubr.bf16.mxu0 0
  %1607 = vmatmul.mubr.bf16.gmra.mrb[0].mxu0 %v889
  %v1608 = vpop.f32.mrb[0].mxu0
  %v1609 = vadd.f32 0.0, %v1608
  %v1610 = vpop.f32.mrb[0].mxu0
  %v1611 = vpop.f32.mrb[0].mxu0
  %v1612 = vadd.f32 0.0, %v1611
  %v1613 = vpop.f32.mrb[0].mxu0
  %1614 = vmatprep.mubr.bf16.mxu0 0
  %1615 = vmatmul.mubr.bf16.gmra.mrb[0].mxu0 %v892
  %v1616 = vpop.f32.mrb[0].mxu0
  %v1617 = vadd.f32 0.0, %v1616
  %v1618 = vpop.f32.mrb[0].mxu0
  %v1619 = vpop.f32.mrb[0].mxu0
  %v1620 = vadd.f32 0.0, %v1619
  %v1621 = vpop.f32.mrb[0].mxu0
  %1622 = vmatprep.mubr.bf16.mxu0 0
  %1623 = vmatmul.mubr.bf16.gmra.mrb[0].mxu0 %v895
  %v1624 = vpop.f32.mrb[0].mxu0
  %v1625 = vadd.f32 0.0, %v1624
  %v1626 = vpop.f32.mrb[0].mxu0
  %v1627 = vpop.f32.mrb[0].mxu0
  %v1628 = vadd.f32 0.0, %v1627
  %v1629 = vpop.f32.mrb[0].mxu0
  %1630 = vmatprep.mubr.bf16.mxu0 0
  %1631 = vmatmul.mubr.bf16.gmra.mrb[0].mxu0 %v898
  %v1632 = vpop.f32.mrb[0].mxu0
  %v1633 = vadd.f32 0.0, %v1632
  %v1634 = vpop.f32.mrb[0].mxu0
  %v1635 = vpop.f32.mrb[0].mxu0
  %v1636 = vadd.f32 0.0, %v1635
  %v1637 = vpop.f32.mrb[0].mxu0
  %1638 = vmatprep.mubr.bf16.mxu0 0
  %1639 = vmatmul.mubr.bf16.gmra.mrb[0].mxu0 %v901
  %v1640 = vpop.f32.mrb[0].mxu0
  %v1641 = vadd.f32 0.0, %v1640
  %v1642 = vpop.f32.mrb[0].mxu0
  %v1643 = vpop.f32.mrb[0].mxu0
  %v1644 = vadd.f32 0.0, %v1643
  %v1645 = vpop.f32.mrb[0].mxu0
  %1646 = vdwg.mxu0
  %v1647 = vmax.f32 %v945, %v1033
  %v1648 = vmax.f32 %v948, %v1036
  %v1649 = vmax.f32 %v953, %v1041
  %v1650 = vmax.f32 %v956, %v1044
  %v1651 = vmax.f32 %v961, %v1049
  %v1652 = vmax.f32 %v964, %v1052
  %v1653 = vmax.f32 %v969, %v1057
  %v1654 = vmax.f32 %v972, %v1060
  %v1655 = vmax.f32 %v977, %v1065
  %v1656 = vmax.f32 %v980, %v1068
  %v1657 = vmax.f32 %v985, %v1073
  %v1658 = vmax.f32 %v988, %v1076
  %v1659 = vmax.f32 %v993, %v1081
  %v1660 = vmax.f32 %v996, %v1084
  %v1661 = vmax.f32 %v1001, %v1089
  %v1662 = vmax.f32 %v1004, %v1092
  %v1663 = vmax.f32 %v1009, %v1097
  %v1664 = vmax.f32 %v1012, %v1100
  %v1665 = vmax.f32 %v1017, %v1105
  %v1666 = vmax.f32 %v1020, %v1108
  %v1667 = vmax.f32 %v1025, %v1113
  %v1668 = vmax.f32 %v1028, %v1116
  %v1669 = vmax.f32 %v1297, %v1385
  %v1670 = vmax.f32 %v1300, %v1388
  %v1671 = vmax.f32 %v1305, %v1393
  %v1672 = vmax.f32 %v1308, %v1396
  %v1673 = vmax.f32 %v1313, %v1401
  %v1674 = vmax.f32 %v1316, %v1404
  %v1675 = vmax.f32 %v1321, %v1409
  %v1676 = vmax.f32 %v1324, %v1412
  %v1677 = vmax.f32 %v1329, %v1417
  %v1678 = vmax.f32 %v1332, %v1420
  %v1679 = vmax.f32 %v1337, %v1425
  %v1680 = vmax.f32 %v1340, %v1428
  %v1681 = vmax.f32 %v1345, %v1433
  %v1682 = vmax.f32 %v1348, %v1436
  %v1683 = vmax.f32 %v1353, %v1441
  %v1684 = vmax.f32 %v1356, %v1444
  %v1685 = vmax.f32 %v1361, %v1449
  %v1686 = vmax.f32 %v1364, %v1452
  %v1687 = vmax.f32 %v1369, %v1457
  %v1688 = vmax.f32 %v1372, %v1460
  %v1689 = vmax.f32 %v1377, %v1465
  %v1690 = vmax.f32 %v1380, %v1468
  %v1691 = vmax.f32 %v1121, %v1209
  %v1692 = vmax.f32 %v1124, %v1212
  %v1693 = vmax.f32 %v1129, %v1217
  %v1694 = vmax.f32 %v1132, %v1220
  %v1695 = vmax.f32 %v1137, %v1225
  %v1696 = vmax.f32 %v1140, %v1228
  %v1697 = vmax.f32 %v1145, %v1233
  %v1698 = vmax.f32 %v1148, %v1236
  %v1699 = vmax.f32 %v1153, %v1241
  %v1700 = vmax.f32 %v1156, %v1244
  %v1701 = vmax.f32 %v1161, %v1249
  %v1702 = vmax.f32 %v1164, %v1252
  %v1703 = vmax.f32 %v1169, %v1257
  %v1704 = vmax.f32 %v1172, %v1260
  %v1705 = vmax.f32 %v1177, %v1265
  %v1706 = vmax.f32 %v1180, %v1268
  %v1707 = vmax.f32 %v1185, %v1273
  %v1708 = vmax.f32 %v1188, %v1276
  %v1709 = vmax.f32 %v1193, %v1281
  %v1710 = vmax.f32 %v1196, %v1284
  %v1711 = vmax.f32 %v1201, %v1289
  %v1712 = vmax.f32 %v1204, %v1292
  %v1713 = vmax.f32 %v1473, %v1561
  %v1714 = vmax.f32 %v1476, %v1564
  %v1715 = vmax.f32 %v1481, %v1569
  %v1716 = vmax.f32 %v1484, %v1572
  %v1717 = vmax.f32 %v1489, %v1577
  %v1718 = vmax.f32 %v1492, %v1580
  %v1719 = vmax.f32 %v1497, %v1585
  %v1720 = vmax.f32 %v1500, %v1588
  %v1721 = vmax.f32 %v1505, %v1593
  %v1722 = vmax.f32 %v1508, %v1596
  %v1723 = vmax.f32 %v1513, %v1601
  %v1724 = vmax.f32 %v1516, %v1604
  %v1725 = vmax.f32 %v1521, %v1609
  %v1726 = vmax.f32 %v1524, %v1612
  %v1727 = vmax.f32 %v1529, %v1617
  %v1728 = vmax.f32 %v1532, %v1620
  %v1729 = vmax.f32 %v1537, %v1625
  %v1730 = vmax.f32 %v1540, %v1628
  %v1731 = vmax.f32 %v1545, %v1633
  %v1732 = vmax.f32 %v1548, %v1636
  %v1733 = vmax.f32 %v1553, %v1641
  %v1734 = vmax.f32 %v1556, %v1644
  %v1735 = vmax.f32 %v1647, %v1691
  %v1736 = vmax.f32 %v1648, %v1692
  %v1737 = vmax.f32 %v1649, %v1693
  %v1738 = vmax.f32 %v1650, %v1694
  %v1739 = vmax.f32 %v1651, %v1695
  %v1740 = vmax.f32 %v1652, %v1696
  %v1741 = vmax.f32 %v1653, %v1697
  %v1742 = vmax.f32 %v1654, %v1698
  %v1743 = vmax.f32 %v1655, %v1699
  %v1744 = vmax.f32 %v1656, %v1700
  %v1745 = vmax.f32 %v1657, %v1701
  %v1746 = vmax.f32 %v1658, %v1702
  %v1747 = vmax.f32 %v1659, %v1703
  %v1748 = vmax.f32 %v1660, %v1704
  %v1749 = vmax.f32 %v1661, %v1705
  %v1750 = vmax.f32 %v1662, %v1706
  %v1751 = vmax.f32 %v1663, %v1707
  %v1752 = vmax.f32 %v1664, %v1708
  %v1753 = vmax.f32 %v1665, %v1709
  %v1754 = vmax.f32 %v1666, %v1710
  %v1755 = vmax.f32 %v1667, %v1711
  %v1756 = vmax.f32 %v1668, %v1712
  %v1757 = vmax.f32 %v1669, %v1713
  %v1758 = vmax.f32 %v1670, %v1714
  %v1759 = vmax.f32 %v1671, %v1715
  %v1760 = vmax.f32 %v1672, %v1716
  %v1761 = vmax.f32 %v1673, %v1717
  %v1762 = vmax.f32 %v1674, %v1718
  %v1763 = vmax.f32 %v1675, %v1719
  %v1764 = vmax.f32 %v1676, %v1720
  %v1765 = vmax.f32 %v1677, %v1721
  %v1766 = vmax.f32 %v1678, %v1722
  %v1767 = vmax.f32 %v1679, %v1723
  %v1768 = vmax.f32 %v1680, %v1724
  %v1769 = vmax.f32 %v1681, %v1725
  %v1770 = vmax.f32 %v1682, %v1726
  %v1771 = vmax.f32 %v1683, %v1727
  %v1772 = vmax.f32 %v1684, %v1728
  %v1773 = vmax.f32 %v1685, %v1729
  %v1774 = vmax.f32 %v1686, %v1730
  %v1775 = vmax.f32 %v1687, %v1731
  %v1776 = vmax.f32 %v1688, %v1732
  %v1777 = vmax.f32 %v1689, %v1733
  %v1778 = vmax.f32 %v1690, %v1734
  %v1779 = vld [vmem:[%s2] sm:$0x1]
  %v1781 = vlaneseq
  %v1782 = vshrl.u32 %v1781, 7
  %v1783 = vsub.s32 0, %v1782
  %v1784 = vrot.slane %v1779, %v1783
  %v1786 = vadd.f32 %v1735, %v1784
  %v1787 = vadd.f32 %v1736, %v1784
  %v1788 = vadd.f32 %v1737, %v1784
  %v1789 = vadd.f32 %v1738, %v1784
  %v1790 = vadd.f32 %v1739, %v1784
  %v1791 = vadd.f32 %v1740, %v1784
  %v1792 = vadd.f32 %v1741, %v1784
  %v1793 = vadd.f32 %v1742, %v1784
  %v1794 = vadd.f32 %v1743, %v1784
  %v1795 = vadd.f32 %v1744, %v1784
  %v1796 = vadd.f32 %v1745, %v1784
  %v1797 = vadd.f32 %v1746, %v1784
  %v1798 = vadd.f32 %v1747, %v1784
  %v1799 = vadd.f32 %v1748, %v1784
  %v1800 = vadd.f32 %v1749, %v1784
  %v1801 = vadd.f32 %v1750, %v1784
  %v1802 = vadd.f32 %v1751, %v1784
  %v1803 = vadd.f32 %v1752, %v1784
  %v1804 = vadd.f32 %v1753, %v1784
  %v1805 = vadd.f32 %v1754, %v1784
  %v1806 = vadd.f32 %v1755, %v1784
  %v1807 = vadd.f32 %v1756, %v1784
  %v1808 = vadd.f32 %v1757, %v1784
  %v1809 = vadd.f32 %v1758, %v1784
  %v1810 = vadd.f32 %v1759, %v1784
  %v1811 = vadd.f32 %v1760, %v1784
  %v1812 = vadd.f32 %v1761, %v1784
  %v1813 = vadd.f32 %v1762, %v1784
  %v1814 = vadd.f32 %v1763, %v1784
  %v1815 = vadd.f32 %v1764, %v1784
  %v1816 = vadd.f32 %v1765, %v1784
  %v1817 = vadd.f32 %v1766, %v1784
  %v1818 = vadd.f32 %v1767, %v1784
  %v1819 = vadd.f32 %v1768, %v1784
  %v1820 = vadd.f32 %v1769, %v1784
  %v1821 = vadd.f32 %v1770, %v1784
  %v1822 = vadd.f32 %v1771, %v1784
  %v1823 = vadd.f32 %v1772, %v1784
  %v1824 = vadd.f32 %v1773, %v1784
  %v1825 = vadd.f32 %v1774, %v1784
  %v1826 = vadd.f32 %v1775, %v1784
  %v1827 = vadd.f32 %v1776, %v1784
  %v1828 = vadd.f32 %v1777, %v1784
  %v1829 = vadd.f32 %v1778, %v1784
  %v1830 = vmax.f32 %v1786, 0.0
  %v1831 = vmax.f32 %v1787, 0.0
  %v1832 = vmax.f32 %v1788, 0.0
  %v1833 = vmax.f32 %v1789, 0.0
  %v1834 = vmax.f32 %v1790, 0.0
  %v1835 = vmax.f32 %v1791, 0.0
  %v1836 = vmax.f32 %v1792, 0.0
  %v1837 = vmax.f32 %v1793, 0.0
  %v1838 = vmax.f32 %v1794, 0.0
  %v1839 = vmax.f32 %v1795, 0.0
  %v1840 = vmax.f32 %v1796, 0.0
  %v1841 = vmax.f32 %v1797, 0.0
  %v1842 = vmax.f32 %v1798, 0.0
  %v1843 = vmax.f32 %v1799, 0.0
  %v1844 = vmax.f32 %v1800, 0.0
  %v1845 = vmax.f32 %v1801, 0.0
  %v1846 = vmax.f32 %v1802, 0.0
  %v1847 = vmax.f32 %v1803, 0.0
  %v1848 = vmax.f32 %v1804, 0.0
  %v1849 = vmax.f32 %v1805, 0.0
  %v1850 = vmax.f32 %v1806, 0.0
  %v1851 = vmax.f32 %v1807, 0.0
  %v1852 = vmax.f32 %v1808, 0.0
  %v1853 = vmax.f32 %v1809, 0.0
  %v1854 = vmax.f32 %v1810, 0.0
  %v1855 = vmax.f32 %v1811, 0.0
  %v1856 = vmax.f32 %v1812, 0.0
  %v1857 = vmax.f32 %v1813, 0.0
  %v1858 = vmax.f32 %v1814, 0.0
  %v1859 = vmax.f32 %v1815, 0.0
  %v1860 = vmax.f32 %v1816, 0.0
  %v1861 = vmax.f32 %v1817, 0.0
  %v1862 = vmax.f32 %v1818, 0.0
  %v1863 = vmax.f32 %v1819, 0.0
  %v1864 = vmax.f32 %v1820, 0.0
  %v1865 = vmax.f32 %v1821, 0.0
  %v1866 = vmax.f32 %v1822, 0.0
  %v1867 = vmax.f32 %v1823, 0.0
  %v1868 = vmax.f32 %v1824, 0.0
  %v1869 = vmax.f32 %v1825, 0.0
  %v1870 = vmax.f32 %v1826, 0.0
  %v1871 = vmax.f32 %v1827, 0.0
  %v1872 = vmax.f32 %v1828, 0.0
  %v1873 = vmax.f32 %v1829, 0.0
  %v1874 = vpack.c.bf16 %v1831, %v1830
  %v1875 = vpack.c.bf16 %v1833, %v1832
  %v1876 = vpack.c.bf16 %v1835, %v1834
  %v1877 = vpack.c.bf16 %v1837, %v1836
  %v1878 = vpack.c.bf16 %v1839, %v1838
  %v1879 = vpack.c.bf16 %v1841, %v1840
  %v1880 = vpack.c.bf16 %v1843, %v1842
  %v1881 = vpack.c.bf16 %v1845, %v1844
  %v1882 = vpack.c.bf16 %v1847, %v1846
  %v1883 = vpack.c.bf16 %v1849, %v1848
  %v1884 = vpack.c.bf16 %v1851, %v1850
  %v1885 = vpack.c.bf16 %v1853, %v1852
  %v1886 = vpack.c.bf16 %v1855, %v1854
  %v1887 = vpack.c.bf16 %v1857, %v1856
  %v1888 = vpack.c.bf16 %v1859, %v1858
  %v1889 = vpack.c.bf16 %v1861, %v1860
  %v1890 = vpack.c.bf16 %v1863, %v1862
  %v1891 = vpack.c.bf16 %v1865, %v1864
  %v1892 = vpack.c.bf16 %v1867, %v1866
  %v1893 = vpack.c.bf16 %v1869, %v1868
  %v1894 = vpack.c.bf16 %v1871, %v1870
  %v1895 = vpack.c.bf16 %v1873, %v1872
  %v1918 = vunpack.c.l.b16 %v1874
  %v1919 = vunpack.c.h.b16 %v1874
  %v1920 = vunpack.c.l.b16 %v1875
  %v1921 = vunpack.c.h.b16 %v1875
  %v1922 = vunpack.c.l.b16 %v1876
  %v1923 = vunpack.c.h.b16 %v1876
  %v1924 = vunpack.c.l.b16 %v1877
  %v1925 = vunpack.c.h.b16 %v1877
  %v1926 = vunpack.c.l.b16 %v1878
  %v1927 = vunpack.c.h.b16 %v1878
  %v1928 = vunpack.c.l.b16 %v1879
  %v1929 = vunpack.c.h.b16 %v1879
  %v1930 = vunpack.c.l.b16 %v1880
  %v1931 = vunpack.c.h.b16 %v1880
  %v1932 = vunpack.c.l.b16 %v1881
  %v1933 = vunpack.c.h.b16 %v1881
  %v1934 = vunpack.c.l.b16 %v1882
  %v1935 = vunpack.c.h.b16 %v1882
  %v1936 = vunpack.c.l.b16 %v1883
  %v1937 = vunpack.c.h.b16 %v1883
  %v1938 = vunpack.c.l.b16 %v1884
  %v1939 = vunpack.c.h.b16 %v1884
  %v1940 = vunpack.c.l.b16 %v1885
  %v1941 = vunpack.c.h.b16 %v1885
  %v1942 = vunpack.c.l.b16 %v1886
  %v1943 = vunpack.c.h.b16 %v1886
  %v1944 = vunpack.c.l.b16 %v1887
  %v1945 = vunpack.c.h.b16 %v1887
  %v1946 = vunpack.c.l.b16 %v1888
  %v1947 = vunpack.c.h.b16 %v1888
  %v1948 = vunpack.c.l.b16 %v1889
  %v1949 = vunpack.c.h.b16 %v1889
  %v1950 = vunpack.c.l.b16 %v1890
  %v1951 = vunpack.c.h.b16 %v1890
  %v1952 = vunpack.c.l.b16 %v1891
  %v1953 = vunpack.c.h.b16 %v1891
  %v1954 = vunpack.c.l.b16 %v1892
  %v1955 = vunpack.c.h.b16 %v1892
  %v1956 = vunpack.c.l.b16 %v1893
  %v1957 = vunpack.c.h.b16 %v1893
  %v1958 = vunpack.c.l.b16 %v1894
  %v1959 = vunpack.c.h.b16 %v1894
  %v1960 = vunpack.c.l.b16 %v1895
  %v1961 = vunpack.c.h.b16 %v1895
  %v1962 = vpack.c.b16 %v1918, %v1918
  %v1963 = vpack.c.b16 %v1919, %v1919
  %v1964 = vpack.c.b16 %v1920, %v1920
  %v1965 = vpack.c.b16 %v1921, %v1921
  %v1966 = vpack.c.b16 %v1922, %v1922
  %v1967 = vpack.c.b16 %v1923, %v1923
  %v1968 = vpack.c.b16 %v1924, %v1924
  %v1969 = vpack.c.b16 %v1925, %v1925
  %v1970 = vpack.c.b16 %v1926, %v1926
  %v1971 = vpack.c.b16 %v1927, %v1927
  %v1972 = vpack.c.b16 %v1928, %v1928
  %v1973 = vpack.c.b16 %v1929, %v1929
  %v1974 = vpack.c.b16 %v1930, %v1930
  %v1975 = vpack.c.b16 %v1931, %v1931
  %v1976 = vpack.c.b16 %v1932, %v1932
  %v1977 = vpack.c.b16 %v1933, %v1933
  %v1978 = vpack.c.b16 %v1934, %v1934
  %v1979 = vpack.c.b16 %v1935, %v1935
  %v1980 = vpack.c.b16 %v1936, %v1936
  %v1981 = vpack.c.b16 %v1937, %v1937
  %v1982 = vpack.c.b16 %v1938, %v1938
  %v1983 = vpack.c.b16 %v1939, %v1939
  %v1984 = vpack.c.b16 %v1940, %v1940
  %v1985 = vpack.c.b16 %v1941, %v1941
  %v1986 = vpack.c.b16 %v1942, %v1942
  %v1987 = vpack.c.b16 %v1943, %v1943
  %v1988 = vpack.c.b16 %v1944, %v1944
  %v1989 = vpack.c.b16 %v1945, %v1945
  %v1990 = vpack.c.b16 %v1946, %v1946
  %v1991 = vpack.c.b16 %v1947, %v1947
  %v1992 = vpack.c.b16 %v1948, %v1948
  %v1993 = vpack.c.b16 %v1949, %v1949
  %v1994 = vpack.c.b16 %v1950, %v1950
  %v1995 = vpack.c.b16 %v1951, %v1951
  %v1996 = vpack.c.b16 %v1952, %v1952
  %v1997 = vpack.c.b16 %v1953, %v1953
  %v1998 = vpack.c.b16 %v1954, %v1954
  %v1999 = vpack.c.b16 %v1955, %v1955
  %v2000 = vpack.c.b16 %v1956, %v1956
  %v2001 = vpack.c.b16 %v1957, %v1957
  %v2002 = vpack.c.b16 %v1958, %v1958
  %v2003 = vpack.c.b16 %v1959, %v1959
  %v2004 = vpack.c.b16 %v1960, %v1960
  %v2005 = vpack.c.b16 %v1961, %v1961
  %vm2050 = vcmask 257024
  %2051 = vst.msk [vmem:[%s3] sm:$0xf] %vm2050, %v1962
  %2052 = vst.msk [vmem:[%s3 + $0x4] sm:$0xf] %vm2050, %v1963
  %2053 = vst.msk [vmem:[%s3 + $0x8] sm:$0xf] %vm2050, %v1964
  %2054 = vst.msk [vmem:[%s3 + $0xc] sm:$0xf] %vm2050, %v1965
  %2055 = vst.msk [vmem:[%s3 + $0x10] sm:$0xf] %vm2050, %v1966
  %2056 = vst.msk [vmem:[%s3 + $0x14] sm:$0xf] %vm2050, %v1967
  %2057 = vst.msk [vmem:[%s3 + $0x18] sm:$0xf] %vm2050, %v1968
  %2058 = vst.msk [vmem:[%s3 + $0x1c] sm:$0xf] %vm2050, %v1969
  %2059 = vst.msk [vmem:[%s3 + $0x20] sm:$0xf] %vm2050, %v1970
  %2060 = vst.msk [vmem:[%s3 + $0x24] sm:$0xf] %vm2050, %v1971
  %2061 = vst.msk [vmem:[%s3 + $0x28] sm:$0xf] %vm2050, %v1972
  %2062 = vst.msk [vmem:[%s3 + $0x2c] sm:$0xf] %vm2050, %v1973
  %2063 = vst.msk [vmem:[%s3 + $0x30] sm:$0xf] %vm2050, %v1974
  %2064 = vst.msk [vmem:[%s3 + $0x34] sm:$0xf] %vm2050, %v1975
  %2065 = vst.msk [vmem:[%s3 + $0x38] sm:$0xf] %vm2050, %v1976
  %2066 = vst.msk [vmem:[%s3 + $0x3c] sm:$0xf] %vm2050, %v1977
  %2067 = vst.msk [vmem:[%s3 + $0x40] sm:$0xf] %vm2050, %v1978
  %2068 = vst.msk [vmem:[%s3 + $0x44] sm:$0xf] %vm2050, %v1979
  %2069 = vst.msk [vmem:[%s3 + $0x48] sm:$0xf] %vm2050, %v1980
  %2070 = vst.msk [vmem:[%s3 + $0x4c] sm:$0xf] %vm2050, %v1981
  %2071 = vst.msk [vmem:[%s3 + $0x50] sm:$0xf] %vm2050, %v1982
  %2072 = vst.msk [vmem:[%s3 + $0x54] sm:$0xf] %vm2050, %v1983
  %2073 = vst.msk [vmem:[%s3 + $0x58] sm:$0xf] %vm2050, %v1984
  %2074 = vst.msk [vmem:[%s3 + $0x5c] sm:$0xf] %vm2050, %v1985
  %2075 = vst.msk [vmem:[%s3 + $0x60] sm:$0xf] %vm2050, %v1986
  %2076 = vst.msk [vmem:[%s3 + $0x64] sm:$0xf] %vm2050, %v1987
  %2077 = vst.msk [vmem:[%s3 + $0x68] sm:$0xf] %vm2050, %v1988
  %2078 = vst.msk [vmem:[%s3 + $0x6c] sm:$0xf] %vm2050, %v1989
  %2079 = vst.msk [vmem:[%s3 + $0x70] sm:$0xf] %vm2050, %v1990
  %2080 = vst.msk [vmem:[%s3 + $0x74] sm:$0xf] %vm2050, %v1991
  %2081 = vst.msk [vmem:[%s3 + $0x78] sm:$0xf] %vm2050, %v1992
  %2082 = vst.msk [vmem:[%s3 + $0x7c] sm:$0xf] %vm2050, %v1993
  %2083 = vst.msk [vmem:[%s3 + $0x80] sm:$0xf] %vm2050, %v1994
  %2084 = vst.msk [vmem:[%s3 + $0x84] sm:$0xf] %vm2050, %v1995
  %2085 = vst.msk [vmem:[%s3 + $0x88] sm:$0xf] %vm2050, %v1996
  %2086 = vst.msk [vmem:[%s3 + $0x8c] sm:$0xf] %vm2050, %v1997
  %2087 = vst.msk [vmem:[%s3 + $0x90] sm:$0xf] %vm2050, %v1998
  %2088 = vst.msk [vmem:[%s3 + $0x94] sm:$0xf] %vm2050, %v1999
  %2089 = vst.msk [vmem:[%s3 + $0x98] sm:$0xf] %vm2050, %v2000
  %2090 = vst.msk [vmem:[%s3 + $0x9c] sm:$0xf] %vm2050, %v2001
  %2091 = vst.msk [vmem:[%s3 + $0xa0] sm:$0xf] %vm2050, %v2002
  %2092 = vst.msk [vmem:[%s3 + $0xa4] sm:$0xf] %vm2050, %v2003
  %2093 = vst.msk [vmem:[%s3 + $0xa8] sm:$0xf] %vm2050, %v2004
  %2094 = vst.msk [vmem:[%s3 + $0xac] sm:$0xf] %vm2050, %v2005
  // Predicated region
  $region14: #{forward.3} parent=0 // pred_check
    _
  $region15: #{forward.3} parent=0 // pred_check_branch
    %2096 = sbr.rel (0) target = $region17
  $region16: #{forward.3} parent=0 // pred_region
    _
  $region17: #{forward.3} parent=0 // pred_fallthru
    _
  // Predicated region
  $region18: #{forward.3} parent=0 // pred_check
    _
  $region19: #{forward.3} parent=0 // pred_check_branch
    %2098 = sbr.rel (0) target = $region21
  $region20: #{forward.3} parent=0 // pred_region
    _
  $region21: #{forward.3} parent=0 // pred_fallthru
    _

// kernel: forward.4
$region0: #{forward.4}
  #allocation0 [shape = 'u32[]', space=smem, size = 0x4, offset = 0x4, fixed_abs, tag = 'smem constant byte address 0x4 - core index']
  #allocation1 [shape = 'u32[144,128]{1,0:T(1,128)}', space=vmem, size = 0x12000, scoped, tag = 'internal scratch']
  %s0 = inlined_call_operand.vmem [shape: bf16[2,4,32,288], index: 0, kind: input, shape index: {}]
  %s1 = inlined_call_operand.vmem [shape: bf16[288,64], index: 1, kind: input, shape index: {}]
  %s2 = inlined_call_operand.vmem [shape: f32[1,64], index: 2, kind: input, shape index: {}]
  %s3 = inlined_call_operand.vmem [shape: bf16[2,32,64], index: 3, kind: output, shape index: {}]
  %s4 = sld [smem:[#allocation0]]
  $region22: #{forward.4} parent=0
    _
  %s6 = ssub.s32 1, %s4
  %s7 = scalar_select 0, %s6, %s4
  // Predicated region
  $region2: #{forward.4} parent=0 // pred_check
    _
  $region3: #{forward.4} parent=0 // pred_check_branch
    %9 = sbr.rel (0) target = $region5
  $region4: #{forward.4} parent=0 // pred_region
    _
  $region5: #{forward.4} parent=0 // pred_fallthru
    _
  // Predicated region
  $region6: #{forward.4} parent=0 // pred_check
    _
  $region7: #{forward.4} parent=0 // pred_check_branch
    %11 = sbr.rel (0) target = $region9
  $region8: #{forward.4} parent=0 // pred_region
    _
  $region9: #{forward.4} parent=0 // pred_fallthru
    _
  // Predicated region
  $region10: #{forward.4} parent=0 // pred_check
    _
  $region11: #{forward.4} parent=0 // pred_check_branch
    %13 = sbr.rel (0) target = $region13
  $region12: #{forward.4} parent=0 // pred_region
    _
  $region13: #{forward.4} parent=0 // pred_fallthru
    _
  %v15 = vld [vmem:[%s0] sm:$0xff]
  %v16 = vld [vmem:[%s0 + $0x8] sm:$0xf]
  %v17 = vld [vmem:[%s0 + $0xc] sm:$0xff]
  %v18 = vld [vmem:[%s0 + $0x14] sm:$0xf]
  %v19 = vld [vmem:[%s0 + $0x18] sm:$0xff]
  %v20 = vld [vmem:[%s0 + $0x20] sm:$0xf]
  %v21 = vld [vmem:[%s0 + $0x24] sm:$0xff]
  %v22 = vld [vmem:[%s0 + $0x2c] sm:$0xf]
  %v23 = vld [vmem:[%s0 + $0x30] sm:$0xff]
  %v24 = vld [vmem:[%s0 + $0x38] sm:$0xf]
  %v25 = vld [vmem:[%s0 + $0x3c] sm:$0xff]
  %v26 = vld [vmem:[%s0 + $0x44] sm:$0xf]
  %v27 = vld [vmem:[%s0 + $0x48] sm:$0xff]
  %v28 = vld [vmem:[%s0 + $0x50] sm:$0xf]
  %v29 = vld [vmem:[%s0 + $0x54] sm:$0xff]
  %v30 = vld [vmem:[%s0 + $0x5c] sm:$0xf]
  %v31 = vld [vmem:[%s0 + $0x60] sm:$0xff]
  %v32 = vld [vmem:[%s0 + $0x68] sm:$0xf]
  %v33 = vld [vmem:[%s0 + $0x6c] sm:$0xff]
  %v34 = vld [vmem:[%s0 + $0x74] sm:$0xf]
  %v35 = vld [vmem:[%s0 + $0x78] sm:$0xff]
  %v36 = vld [vmem:[%s0 + $0x80] sm:$0xf]
  %v37 = vld [vmem:[%s0 + $0x84] sm:$0xff]
  %v38 = vld [vmem:[%s0 + $0x8c] sm:$0xf]
  %v39 = vld [vmem:[%s0 + $0x90] sm:$0xff]
  %v40 = vld [vmem:[%s0 + $0x98] sm:$0xf]
  %v41 = vld [vmem:[%s0 + $0x9c] sm:$0xff]
  %v42 = vld [vmem:[%s0 + $0xa4] sm:$0xf]
  %v43 = vld [vmem:[%s0 + $0xa8] sm:$0xff]
  %v44 = vld [vmem:[%s0 + $0xb0] sm:$0xf]
  %v45 = vld [vmem:[%s0 + $0xb4] sm:$0xff]
  %v46 = vld [vmem:[%s0 + $0xbc] sm:$0xf]
  %v47 = vld [vmem:[%s0 + $0xc0] sm:$0xff]
  %v48 = vld [vmem:[%s0 + $0xc8] sm:$0xf]
  %v49 = vld [vmem:[%s0 + $0xcc] sm:$0xff]
  %v50 = vld [vmem:[%s0 + $0xd4] sm:$0xf]
  %v51 = vld [vmem:[%s0 + $0xd8] sm:$0xff]
  %v52 = vld [vmem:[%s0 + $0xe0] sm:$0xf]
  %v53 = vld [vmem:[%s0 + $0xe4] sm:$0xff]
  %v54 = vld [vmem:[%s0 + $0xec] sm:$0xf]
  %v55 = vld [vmem:[%s0 + $0xf0] sm:$0xff]
  %v56 = vld [vmem:[%s0 + $0xf8] sm:$0xf]
  %v57 = vld [vmem:[%s0 + $0xfc] sm:$0xff]
  %v58 = vld [vmem:[%s0 + $0x104] sm:$0xf]
  %v59 = vld [vmem:[%s0 + $0x108] sm:$0xff]
  %v60 = vld [vmem:[%s0 + $0x110] sm:$0xf]
  %v61 = vld [vmem:[%s0 + $0x114] sm:$0xff]
  %v62 = vld [vmem:[%s0 + $0x11c] sm:$0xf]
  %v63 = vld [vmem:[%s0 + $0x120] sm:$0xff]
  %v64 = vld [vmem:[%s0 + $0x128] sm:$0xf]
  %v65 = vld [vmem:[%s0 + $0x12c] sm:$0xff]
  %v66 = vld [vmem:[%s0 + $0x134] sm:$0xf]
  %v67 = vld [vmem:[%s0 + $0x138] sm:$0xff]
  %v68 = vld [vmem:[%s0 + $0x140] sm:$0xf]
  %v69 = vld [vmem:[%s0 + $0x144] sm:$0xff]
  %v70 = vld [vmem:[%s0 + $0x14c] sm:$0xf]
  %v71 = vld [vmem:[%s0 + $0x150] sm:$0xff]
  %v72 = vld [vmem:[%s0 + $0x158] sm:$0xf]
  %v73 = vld [vmem:[%s0 + $0x15c] sm:$0xff]
  %v74 = vld [vmem:[%s0 + $0x164] sm:$0xf]
  %v75 = vld [vmem:[%s0 + $0x168] sm:$0xff]
  %v76 = vld [vmem:[%s0 + $0x170] sm:$0xf]
  %v77 = vld [vmem:[%s0 + $0x174] sm:$0xff]
  %v78 = vld [vmem:[%s0 + $0x17c] sm:$0xf]
  %v79 = vld [vmem:[%s1] sm:$0xf]
  %v80 = vld [vmem:[%s1 + $0x4] sm:$0xf]
  %v81 = vld [vmem:[%s1 + $0x8] sm:$0xf]
  %v82 = vld [vmem:[%s1 + $0xc] sm:$0xf]
  %v83 = vld [vmem:[%s1 + $0x10] sm:$0xf]
  %v84 = vld [vmem:[%s1 + $0x14] sm:$0xf]
  %v85 = vld [vmem:[%s1 + $0x18] sm:$0xf]
  %v86 = vld [vmem:[%s1 + $0x1c] sm:$0xf]
  %v87 = vld [vmem:[%s1 + $0x20] sm:$0xf]
  %v88 = vld [vmem:[%s1 + $0x24] sm:$0xf]
  %v89 = vld [vmem:[%s1 + $0x28] sm:$0xf]
  %v90 = vld [vmem:[%s1 + $0x2c] sm:$0xf]
  %v91 = vld [vmem:[%s1 + $0x30] sm:$0xf]
  %v92 = vld [vmem:[%s1 + $0x34] sm:$0xf]
  %v93 = vld [vmem:[%s1 + $0x38] sm:$0xf]
  %v94 = vld [vmem:[%s1 + $0x3c] sm:$0xf]
  %v95 = vld [vmem:[%s1 + $0x40] sm:$0xf]
  %v96 = vld [vmem:[%s1 + $0x44] sm:$0xf]
  %v97 = vld [vmem:[%s1 + $0x48] sm:$0xf]
  %v98 = vld [vmem:[%s1 + $0x4c] sm:$0xf]
  %v99 = vld [vmem:[%s1 + $0x50] sm:$0xf]
  %v100 = vld [vmem:[%s1 + $0x54] sm:$0xf]
  %v101 = vld [vmem:[%s1 + $0x58] sm:$0xf]
  %v102 = vld [vmem:[%s1 + $0x5c] sm:$0xf]
  %v103 = vld [vmem:[%s1 + $0x60] sm:$0xf]
  %v104 = vld [vmem:[%s1 + $0x64] sm:$0xf]
  %v105 = vld [vmem:[%s1 + $0x68] sm:$0xf]
  %v106 = vld [vmem:[%s1 + $0x6c] sm:$0xf]
  %v107 = vld [vmem:[%s1 + $0x70] sm:$0xf]
  %v108 = vld [vmem:[%s1 + $0x74] sm:$0xf]
  %v109 = vld [vmem:[%s1 + $0x78] sm:$0xf]
  %v110 = vld [vmem:[%s1 + $0x7c] sm:$0xf]
  %v111 = vld [vmem:[%s1 + $0x80] sm:$0xf]
  %v112 = vld [vmem:[%s1 + $0x84] sm:$0xf]
  %v113 = vld [vmem:[%s1 + $0x88] sm:$0xf]
  %v114 = vld [vmem:[%s1 + $0x8c] sm:$0xf]
  %v179 = vunpack.c.l.b16 %v15
  %v180 = vunpack.c.h.b16 %v15
  %v181 = vunpack.c.l.b16 %v16
  %v182 = vunpack.c.l.b16 %v17
  %v183 = vunpack.c.h.b16 %v17
  %v184 = vunpack.c.l.b16 %v18
  %v185 = vunpack.c.l.b16 %v19
  %v186 = vunpack.c.h.b16 %v19
  %v187 = vunpack.c.l.b16 %v20
  %v188 = vunpack.c.l.b16 %v21
  %v189 = vunpack.c.h.b16 %v21
  %v190 = vunpack.c.l.b16 %v22
  %v191 = vunpack.c.l.b16 %v23
  %v192 = vunpack.c.h.b16 %v23
  %v193 = vunpack.c.l.b16 %v24
  %v194 = vunpack.c.l.b16 %v25
  %v195 = vunpack.c.h.b16 %v25
  %v196 = vunpack.c.l.b16 %v26
  %v197 = vunpack.c.l.b16 %v27
  %v198 = vunpack.c.h.b16 %v27
  %v199 = vunpack.c.l.b16 %v28
  %v200 = vunpack.c.l.b16 %v29
  %v201 = vunpack.c.h.b16 %v29
  %v202 = vunpack.c.l.b16 %v30
  %v203 = vunpack.c.l.b16 %v31
  %v204 = vunpack.c.h.b16 %v31
  %v205 = vunpack.c.l.b16 %v32
  %v206 = vunpack.c.l.b16 %v33
  %v207 = vunpack.c.h.b16 %v33
  %v208 = vunpack.c.l.b16 %v34
  %v209 = vunpack.c.l.b16 %v35
  %v210 = vunpack.c.h.b16 %v35
  %v211 = vunpack.c.l.b16 %v36
  %v212 = vunpack.c.l.b16 %v37
  %v213 = vunpack.c.h.b16 %v37
  %v214 = vunpack.c.l.b16 %v38
  %v215 = vunpack.c.l.b16 %v39
  %v216 = vunpack.c.h.b16 %v39
  %v217 = vunpack.c.l.b16 %v40
  %v218 = vunpack.c.l.b16 %v41
  %v219 = vunpack.c.h.b16 %v41
  %v220 = vunpack.c.l.b16 %v42
  %v221 = vunpack.c.l.b16 %v43
  %v222 = vunpack.c.h.b16 %v43
  %v223 = vunpack.c.l.b16 %v44
  %v224 = vunpack.c.l.b16 %v45
  %v225 = vunpack.c.h.b16 %v45
  %v226 = vunpack.c.l.b16 %v46
  %v227 = vunpack.c.l.b16 %v47
  %v228 = vunpack.c.h.b16 %v47
  %v229 = vunpack.c.l.b16 %v48
  %v230 = vunpack.c.l.b16 %v49
  %v231 = vunpack.c.h.b16 %v49
  %v232 = vunpack.c.l.b16 %v50
  %v233 = vunpack.c.l.b16 %v51
  %v234 = vunpack.c.h.b16 %v51
  %v235 = vunpack.c.l.b16 %v52
  %v236 = vunpack.c.l.b16 %v53
  %v237 = vunpack.c.h.b16 %v53
  %v238 = vunpack.c.l.b16 %v54
  %v239 = vunpack.c.l.b16 %v55
  %v240 = vunpack.c.h.b16 %v55
  %v241 = vunpack.c.l.b16 %v56
  %v242 = vunpack.c.l.b16 %v57
  %v243 = vunpack.c.h.b16 %v57
  %v244 = vunpack.c.l.b16 %v58
  %v245 = vunpack.c.l.b16 %v59
  %v246 = vunpack.c.h.b16 %v59
  %v247 = vunpack.c.l.b16 %v60
  %v248 = vunpack.c.l.b16 %v61
  %v249 = vunpack.c.h.b16 %v61
  %v250 = vunpack.c.l.b16 %v62
  %v251 = vunpack.c.l.b16 %v63
  %v252 = vunpack.c.h.b16 %v63
  %v253 = vunpack.c.l.b16 %v64
  %v254 = vunpack.c.l.b16 %v65
  %v255 = vunpack.c.h.b16 %v65
  %v256 = vunpack.c.l.b16 %v66
  %v257 = vunpack.c.l.b16 %v67
  %v258 = vunpack.c.h.b16 %v67
  %v259 = vunpack.c.l.b16 %v68
  %v260 = vunpack.c.l.b16 %v69
  %v261 = vunpack.c.h.b16 %v69
  %v262 = vunpack.c.l.b16 %v70
  %v263 = vunpack.c.l.b16 %v71
  %v264 = vunpack.c.h.b16 %v71
  %v265 = vunpack.c.l.b16 %v72
  %v266 = vunpack.c.l.b16 %v73
  %v267 = vunpack.c.h.b16 %v73
  %v268 = vunpack.c.l.b16 %v74
  %v269 = vunpack.c.l.b16 %v75
  %v270 = vunpack.c.h.b16 %v75
  %v271 = vunpack.c.l.b16 %v76
  %v272 = vunpack.c.l.b16 %v77
  %v273 = vunpack.c.h.b16 %v77
  %v274 = vunpack.c.l.b16 %v78
  %v275 = vpack.c.b16 %v182, %v179
  %v276 = vpack.c.b16 %v183, %v180
  %v277 = vpack.c.b16 %v184, %v181
  %v278 = vpack.c.b16 %v188, %v185
  %v279 = vpack.c.b16 %v189, %v186
  %v280 = vpack.c.b16 %v190, %v187
  %v281 = vpack.c.b16 %v194, %v191
  %v282 = vpack.c.b16 %v195, %v192
  %v283 = vpack.c.b16 %v196, %v193
  %v284 = vpack.c.b16 %v200, %v197
  %v285 = vpack.c.b16 %v201, %v198
  %v286 = vpack.c.b16 %v202, %v199
  %v287 = vpack.c.b16 %v206, %v203
  %v288 = vpack.c.b16 %v207, %v204
  %v289 = vpack.c.b16 %v208, %v205
  %v290 = vpack.c.b16 %v212, %v209
  %v291 = vpack.c.b16 %v213, %v210
  %v292 = vpack.c.b16 %v214, %v211
  %v293 = vpack.c.b16 %v218, %v215
  %v294 = vpack.c.b16 %v219, %v216
  %v295 = vpack.c.b16 %v220, %v217
  %v296 = vpack.c.b16 %v224, %v221
  %v297 = vpack.c.b16 %v225, %v222
  %v298 = vpack.c.b16 %v226, %v223
  %v299 = vpack.c.b16 %v230, %v227
  %v300 = vpack.c.b16 %v231, %v228
  %v301 = vpack.c.b16 %v232, %v229
  %v302 = vpack.c.b16 %v236, %v233
  %v303 = vpack.c.b16 %v237, %v234
  %v304 = vpack.c.b16 %v238, %v235
  %v305 = vpack.c.b16 %v242, %v239
  %v306 = vpack.c.b16 %v243, %v240
  %v307 = vpack.c.b16 %v244, %v241
  %v308 = vpack.c.b16 %v248, %v245
  %v309 = vpack.c.b16 %v249, %v246
  %v310 = vpack.c.b16 %v250, %v247
  %v311 = vpack.c.b16 %v254, %v251
  %v312 = vpack.c.b16 %v255, %v252
  %v313 = vpack.c.b16 %v256, %v253
  %v314 = vpack.c.b16 %v260, %v257
  %v315 = vpack.c.b16 %v261, %v258
  %v316 = vpack.c.b16 %v262, %v259
  %v317 = vpack.c.b16 %v266, %v263
  %v318 = vpack.c.b16 %v267, %v264
  %v319 = vpack.c.b16 %v268, %v265
  %v320 = vpack.c.b16 %v272, %v269
  %v321 = vpack.c.b16 %v273, %v270
  %v322 = vpack.c.b16 %v274, %v271
  %v391 = vunpack.c.l.b16 %v79
  %v392 = vunpack.c.l.b16 %v80
  %v393 = vunpack.c.l.b16 %v81
  %v394 = vunpack.c.l.b16 %v82
  %v395 = vunpack.c.l.b16 %v83
  %v396 = vunpack.c.l.b16 %v84
  %v397 = vunpack.c.l.b16 %v85
  %v398 = vunpack.c.l.b16 %v86
  %v399 = vunpack.c.l.b16 %v87
  %v400 = vunpack.c.l.b16 %v88
  %v401 = vunpack.c.l.b16 %v89
  %v402 = vunpack.c.l.b16 %v90
  %v403 = vunpack.c.l.b16 %v91
  %v404 = vunpack.c.l.b16 %v92
  %v405 = vunpack.c.l.b16 %v93
  %v406 = vunpack.c.l.b16 %v94
  %v407 = vunpack.c.l.b16 %v95
  %v408 = vunpack.c.l.b16 %v96
  %v409 = vunpack.c.l.b16 %v97
  %v410 = vunpack.c.l.b16 %v98
  %v411 = vunpack.c.l.b16 %v99
  %v412 = vunpack.c.l.b16 %v100
  %v413 = vunpack.c.l.b16 %v101
  %v414 = vunpack.c.l.b16 %v102
  %v415 = vunpack.c.l.b16 %v103
  %v416 = vunpack.c.l.b16 %v104
  %v417 = vunpack.c.l.b16 %v105
  %v418 = vunpack.c.l.b16 %v106
  %v419 = vunpack.c.l.b16 %v107
  %v420 = vunpack.c.l.b16 %v108
  %v421 = vunpack.c.l.b16 %v109
  %v422 = vunpack.c.l.b16 %v110
  %v423 = vunpack.c.l.b16 %v111
  %v424 = vunpack.c.l.b16 %v112
  %v425 = vunpack.c.l.b16 %v113
  %v426 = vunpack.c.l.b16 %v114
  %v427 = vpack.c.b16 %v392, %v391
  %v428 = vpack.c.b16 %v394, %v393
  %v429 = vpack.c.b16 %v396, %v395
  %v430 = vpack.c.b16 %v398, %v397
  %v431 = vpack.c.b16 %v400, %v399
  %v432 = vpack.c.b16 %v402, %v401
  %v433 = vpack.c.b16 %v404, %v403
  %v434 = vpack.c.b16 %v406, %v405
  %v435 = vpack.c.b16 %v408, %v407
  %v436 = vpack.c.b16 %v410, %v409
  %v437 = vpack.c.b16 %v412, %v411
  %v438 = vpack.c.b16 %v414, %v413
  %v439 = vpack.c.b16 %v416, %v415
  %v440 = vpack.c.b16 %v418, %v417
  %v441 = vpack.c.b16 %v420, %v419
  %v442 = vpack.c.b16 %v422, %v421
  %v443 = vpack.c.b16 %v424, %v423
  %v444 = vpack.c.b16 %v426, %v425
  %vm463 = vcmask 261120
  %v465 = vsel %vm463, %v277, 0
  %v468 = vsel %vm463, %v280, 0
  %v471 = vsel %vm463, %v283, 0
  %v474 = vsel %vm463, %v286, 0
  %v477 = vsel %vm463, %v289, 0
  %v480 = vsel %vm463, %v292, 0
  %v483 = vsel %vm463, %v295, 0
  %v486 = vsel %vm463, %v298, 0
  %v489 = vsel %vm463, %v301, 0
  %v492 = vsel %vm463, %v304, 0
  %v495 = vsel %vm463, %v307, 0
  %v498 = vsel %vm463, %v310, 0
  %v501 = vsel %vm463, %v313, 0
  %v504 = vsel %vm463, %v316, 0
  %v507 = vsel %vm463, %v319, 0
  %v510 = vsel %vm463, %v322, 0
  %512 = vmatprep.subr.bf16.mxu0 0
  %513 = vmatpush1.bf16.msra.mxu0 %v427
  %514 = vmatprep.subr.bf16.mxu0 0
  %515 = vmatpush1.bf16.msra.mxu0 %v428
  %516 = vmatprep.subr.bf16.mxu0 0
  %517 = vmatpush1.bf16.msra.mxu0 %v429
  %518 = vmatprep.subr.bf16.mxu0 0
  %519 = vmatpush1.bf16.msra.mxu0 %v430
  %520 = vmatprep.subr.bf16.mxu0 0
  %521 = vmatpush1.bf16.msra.mxu0 %v431
  %522 = vmatprep.subr.bf16.mxu0 0
  %523 = vmatpush1.bf16.msra.mxu0 %v432
  %524 = vmatprep.subr.bf16.mxu0 0
  %525 = vmatpush1.bf16.msra.mxu0 %v433
  %526 = vmatprep.subr.bf16.mxu0 0
  %527 = vmatpush1.bf16.msra.mxu0 %v434
  %528 = vmatprep.subr.bf16.mxu0 0
  %529 = vmatpush1.bf16.msra.mxu0 %v435
  %530 = vmatprep.subr.bf16.mxu0 0
  %531 = vmatpush1.bf16.msra.mxu0 %v436
  %532 = vmatprep.subr.bf16.mxu0 0
  %533 = vmatpush1.bf16.msra.mxu0 %v437
  %534 = vmatprep.subr.bf16.mxu0 0
  %535 = vmatpush1.bf16.msra.mxu0 %v438
  %536 = vmatprep.subr.bf16.mxu0 0
  %537 = vmatpush1.bf16.msra.mxu0 %v439
  %538 = vmatprep.subr.bf16.mxu0 0
  %539 = vmatpush1.bf16.msra.mxu0 %v440
  %540 = vmatprep.subr.bf16.mxu0 0
  %541 = vmatpush1.bf16.msra.mxu0 %v441
  %542 = vmatprep.subr.bf16.mxu0 0
  %543 = vmatpush1.bf16.msra.mxu0 %v442
  %544 = vmatprep.mubr.bf16.mxu0 %v276
  %545 = vmatmul.mubr.bf16.gmra.mrb[0].mxu0 %v275
  %v546 = vpop.f32.mrb[0].mxu0
  %v547 = vadd.f32 0.0, %v546
  %v548 = vpop.f32.mrb[0].mxu0
  %v549 = vpop.f32.mrb[0].mxu0
  %v550 = vadd.f32 0.0, %v549
  %v551 = vpop.f32.mrb[0].mxu0
  %552 = vmatprep.mubr.bf16.mxu0 %v279
  %553 = vmatmul.mubr.bf16.gmra.mrb[0].mxu0 %v278
  %v554 = vpop.f32.mrb[0].mxu0
  %v555 = vadd.f32 0.0, %v554
  %v556 = vpop.f32.mrb[0].mxu0
  %v557 = vpop.f32.mrb[0].mxu0
  %v558 = vadd.f32 0.0, %v557
  %v559 = vpop.f32.mrb[0].mxu0
  %560 = vmatprep.mubr.bf16.mxu0 %v282
  %561 = vmatmul.mubr.bf16.gmra.mrb[0].mxu0 %v281
  %v562 = vpop.f32.mrb[0].mxu0
  %v563 = vadd.f32 0.0, %v562
  %v564 = vpop.f32.mrb[0].mxu0
  %v565 = vpop.f32.mrb[0].mxu0
  %v566 = vadd.f32 0.0, %v565
  %v567 = vpop.f32.mrb[0].mxu0
  %568 = vmatprep.mubr.bf16.mxu0 %v285
  %569 = vmatmul.mubr.bf16.gmra.mrb[0].mxu0 %v284
  %v570 = vpop.f32.mrb[0].mxu0
  %v571 = vadd.f32 0.0, %v570
  %v572 = vpop.f32.mrb[0].mxu0
  %v573 = vpop.f32.mrb[0].mxu0
  %v574 = vadd.f32 0.0, %v573
  %v575 = vpop.f32.mrb[0].mxu0
  %576 = vmatprep.mubr.bf16.mxu0 %v288
  %577 = vmatmul.mubr.bf16.gmra.mrb[0].mxu0 %v287
  %v578 = vpop.f32.mrb[0].mxu0
  %v579 = vadd.f32 0.0, %v578
  %v580 = vpop.f32.mrb[0].mxu0
  %v581 = vpop.f32.mrb[0].mxu0
  %v582 = vadd.f32 0.0, %v581
  %v583 = vpop.f32.mrb[0].mxu0
  %584 = vmatprep.mubr.bf16.mxu0 %v291
  %585 = vmatmul.mubr.bf16.gmra.mrb[0].mxu0 %v290
  %v586 = vpop.f32.mrb[0].mxu0
  %v587 = vadd.f32 0.0, %v586
  %v588 = vpop.f32.mrb[0].mxu0
  %v589 = vpop.f32.mrb[0].mxu0
  %v590 = vadd.f32 0.0, %v589
  %v591 = vpop.f32.mrb[0].mxu0
  %592 = vmatprep.mubr.bf16.mxu0 %v294
  %593 = vmatmul.mubr.bf16.gmra.mrb[0].mxu0 %v293
  %v594 = vpop.f32.mrb[0].mxu0
  %v595 = vadd.f32 0.0, %v594
  %v596 = vpop.f32.mrb[0].mxu0
  %v597 = vpop.f32.mrb[0].mxu0
  %v598 = vadd.f32 0.0, %v597
  %v599 = vpop.f32.mrb[0].mxu0
  %600 = vmatprep.mubr.bf16.mxu0 %v297
  %601 = vmatmul.mubr.bf16.gmra.mrb[0].mxu0 %v296
  %v602 = vpop.f32.mrb[0].mxu0
  %v603 = vadd.f32 0.0, %v602
  %v604 = vpop.f32.mrb[0].mxu0
  %v605 = vpop.f32.mrb[0].mxu0
  %v606 = vadd.f32 0.0, %v605
  %v607 = vpop.f32.mrb[0].mxu0
  %608 = vmatprep.mubr.bf16.mxu0 %v300
  %609 = vmatmul.mubr.bf16.gmra.mrb[0].mxu0 %v299
  %v610 = vpop.f32.mrb[0].mxu0
  %v611 = vadd.f32 0.0, %v610
  %v612 = vpop.f32.mrb[0].mxu0
  %v613 = vpop.f32.mrb[0].mxu0
  %v614 = vadd.f32 0.0, %v613
  %v615 = vpop.f32.mrb[0].mxu0
  %616 = vmatprep.mubr.bf16.mxu0 %v303
  %617 = vmatmul.mubr.bf16.gmra.mrb[0].mxu0 %v302
  %v618 = vpop.f32.mrb[0].mxu0
  %v619 = vadd.f32 0.0, %v618
  %v620 = vpop.f32.mrb[0].mxu0
  %v621 = vpop.f32.mrb[0].mxu0
  %v622 = vadd.f32 0.0, %v621
  %v623 = vpop.f32.mrb[0].mxu0
  %624 = vmatprep.mubr.bf16.mxu0 %v306
  %625 = vmatmul.mubr.bf16.gmra.mrb[0].mxu0 %v305
  %v626 = vpop.f32.mrb[0].mxu0
  %v627 = vadd.f32 0.0, %v626
  %v628 = vpop.f32.mrb[0].mxu0
  %v629 = vpop.f32.mrb[0].mxu0
  %v630 = vadd.f32 0.0, %v629
  %v631 = vpop.f32.mrb[0].mxu0
  %632 = vmatprep.mubr.bf16.mxu0 %v309
  %633 = vmatmul.mubr.bf16.gmra.mrb[0].mxu0 %v308
  %v634 = vpop.f32.mrb[0].mxu0
  %v635 = vadd.f32 0.0, %v634
  %v636 = vpop.f32.mrb[0].mxu0
  %v637 = vpop.f32.mrb[0].mxu0
  %v638 = vadd.f32 0.0, %v637
  %v639 = vpop.f32.mrb[0].mxu0
  %640 = vmatprep.mubr.bf16.mxu0 %v312
  %641 = vmatmul.mubr.bf16.gmra.mrb[0].mxu0 %v311
  %v642 = vpop.f32.mrb[0].mxu0
  %v643 = vadd.f32 0.0, %v642
  %v644 = vpop.f32.mrb[0].mxu0
  %v645 = vpop.f32.mrb[0].mxu0
  %v646 = vadd.f32 0.0, %v645
  %v647 = vpop.f32.mrb[0].mxu0
  %648 = vmatprep.mubr.bf16.mxu0 %v315
  %649 = vmatmul.mubr.bf16.gmra.mrb[0].mxu0 %v314
  %v650 = vpop.f32.mrb[0].mxu0
  %v651 = vadd.f32 0.0, %v650
  %v652 = vpop.f32.mrb[0].mxu0
  %v653 = vpop.f32.mrb[0].mxu0
  %v654 = vadd.f32 0.0, %v653
  %v655 = vpop.f32.mrb[0].mxu0
  %656 = vmatprep.mubr.bf16.mxu0 %v318
  %657 = vmatmul.mubr.bf16.gmra.mrb[0].mxu0 %v317
  %v658 = vpop.f32.mrb[0].mxu0
  %v659 = vadd.f32 0.0, %v658
  %v660 = vpop.f32.mrb[0].mxu0
  %v661 = vpop.f32.mrb[0].mxu0
  %v662 = vadd.f32 0.0, %v661
  %v663 = vpop.f32.mrb[0].mxu0
  %664 = vmatprep.mubr.bf16.mxu0 %v321
  %665 = vmatmul.mubr.bf16.gmra.mrb[0].mxu0 %v320
  %v666 = vpop.f32.mrb[0].mxu0
  %v667 = vadd.f32 0.0, %v666
  %v668 = vpop.f32.mrb[0].mxu0
  %v669 = vpop.f32.mrb[0].mxu0
  %v670 = vadd.f32 0.0, %v669
  %v671 = vpop.f32.mrb[0].mxu0
  %672 = vdwg.mxu0
  %673 = vmatprep.subr.bf16.mxu0 0
  %674 = vmatpush1.bf16.msra.mxu0 %v443
  %675 = vmatprep.subr.bf16.mxu0 0
  %676 = vmatpush1.bf16.msra.mxu0 %v444
  %677 = vmatprep.subr.bf16.mxu0 0
  %678 = vmatpush1.bf16.msra.mxu0 0
  %679 = vmatprep.subr.bf16.mxu0 0
  %680 = vmatpush1.bf16.msra.mxu0 0
  %681 = vmatprep.subr.bf16.mxu0 0
  %682 = vmatpush1.bf16.msra.mxu0 0
  %683 = vmatprep.subr.bf16.mxu0 0
  %684 = vmatpush1.bf16.msra.mxu0 0
  %685 = vmatprep.subr.bf16.mxu0 0
  %686 = vmatpush1.bf16.msra.mxu0 0
  %687 = vmatprep.subr.bf16.mxu0 0
  %688 = vmatpush1.bf16.msra.mxu0 0
  %689 = vmatprep.subr.bf16.mxu0 0
  %690 = vmatpush1.bf16.msra.mxu0 0
  %691 = vmatprep.subr.bf16.mxu0 0
  %692 = vmatpush1.bf16.msra.mxu0 0
  %693 = vmatprep.subr.bf16.mxu0 0
  %694 = vmatpush1.bf16.msra.mxu0 0
  %695 = vmatprep.subr.bf16.mxu0 0
  %696 = vmatpush1.bf16.msra.mxu0 0
  %697 = vmatprep.subr.bf16.mxu0 0
  %698 = vmatpush1.bf16.msra.mxu0 0
  %699 = vmatprep.subr.bf16.mxu0 0
  %700 = vmatpush1.bf16.msra.mxu0 0
  %701 = vmatprep.subr.bf16.mxu0 0
  %702 = vmatpush1.bf16.msra.mxu0 0
  %703 = vmatprep.subr.bf16.mxu0 0
  %704 = vmatpush1.bf16.msra.mxu0 0
  %705 = vmatprep.mubr.bf16.mxu0 0
  %706 = vmatmul.mubr.bf16.gmra.mrb[0].mxu0 %v465
  %v707 = vpop.f32.mrb[0].mxu0
  %v708 = vadd.f32 %v547, %v707
  %v709 = vpop.f32.mrb[0].mxu0
  %v710 = vpop.f32.mrb[0].mxu0
  %v711 = vadd.f32 %v550, %v710
  %v712 = vpop.f32.mrb[0].mxu0
  %713 = vmatprep.mubr.bf16.mxu0 0
  %714 = vmatmul.mubr.bf16.gmra.mrb[0].mxu0 %v468
  %v715 = vpop.f32.mrb[0].mxu0
  %v716 = vadd.f32 %v555, %v715
  %v717 = vpop.f32.mrb[0].mxu0
  %v718 = vpop.f32.mrb[0].mxu0
  %v719 = vadd.f32 %v558, %v718
  %v720 = vpop.f32.mrb[0].mxu0
  %721 = vmatprep.mubr.bf16.mxu0 0
  %722 = vmatmul.mubr.bf16.gmra.mrb[0].mxu0 %v471
  %v723 = vpop.f32.mrb[0].mxu0
  %v724 = vadd.f32 %v563, %v723
  %v725 = vpop.f32.mrb[0].mxu0
  %v726 = vpop.f32.mrb[0].mxu0
  %v727 = vadd.f32 %v566, %v726
  %v728 = vpop.f32.mrb[0].mxu0
  %729 = vmatprep.mubr.bf16.mxu0 0
  %730 = vmatmul.mubr.bf16.gmra.mrb[0].mxu0 %v474
  %v731 = vpop.f32.mrb[0].mxu0
  %v732 = vadd.f32 %v571, %v731
  %v733 = vpop.f32.mrb[0].mxu0
  %v734 = vpop.f32.mrb[0].mxu0
  %v735 = vadd.f32 %v574, %v734
  %v736 = vpop.f32.mrb[0].mxu0
  %737 = vmatprep.mubr.bf16.mxu0 0
  %738 = vmatmul.mubr.bf16.gmra.mrb[0].mxu0 %v477
  %v739 = vpop.f32.mrb[0].mxu0
  %v740 = vadd.f32 %v579, %v739
  %v741 = vpop.f32.mrb[0].mxu0
  %v742 = vpop.f32.mrb[0].mxu0
  %v743 = vadd.f32 %v582, %v742
  %v744 = vpop.f32.mrb[0].mxu0
  %745 = vmatprep.mubr.bf16.mxu0 0
  %746 = vmatmul.mubr.bf16.gmra.mrb[0].mxu0 %v480
  %v747 = vpop.f32.mrb[0].mxu0
  %v748 = vadd.f32 %v587, %v747
  %v749 = vpop.f32.mrb[0].mxu0
  %v750 = vpop.f32.mrb[0].mxu0
  %v751 = vadd.f32 %v590, %v750
  %v752 = vpop.f32.mrb[0].mxu0
  %753 = vmatprep.mubr.bf16.mxu0 0
  %754 = vmatmul.mubr.bf16.gmra.mrb[0].mxu0 %v483
  %v755 = vpop.f32.mrb[0].mxu0
  %v756 = vadd.f32 %v595, %v755
  %v757 = vpop.f32.mrb[0].mxu0
  %v758 = vpop.f32.mrb[0].mxu0
  %v759 = vadd.f32 %v598, %v758
  %v760 = vpop.f32.mrb[0].mxu0
  %761 = vmatprep.mubr.bf16.mxu0 0
  %762 = vmatmul.mubr.bf16.gmra.mrb[0].mxu0 %v486
  %v763 = vpop.f32.mrb[0].mxu0
  %v764 = vadd.f32 %v603, %v763
  %v765 = vpop.f32.mrb[0].mxu0
  %v766 = vpop.f32.mrb[0].mxu0
  %v767 = vadd.f32 %v606, %v766
  %v768 = vpop.f32.mrb[0].mxu0
  %769 = vmatprep.mubr.bf16.mxu0 0
  %770 = vmatmul.mubr.bf16.gmra.mrb[0].mxu0 %v489
  %v771 = vpop.f32.mrb[0].mxu0
  %v772 = vadd.f32 %v611, %v771
  %v773 = vpop.f32.mrb[0].mxu0
  %v774 = vpop.f32.mrb[0].mxu0
  %v775 = vadd.f32 %v614, %v774
  %v776 = vpop.f32.mrb[0].mxu0
  %777 = vmatprep.mubr.bf16.mxu0 0
  %778 = vmatmul.mubr.bf16.gmra.mrb[0].mxu0 %v492
  %v779 = vpop.f32.mrb[0].mxu0
  %v780 = vadd.f32 %v619, %v779
  %v781 = vpop.f32.mrb[0].mxu0
  %v782 = vpop.f32.mrb[0].mxu0
  %v783 = vadd.f32 %v622, %v782
  %v784 = vpop.f32.mrb[0].mxu0
  %785 = vmatprep.mubr.bf16.mxu0 0
  %786 = vmatmul.mubr.bf16.gmra.mrb[0].mxu0 %v495
  %v787 = vpop.f32.mrb[0].mxu0
  %v788 = vadd.f32 %v627, %v787
  %v789 = vpop.f32.mrb[0].mxu0
  %v790 = vpop.f32.mrb[0].mxu0
  %v791 = vadd.f32 %v630, %v790
  %v792 = vpop.f32.mrb[0].mxu0
  %793 = vmatprep.mubr.bf16.mxu0 0
  %794 = vmatmul.mubr.bf16.gmra.mrb[0].mxu0 %v498
  %v795 = vpop.f32.mrb[0].mxu0
  %v796 = vadd.f32 %v635, %v795
  %v797 = vpop.f32.mrb[0].mxu0
  %v798 = vpop.f32.mrb[0].mxu0
  %v799 = vadd.f32 %v638, %v798
  %v800 = vpop.f32.mrb[0].mxu0
  %801 = vmatprep.mubr.bf16.mxu0 0
  %802 = vmatmul.mubr.bf16.gmra.mrb[0].mxu0 %v501
  %v803 = vpop.f32.mrb[0].mxu0
  %v804 = vadd.f32 %v643, %v803
  %v805 = vpop.f32.mrb[0].mxu0
  %v806 = vpop.f32.mrb[0].mxu0
  %v807 = vadd.f32 %v646, %v806
  %v808 = vpop.f32.mrb[0].mxu0
  %809 = vmatprep.mubr.bf16.mxu0 0
  %810 = vmatmul.mubr.bf16.gmra.mrb[0].mxu0 %v504
  %v811 = vpop.f32.mrb[0].mxu0
  %v812 = vadd.f32 %v651, %v811
  %v813 = vpop.f32.mrb[0].mxu0
  %v814 = vpop.f32.mrb[0].mxu0
  %v815 = vadd.f32 %v654, %v814
  %v816 = vpop.f32.mrb[0].mxu0
  %817 = vmatprep.mubr.bf16.mxu0 0
  %818 = vmatmul.mubr.bf16.gmra.mrb[0].mxu0 %v507
  %v819 = vpop.f32.mrb[0].mxu0
  %v820 = vadd.f32 %v659, %v819
  %v821 = vpop.f32.mrb[0].mxu0
  %v822 = vpop.f32.mrb[0].mxu0
  %v823 = vadd.f32 %v662, %v822
  %v824 = vpop.f32.mrb[0].mxu0
  %825 = vmatprep.mubr.bf16.mxu0 0
  %826 = vmatmul.mubr.bf16.gmra.mrb[0].mxu0 %v510
  %v827 = vpop.f32.mrb[0].mxu0
  %v828 = vadd.f32 %v667, %v827
  %v829 = vpop.f32.mrb[0].mxu0
  %v830 = vpop.f32.mrb[0].mxu0
  %v831 = vadd.f32 %v670, %v830
  %v832 = vpop.f32.mrb[0].mxu0
  %833 = vdwg.mxu0
  %v834 = vmax.f32 %v708, %v724
  %v835 = vmax.f32 %v711, %v727
  %v836 = vmax.f32 %v716, %v732
  %v837 = vmax.f32 %v719, %v735
  %v838 = vmax.f32 %v772, %v788
  %v839 = vmax.f32 %v775, %v791
  %v840 = vmax.f32 %v780, %v796
  %v841 = vmax.f32 %v783, %v799
  %v842 = vmax.f32 %v740, %v756
  %v843 = vmax.f32 %v743, %v759
  %v844 = vmax.f32 %v748, %v764
  %v845 = vmax.f32 %v751, %v767
  %v846 = vmax.f32 %v804, %v820
  %v847 = vmax.f32 %v807, %v823
  %v848 = vmax.f32 %v812, %v828
  %v849 = vmax.f32 %v815, %v831
  %v850 = vmax.f32 %v834, %v842
  %v851 = vmax.f32 %v835, %v843
  %v852 = vmax.f32 %v836, %v844
  %v853 = vmax.f32 %v837, %v845
  %v854 = vmax.f32 %v838, %v846
  %v855 = vmax.f32 %v839, %v847
  %v856 = vmax.f32 %v840, %v848
  %v857 = vmax.f32 %v841, %v849
  %v858 = vld [vmem:[%s2] sm:$0x1]
  %v860 = vlaneseq
  %v861 = vshrl.u32 %v860, 7
  %v862 = vsub.s32 0, %v861
  %v863 = vrot.slane %v858, %v862
  %v865 = vadd.f32 %v850, %v863
  %v866 = vadd.f32 %v851, %v863
  %v867 = vadd.f32 %v852, %v863
  %v868 = vadd.f32 %v853, %v863
  %v869 = vadd.f32 %v854, %v863
  %v870 = vadd.f32 %v855, %v863
  %v871 = vadd.f32 %v856, %v863
  %v872 = vadd.f32 %v857, %v863
  %v873 = vmax.f32 %v865, 0.0
  %v874 = vmax.f32 %v866, 0.0
  %v875 = vmax.f32 %v867, 0.0
  %v876 = vmax.f32 %v868, 0.0
  %v877 = vmax.f32 %v869, 0.0
  %v878 = vmax.f32 %v870, 0.0
  %v879 = vmax.f32 %v871, 0.0
  %v880 = vmax.f32 %v872, 0.0
  %v881 = vpack.c.bf16 %v874, %v873
  %v882 = vpack.c.bf16 %v876, %v875
  %v883 = vpack.c.bf16 %v878, %v877
  %v884 = vpack.c.bf16 %v880, %v879
  %v889 = vunpack.c.l.b16 %v881
  %v890 = vunpack.c.h.b16 %v881
  %v891 = vunpack.c.l.b16 %v882
  %v892 = vunpack.c.h.b16 %v882
  %v893 = vunpack.c.l.b16 %v883
  %v894 = vunpack.c.h.b16 %v883
  %v895 = vunpack.c.l.b16 %v884
  %v896 = vunpack.c.h.b16 %v884
  %v897 = vpack.c.b16 %v889, %v889
  %v898 = vpack.c.b16 %v890, %v890
  %v899 = vpack.c.b16 %v891, %v891
  %v900 = vpack.c.b16 %v892, %v892
  %v901 = vpack.c.b16 %v893, %v893
  %v902 = vpack.c.b16 %v894, %v894
  %v903 = vpack.c.b16 %v895, %v895
  %v904 = vpack.c.b16 %v896, %v896
  %vm913 = vcmask 519168
  %914 = vst.msk [vmem:[%s3] sm:$0xf] %vm913, %v897
  %915 = vst.msk [vmem:[%s3 + $0x4] sm:$0xf] %vm913, %v898
  %916 = vst.msk [vmem:[%s3 + $0x8] sm:$0xf] %vm913, %v899
  %917 = vst.msk [vmem:[%s3 + $0xc] sm:$0xf] %vm913, %v900
  %918 = vst.msk [vmem:[%s3 + $0x10] sm:$0xf] %vm913, %v901
  %919 = vst.msk [vmem:[%s3 + $0x14] sm:$0xf] %vm913, %v902
  %920 = vst.msk [vmem:[%s3 + $0x18] sm:$0xf] %vm913, %v903
  %921 = vst.msk [vmem:[%s3 + $0x1c] sm:$0xf] %vm913, %v904
  // Predicated region
  $region14: #{forward.4} parent=0 // pred_check
    _
  $region15: #{forward.4} parent=0 // pred_check_branch
    %923 = sbr.rel (0) target = $region17
  $region16: #{forward.4} parent=0 // pred_region
    _
  $region17: #{forward.4} parent=0 // pred_fallthru
    _
  // Predicated region
  $region18: #{forward.4} parent=0 // pred_check
    _
  $region19: #{forward.4} parent=0 // pred_check_branch
    %925 = sbr.rel (0) target = $region21
  $region20: #{forward.4} parent=0 // pred_region
    _
  $region21: #{forward.4} parent=0 // pred_fallthru
    _

// kernel: forward.5
$region0: #{forward.5}
  #allocation0 [shape = 'u32[]', space=smem, size = 0x4, offset = 0x4, fixed_abs, tag = 'smem constant byte address 0x4 - core index']
  #allocation1 [shape = 'u32[144,128]{1,0:T(1,128)}', space=vmem, size = 0x12000, scoped, tag = 'internal scratch']
  %s0 = inlined_call_operand.vmem [shape: bf16[2,1600], index: 0, kind: input, shape index: {}]
  %s1 = inlined_call_operand.vmem [shape: bf16[1600,128], index: 1, kind: input, shape index: {}]
  %s2 = inlined_call_operand.vmem [shape: f32[1,128], index: 2, kind: input, shape index: {}]
  %s3 = inlined_call_operand.vmem [shape: f32[2,128], index: 3, kind: input, shape index: {}]
  %s4 = inlined_call_operand.vmem [shape: bf16[128,128], index: 4, kind: input, shape index: {}]
  %s5 = inlined_call_operand.vmem [shape: f32[1,128], index: 5, kind: input, shape index: {}]
  %s6 = inlined_call_operand.hbm [shape: f32[2,128], index: 6, kind: output, shape index: {}]
  %s7 = sld [smem:[#allocation0]]
  $region34: #{forward.5} parent=0
    _
  %s9 = ssub.s32 1, %s7
  %s10 = scalar_select 0, %s9, %s7
  $region1: #{forward.5} parent=0
    #allocation2 [shape = 'u8[1024]{0}', space=vmem, size = 0x400, scoped, tag = 'output window, operand 0, single buffered']
    #allocation3 [shape = 's32[1]{0}', space=sflag, size = 0x4, scoped, tag = 'scoped memory for forward.5']
    %11 = vsyncpa [#allocation3], 0
    // Predicated region
    $region2: #{forward.5} parent=1 // pred_check
      _
    $region3: #{forward.5} parent=1 // pred_check_branch
      %13 = sbr.rel (0) target = $region5
    $region4: #{forward.5} parent=1 // pred_region
      _
    $region5: #{forward.5} parent=1 // pred_fallthru
      _
    // Predicated region
    $region6: #{forward.5} parent=1 // pred_check
      _
    $region7: #{forward.5} parent=1 // pred_check_branch
      %15 = sbr.rel (0) target = $region9
    $region8: #{forward.5} parent=1 // pred_region
      _
    $region9: #{forward.5} parent=1 // pred_fallthru
      _
    // Predicated region
    $region10: #{forward.5} parent=1 // pred_check
      _
    $region11: #{forward.5} parent=1 // pred_check_branch
      %17 = sbr.rel (0) target = $region13
    $region12: #{forward.5} parent=1 // pred_region
      _
    $region13: #{forward.5} parent=1 // pred_fallthru
      _
    // Predicated region
    $region14: #{forward.5} parent=1 // pred_check
      _
    $region15: #{forward.5} parent=1 // pred_check_branch
      %19 = sbr.rel (0) target = $region17
    $region16: #{forward.5} parent=1 // pred_region
      _
    $region17: #{forward.5} parent=1 // pred_fallthru
      _
    // Predicated region
    $region18: #{forward.5} parent=1 // pred_check
      _
    $region19: #{forward.5} parent=1 // pred_check_branch
      %21 = sbr.rel (0) target = $region21
    $region20: #{forward.5} parent=1 // pred_region
      _
    $region21: #{forward.5} parent=1 // pred_fallthru
      _
    // Predicated region
    $region22: #{forward.5} parent=1 // pred_check
      _
    $region23: #{forward.5} parent=1 // pred_check_branch
      %23 = sbr.rel (0) target = $region25
    $region24: #{forward.5} parent=1 // pred_region
      _
    $region25: #{forward.5} parent=1 // pred_fallthru
      _
    %v25 = vld [vmem:[%s0] sm:$0xff]
    %v26 = vld [vmem:[%s0 + $0x8] sm:$0x1f]
    %v27 = vld [vmem:[%s1] sm:$0xf]
    %v28 = vld [vmem:[%s1 + $0x4] sm:$0xf]
    %v29 = vld [vmem:[%s1 + $0x8] sm:$0xf]
    %v30 = vld [vmem:[%s1 + $0xc] sm:$0xf]
    %v31 = vld [vmem:[%s1 + $0x10] sm:$0xf]
    %v32 = vld [vmem:[%s1 + $0x14] sm:$0xf]
    %v33 = vld [vmem:[%s1 + $0x18] sm:$0xf]
    %v34 = vld [vmem:[%s1 + $0x1c] sm:$0xf]
    %v35 = vld [vmem:[%s1 + $0x20] sm:$0xf]
    %v36 = vld [vmem:[%s1 + $0x24] sm:$0xf]
    %v37 = vld [vmem:[%s1 + $0x28] sm:$0xf]
    %v38 = vld [vmem:[%s1 + $0x2c] sm:$0xf]
    %v39 = vld [vmem:[%s1 + $0x30] sm:$0xf]
    %v40 = vld [vmem:[%s1 + $0x34] sm:$0xf]
    %v41 = vld [vmem:[%s1 + $0x38] sm:$0xf]
    %v42 = vld [vmem:[%s1 + $0x3c] sm:$0xf]
    %v43 = vld [vmem:[%s1 + $0x40] sm:$0xf]
    %v44 = vld [vmem:[%s1 + $0x44] sm:$0xf]
    %v45 = vld [vmem:[%s1 + $0x48] sm:$0xf]
    %v46 = vld [vmem:[%s1 + $0x4c] sm:$0xf]
    %v47 = vld [vmem:[%s1 + $0x50] sm:$0xf]
    %v48 = vld [vmem:[%s1 + $0x54] sm:$0xf]
    %v49 = vld [vmem:[%s1 + $0x58] sm:$0xf]
    %v50 = vld [vmem:[%s1 + $0x5c] sm:$0xf]
    %v51 = vld [vmem:[%s1 + $0x60] sm:$0xf]
    %v52 = vld [vmem:[%s1 + $0x64] sm:$0xf]
    %v53 = vld [vmem:[%s1 + $0x68] sm:$0xf]
    %v54 = vld [vmem:[%s1 + $0x6c] sm:$0xf]
    %v55 = vld [vmem:[%s1 + $0x70] sm:$0xf]
    %v56 = vld [vmem:[%s1 + $0x74] sm:$0xf]
    %v57 = vld [vmem:[%s1 + $0x78] sm:$0xf]
    %v58 = vld [vmem:[%s1 + $0x7c] sm:$0xf]
    %v59 = vld [vmem:[%s1 + $0x80] sm:$0xf]
    %v60 = vld [vmem:[%s1 + $0x84] sm:$0xf]
    %v61 = vld [vmem:[%s1 + $0x88] sm:$0xf]
    %v62 = vld [vmem:[%s1 + $0x8c] sm:$0xf]
    %v63 = vld [vmem:[%s1 + $0x90] sm:$0xf]
    %v64 = vld [vmem:[%s1 + $0x94] sm:$0xf]
    %v65 = vld [vmem:[%s1 + $0x98] sm:$0xf]
    %v66 = vld [vmem:[%s1 + $0x9c] sm:$0xf]
    %v67 = vld [vmem:[%s1 + $0xa0] sm:$0xf]
    %v68 = vld [vmem:[%s1 + $0xa4] sm:$0xf]
    %v69 = vld [vmem:[%s1 + $0xa8] sm:$0xf]
    %v70 = vld [vmem:[%s1 + $0xac] sm:$0xf]
    %v71 = vld [vmem:[%s1 + $0xb0] sm:$0xf]
    %v72 = vld [vmem:[%s1 + $0xb4] sm:$0xf]
    %v73 = vld [vmem:[%s1 + $0xb8] sm:$0xf]
    %v74 = vld [vmem:[%s1 + $0xbc] sm:$0xf]
    %v75 = vld [vmem:[%s1 + $0xc0] sm:$0xf]
    %v76 = vld [vmem:[%s1 + $0xc4] sm:$0xf]
    %v77 = vld [vmem:[%s1 + $0xc8] sm:$0xf]
    %v78 = vld [vmem:[%s1 + $0xcc] sm:$0xf]
    %v79 = vld [vmem:[%s1 + $0xd0] sm:$0xf]
    %v80 = vld [vmem:[%s1 + $0xd4] sm:$0xf]
    %v81 = vld [vmem:[%s1 + $0xd8] sm:$0xf]
    %v82 = vld [vmem:[%s1 + $0xdc] sm:$0xf]
    %v83 = vld [vmem:[%s1 + $0xe0] sm:$0xf]
    %v84 = vld [vmem:[%s1 + $0xe4] sm:$0xf]
    %v85 = vld [vmem:[%s1 + $0xe8] sm:$0xf]
    %v86 = vld [vmem:[%s1 + $0xec] sm:$0xf]
    %v87 = vld [vmem:[%s1 + $0xf0] sm:$0xf]
    %v88 = vld [vmem:[%s1 + $0xf4] sm:$0xf]
    %v89 = vld [vmem:[%s1 + $0xf8] sm:$0xf]
    %v90 = vld [vmem:[%s1 + $0xfc] sm:$0xf]
    %v91 = vld [vmem:[%s1 + $0x100] sm:$0xf]
    %v92 = vld [vmem:[%s1 + $0x104] sm:$0xf]
    %v93 = vld [vmem:[%s1 + $0x108] sm:$0xf]
    %v94 = vld [vmem:[%s1 + $0x10c] sm:$0xf]
    %v95 = vld [vmem:[%s1 + $0x110] sm:$0xf]
    %v96 = vld [vmem:[%s1 + $0x114] sm:$0xf]
    %v97 = vld [vmem:[%s1 + $0x118] sm:$0xf]
    %v98 = vld [vmem:[%s1 + $0x11c] sm:$0xf]
    %v99 = vld [vmem:[%s1 + $0x120] sm:$0xf]
    %v100 = vld [vmem:[%s1 + $0x124] sm:$0xf]
    %v101 = vld [vmem:[%s1 + $0x128] sm:$0xf]
    %v102 = vld [vmem:[%s1 + $0x12c] sm:$0xf]
    %v103 = vld [vmem:[%s1 + $0x130] sm:$0xf]
    %v104 = vld [vmem:[%s1 + $0x134] sm:$0xf]
    %v105 = vld [vmem:[%s1 + $0x138] sm:$0xf]
    %v106 = vld [vmem:[%s1 + $0x13c] sm:$0xf]
    %v107 = vld [vmem:[%s1 + $0x140] sm:$0xf]
    %v108 = vld [vmem:[%s1 + $0x144] sm:$0xf]
    %v109 = vld [vmem:[%s1 + $0x148] sm:$0xf]
    %v110 = vld [vmem:[%s1 + $0x14c] sm:$0xf]
    %v111 = vld [vmem:[%s1 + $0x150] sm:$0xf]
    %v112 = vld [vmem:[%s1 + $0x154] sm:$0xf]
    %v113 = vld [vmem:[%s1 + $0x158] sm:$0xf]
    %v114 = vld [vmem:[%s1 + $0x15c] sm:$0xf]
    %v115 = vld [vmem:[%s1 + $0x160] sm:$0xf]
    %v116 = vld [vmem:[%s1 + $0x164] sm:$0xf]
    %v117 = vld [vmem:[%s1 + $0x168] sm:$0xf]
    %v118 = vld [vmem:[%s1 + $0x16c] sm:$0xf]
    %v119 = vld [vmem:[%s1 + $0x170] sm:$0xf]
    %v120 = vld [vmem:[%s1 + $0x174] sm:$0xf]
    %v121 = vld [vmem:[%s1 + $0x178] sm:$0xf]
    %v122 = vld [vmem:[%s1 + $0x17c] sm:$0xf]
    %v123 = vld [vmem:[%s1 + $0x180] sm:$0xf]
    %v124 = vld [vmem:[%s1 + $0x184] sm:$0xf]
    %v125 = vld [vmem:[%s1 + $0x188] sm:$0xf]
    %v126 = vld [vmem:[%s1 + $0x18c] sm:$0xf]
    %v127 = vld [vmem:[%s1 + $0x190] sm:$0xf]
    %v128 = vld [vmem:[%s1 + $0x194] sm:$0xf]
    %v129 = vld [vmem:[%s1 + $0x198] sm:$0xf]
    %v130 = vld [vmem:[%s1 + $0x19c] sm:$0xf]
    %v131 = vld [vmem:[%s1 + $0x1a0] sm:$0xf]
    %v132 = vld [vmem:[%s1 + $0x1a4] sm:$0xf]
    %v133 = vld [vmem:[%s1 + $0x1a8] sm:$0xf]
    %v134 = vld [vmem:[%s1 + $0x1ac] sm:$0xf]
    %v135 = vld [vmem:[%s1 + $0x1b0] sm:$0xf]
    %v136 = vld [vmem:[%s1 + $0x1b4] sm:$0xf]
    %v137 = vld [vmem:[%s1 + $0x1b8] sm:$0xf]
    %v138 = vld [vmem:[%s1 + $0x1bc] sm:$0xf]
    %v139 = vld [vmem:[%s1 + $0x1c0] sm:$0xf]
    %v140 = vld [vmem:[%s1 + $0x1c4] sm:$0xf]
    %v141 = vld [vmem:[%s1 + $0x1c8] sm:$0xf]
    %v142 = vld [vmem:[%s1 + $0x1cc] sm:$0xf]
    %v143 = vld [vmem:[%s1 + $0x1d0] sm:$0xf]
    %v144 = vld [vmem:[%s1 + $0x1d4] sm:$0xf]
    %v145 = vld [vmem:[%s1 + $0x1d8] sm:$0xf]
    %v146 = vld [vmem:[%s1 + $0x1dc] sm:$0xf]
    %v147 = vld [vmem:[%s1 + $0x1e0] sm:$0xf]
    %v148 = vld [vmem:[%s1 + $0x1e4] sm:$0xf]
    %v149 = vld [vmem:[%s1 + $0x1e8] sm:$0xf]
    %v150 = vld [vmem:[%s1 + $0x1ec] sm:$0xf]
    %v151 = vld [vmem:[%s1 + $0x1f0] sm:$0xf]
    %v152 = vld [vmem:[%s1 + $0x1f4] sm:$0xf]
    %v153 = vld [vmem:[%s1 + $0x1f8] sm:$0xf]
    %v154 = vld [vmem:[%s1 + $0x1fc] sm:$0xf]
    %v155 = vld [vmem:[%s1 + $0x200] sm:$0xf]
    %v156 = vld [vmem:[%s1 + $0x204] sm:$0xf]
    %v157 = vld [vmem:[%s1 + $0x208] sm:$0xf]
    %v158 = vld [vmem:[%s1 + $0x20c] sm:$0xf]
    %v159 = vld [vmem:[%s1 + $0x210] sm:$0xf]
    %v160 = vld [vmem:[%s1 + $0x214] sm:$0xf]
    %v161 = vld [vmem:[%s1 + $0x218] sm:$0xf]
    %v162 = vld [vmem:[%s1 + $0x21c] sm:$0xf]
    %v163 = vld [vmem:[%s1 + $0x220] sm:$0xf]
    %v164 = vld [vmem:[%s1 + $0x224] sm:$0xf]
    %v165 = vld [vmem:[%s1 + $0x228] sm:$0xf]
    %v166 = vld [vmem:[%s1 + $0x22c] sm:$0xf]
    %v167 = vld [vmem:[%s1 + $0x230] sm:$0xf]
    %v168 = vld [vmem:[%s1 + $0x234] sm:$0xf]
    %v169 = vld [vmem:[%s1 + $0x238] sm:$0xf]
    %v170 = vld [vmem:[%s1 + $0x23c] sm:$0xf]
    %v171 = vld [vmem:[%s1 + $0x240] sm:$0xf]
    %v172 = vld [vmem:[%s1 + $0x244] sm:$0xf]
    %v173 = vld [vmem:[%s1 + $0x248] sm:$0xf]
    %v174 = vld [vmem:[%s1 + $0x24c] sm:$0xf]
    %v175 = vld [vmem:[%s1 + $0x250] sm:$0xf]
    %v176 = vld [vmem:[%s1 + $0x254] sm:$0xf]
    %v177 = vld [vmem:[%s1 + $0x258] sm:$0xf]
    %v178 = vld [vmem:[%s1 + $0x25c] sm:$0xf]
    %v179 = vld [vmem:[%s1 + $0x260] sm:$0xf]
    %v180 = vld [vmem:[%s1 + $0x264] sm:$0xf]
    %v181 = vld [vmem:[%s1 + $0x268] sm:$0xf]
    %v182 = vld [vmem:[%s1 + $0x26c] sm:$0xf]
    %v183 = vld [vmem:[%s1 + $0x270] sm:$0xf]
    %v184 = vld [vmem:[%s1 + $0x274] sm:$0xf]
    %v185 = vld [vmem:[%s1 + $0x278] sm:$0xf]
    %v186 = vld [vmem:[%s1 + $0x27c] sm:$0xf]
    %v187 = vld [vmem:[%s1 + $0x280] sm:$0xf]
    %v188 = vld [vmem:[%s1 + $0x284] sm:$0xf]
    %v189 = vld [vmem:[%s1 + $0x288] sm:$0xf]
    %v190 = vld [vmem:[%s1 + $0x28c] sm:$0xf]
    %v191 = vld [vmem:[%s1 + $0x290] sm:$0xf]
    %v192 = vld [vmem:[%s1 + $0x294] sm:$0xf]
    %v193 = vld [vmem:[%s1 + $0x298] sm:$0xf]
    %v194 = vld [vmem:[%s1 + $0x29c] sm:$0xf]
    %v195 = vld [vmem:[%s1 + $0x2a0] sm:$0xf]
    %v196 = vld [vmem:[%s1 + $0x2a4] sm:$0xf]
    %v197 = vld [vmem:[%s1 + $0x2a8] sm:$0xf]
    %v198 = vld [vmem:[%s1 + $0x2ac] sm:$0xf]
    %v199 = vld [vmem:[%s1 + $0x2b0] sm:$0xf]
    %v200 = vld [vmem:[%s1 + $0x2b4] sm:$0xf]
    %v201 = vld [vmem:[%s1 + $0x2b8] sm:$0xf]
    %v202 = vld [vmem:[%s1 + $0x2bc] sm:$0xf]
    %v203 = vld [vmem:[%s1 + $0x2c0] sm:$0xf]
    %v204 = vld [vmem:[%s1 + $0x2c4] sm:$0xf]
    %v205 = vld [vmem:[%s1 + $0x2c8] sm:$0xf]
    %v206 = vld [vmem:[%s1 + $0x2cc] sm:$0xf]
    %v207 = vld [vmem:[%s1 + $0x2d0] sm:$0xf]
    %v208 = vld [vmem:[%s1 + $0x2d4] sm:$0xf]
    %v209 = vld [vmem:[%s1 + $0x2d8] sm:$0xf]
    %v210 = vld [vmem:[%s1 + $0x2dc] sm:$0xf]
    %v211 = vld [vmem:[%s1 + $0x2e0] sm:$0xf]
    %v212 = vld [vmem:[%s1 + $0x2e4] sm:$0xf]
    %v213 = vld [vmem:[%s1 + $0x2e8] sm:$0xf]
    %v214 = vld [vmem:[%s1 + $0x2ec] sm:$0xf]
    %v215 = vld [vmem:[%s1 + $0x2f0] sm:$0xf]
    %v216 = vld [vmem:[%s1 + $0x2f4] sm:$0xf]
    %v217 = vld [vmem:[%s1 + $0x2f8] sm:$0xf]
    %v218 = vld [vmem:[%s1 + $0x2fc] sm:$0xf]
    %v219 = vld [vmem:[%s1 + $0x300] sm:$0xf]
    %v220 = vld [vmem:[%s1 + $0x304] sm:$0xf]
    %v221 = vld [vmem:[%s1 + $0x308] sm:$0xf]
    %v222 = vld [vmem:[%s1 + $0x30c] sm:$0xf]
    %v223 = vld [vmem:[%s1 + $0x310] sm:$0xf]
    %v224 = vld [vmem:[%s1 + $0x314] sm:$0xf]
    %v225 = vld [vmem:[%s1 + $0x318] sm:$0xf]
    %v226 = vld [vmem:[%s1 + $0x31c] sm:$0xf]
    %v227 = vld [vmem:[%s2] sm:$0x1]
    %v229 = vlaneseq
    %v230 = vshrl.u32 %v229, 7
    %v231 = vsub.s32 0, %v230
    %v232 = vrot.slane %v227, %v231
    %v236 = vcombine.high %v25, %v25
    %v238 = vunpack.c.l.s4 1966171168
    %v239 = vunpack.c.0.s8 %v238
    %v240 = vlaneseq
    %v241 = vshrl.u32 %v240, 7
    %v242 = vsub.s32 %v239, %v241
    %v243 = vrot.slane %v25, %v242
    %v245 = vunpack.c.l.s4 1966171168
    %v246 = vunpack.c.0.s8 %v245
    %v247 = vlaneseq
    %v248 = vshrl.u32 %v247, 7
    %v249 = vsub.s32 %v246, %v248
    %v250 = vrot.slane %v236, %v249
    %v251 = vcombine.high %v243, %v243
    %v252 = vcombine.high %v250, %v250
    %v254 = vunpack.c.l.s4 1966171168
    %v255 = vunpack.c.0.s8 %v254
    %v256 = vlaneseq
    %v257 = vshrl.u32 %v256, 7
    %v258 = vsub.s32 %v255, %v257
    %v259 = vrot.slane %v243, %v258
    %v261 = vunpack.c.l.s4 1966171168
    %v262 = vunpack.c.0.s8 %v261
    %v263 = vlaneseq
    %v264 = vshrl.u32 %v263, 7
    %v265 = vsub.s32 %v262, %v264
    %v266 = vrot.slane %v250, %v265
    %v268 = vunpack.c.l.s4 1966171168
    %v269 = vunpack.c.0.s8 %v268
    %v270 = vlaneseq
    %v271 = vshrl.u32 %v270, 7
    %v272 = vsub.s32 %v269, %v271
    %v273 = vrot.slane %v251, %v272
    %v275 = vunpack.c.l.s4 1966171168
    %v276 = vunpack.c.0.s8 %v275
    %v277 = vlaneseq
    %v278 = vshrl.u32 %v277, 7
    %v279 = vsub.s32 %v276, %v278
    %v280 = vrot.slane %v252, %v279
    %v281 = vcombine.high %v259, %v259
    %v282 = vcombine.high %v266, %v266
    %v283 = vcombine.high %v273, %v273
    %v284 = vcombine.high %v280, %v280
    %v285 = vcombine.high %v26, %v26
    %v287 = vunpack.c.l.s4 1966171168
    %v288 = vunpack.c.0.s8 %v287
    %v289 = vlaneseq
    %v290 = vshrl.u32 %v289, 7
    %v291 = vsub.s32 %v288, %v290
    %v292 = vrot.slane %v26, %v291
    %v294 = vunpack.c.l.s4 1966171168
    %v295 = vunpack.c.0.s8 %v294
    %v296 = vlaneseq
    %v297 = vshrl.u32 %v296, 7
    %v298 = vsub.s32 %v295, %v297
    %v299 = vrot.slane %v285, %v298
    %v300 = vcombine.high %v292, %v292
    %v302 = vunpack.c.l.s4 1966171168
    %v303 = vunpack.c.0.s8 %v302
    %v304 = vlaneseq
    %v305 = vshrl.u32 %v304, 7
    %v306 = vsub.s32 %v303, %v305
    %v307 = vrot.slane %v292, %v306
    %v309 = vunpack.c.l.s4 1966171168
    %v310 = vunpack.c.0.s8 %v309
    %v311 = vlaneseq
    %v312 = vshrl.u32 %v311, 7
    %v313 = vsub.s32 %v310, %v312
    %v314 = vrot.slane %v299, %v313
    %v316 = vunpack.c.l.s4 1966171168
    %v317 = vunpack.c.0.s8 %v316
    %v318 = vlaneseq
    %v319 = vshrl.u32 %v318, 7
    %v320 = vsub.s32 %v317, %v319
    %v321 = vrot.slane %v300, %v320
    %v322 = vcombine.high %v307, %v307
    %v323 = vcombine.high %v321, %v321
    %v536 = vunpack.c.l.b16 %v27
    %v537 = vunpack.c.l.b16 %v28
    %v538 = vunpack.c.l.b16 %v29
    %v539 = vunpack.c.l.b16 %v30
    %v540 = vunpack.c.l.b16 %v31
    %v541 = vunpack.c.l.b16 %v32
    %v542 = vunpack.c.l.b16 %v33
    %v543 = vunpack.c.l.b16 %v34
    %v544 = vunpack.c.l.b16 %v35
    %v545 = vunpack.c.l.b16 %v36
    %v546 = vunpack.c.l.b16 %v37
    %v547 = vunpack.c.l.b16 %v38
    %v548 = vunpack.c.l.b16 %v39
    %v549 = vunpack.c.l.b16 %v40
    %v550 = vunpack.c.l.b16 %v41
    %v551 = vunpack.c.l.b16 %v42
    %v552 = vunpack.c.l.b16 %v43
    %v553 = vunpack.c.l.b16 %v44
    %v554 = vunpack.c.l.b16 %v45
    %v555 = vunpack.c.l.b16 %v46
    %v556 = vunpack.c.l.b16 %v47
    %v557 = vunpack.c.l.b16 %v48
    %v558 = vunpack.c.l.b16 %v49
    %v559 = vunpack.c.l.b16 %v50
    %v560 = vunpack.c.l.b16 %v51
    %v561 = vunpack.c.l.b16 %v52
    %v562 = vunpack.c.l.b16 %v53
    %v563 = vunpack.c.l.b16 %v54
    %v564 = vunpack.c.l.b16 %v55
    %v565 = vunpack.c.l.b16 %v56
    %v566 = vunpack.c.l.b16 %v57
    %v567 = vunpack.c.l.b16 %v58
    %v568 = vunpack.c.l.b16 %v59
    %v569 = vunpack.c.l.b16 %v60
    %v570 = vunpack.c.l.b16 %v61
    %v571 = vunpack.c.l.b16 %v62
    %v572 = vunpack.c.l.b16 %v63
    %v573 = vunpack.c.l.b16 %v64
    %v574 = vunpack.c.l.b16 %v65
    %v575 = vunpack.c.l.b16 %v66
    %v576 = vunpack.c.l.b16 %v67
    %v577 = vunpack.c.l.b16 %v68
    %v578 = vunpack.c.l.b16 %v69
    %v579 = vunpack.c.l.b16 %v70
    %v580 = vunpack.c.l.b16 %v71
    %v581 = vunpack.c.l.b16 %v72
    %v582 = vunpack.c.l.b16 %v73
    %v583 = vunpack.c.l.b16 %v74
    %v584 = vunpack.c.l.b16 %v75
    %v585 = vunpack.c.l.b16 %v76
    %v586 = vunpack.c.l.b16 %v77
    %v587 = vunpack.c.l.b16 %v78
    %v588 = vunpack.c.l.b16 %v79
    %v589 = vunpack.c.l.b16 %v80
    %v590 = vunpack.c.l.b16 %v81
    %v591 = vunpack.c.l.b16 %v82
    %v592 = vunpack.c.l.b16 %v83
    %v593 = vunpack.c.l.b16 %v84
    %v594 = vunpack.c.l.b16 %v85
    %v595 = vunpack.c.l.b16 %v86
    %v596 = vunpack.c.l.b16 %v87
    %v597 = vunpack.c.l.b16 %v88
    %v598 = vunpack.c.l.b16 %v89
    %v599 = vunpack.c.l.b16 %v90
    %v600 = vunpack.c.l.b16 %v91
    %v601 = vunpack.c.l.b16 %v92
    %v602 = vunpack.c.l.b16 %v93
    %v603 = vunpack.c.l.b16 %v94
    %v604 = vunpack.c.l.b16 %v95
    %v605 = vunpack.c.l.b16 %v96
    %v606 = vunpack.c.l.b16 %v97
    %v607 = vunpack.c.l.b16 %v98
    %v608 = vunpack.c.l.b16 %v99
    %v609 = vunpack.c.l.b16 %v100
    %v610 = vunpack.c.l.b16 %v101
    %v611 = vunpack.c.l.b16 %v102
    %v612 = vunpack.c.l.b16 %v103
    %v613 = vunpack.c.l.b16 %v104
    %v614 = vunpack.c.l.b16 %v105
    %v615 = vunpack.c.l.b16 %v106
    %v616 = vunpack.c.l.b16 %v107
    %v617 = vunpack.c.l.b16 %v108
    %v618 = vunpack.c.l.b16 %v109
    %v619 = vunpack.c.l.b16 %v110
    %v620 = vunpack.c.l.b16 %v111
    %v621 = vunpack.c.l.b16 %v112
    %v622 = vunpack.c.l.b16 %v113
    %v623 = vunpack.c.l.b16 %v114
    %v624 = vunpack.c.l.b16 %v115
    %v625 = vunpack.c.l.b16 %v116
    %v626 = vunpack.c.l.b16 %v117
    %v627 = vunpack.c.l.b16 %v118
    %v628 = vunpack.c.l.b16 %v119
    %v629 = vunpack.c.l.b16 %v120
    %v630 = vunpack.c.l.b16 %v121
    %v631 = vunpack.c.l.b16 %v122
    %v632 = vunpack.c.l.b16 %v123
    %v633 = vunpack.c.l.b16 %v124
    %v634 = vunpack.c.l.b16 %v125
    %v635 = vunpack.c.l.b16 %v126
    %v636 = vunpack.c.l.b16 %v127
    %v637 = vunpack.c.l.b16 %v128
    %v638 = vunpack.c.l.b16 %v129
    %v639 = vunpack.c.l.b16 %v130
    %v640 = vunpack.c.l.b16 %v131
    %v641 = vunpack.c.l.b16 %v132
    %v642 = vunpack.c.l.b16 %v133
    %v643 = vunpack.c.l.b16 %v134
    %v644 = vunpack.c.l.b16 %v135
    %v645 = vunpack.c.l.b16 %v136
    %v646 = vunpack.c.l.b16 %v137
    %v647 = vunpack.c.l.b16 %v138
    %v648 = vunpack.c.l.b16 %v139
    %v649 = vunpack.c.l.b16 %v140
    %v650 = vunpack.c.l.b16 %v141
    %v651 = vunpack.c.l.b16 %v142
    %v652 = vunpack.c.l.b16 %v143
    %v653 = vunpack.c.l.b16 %v144
    %v654 = vunpack.c.l.b16 %v145
    %v655 = vunpack.c.l.b16 %v146
    %v656 = vunpack.c.l.b16 %v147
    %v657 = vunpack.c.l.b16 %v148
    %v658 = vunpack.c.l.b16 %v149
    %v659 = vunpack.c.l.b16 %v150
    %v660 = vunpack.c.l.b16 %v151
    %v661 = vunpack.c.l.b16 %v152
    %v662 = vunpack.c.l.b16 %v153
    %v663 = vunpack.c.l.b16 %v154
    %v664 = vunpack.c.l.b16 %v155
    %v665 = vunpack.c.l.b16 %v156
    %v666 = vunpack.c.l.b16 %v157
    %v667 = vunpack.c.l.b16 %v158
    %v668 = vunpack.c.l.b16 %v159
    %v669 = vunpack.c.l.b16 %v160
    %v670 = vunpack.c.l.b16 %v161
    %v671 = vunpack.c.l.b16 %v162
    %v672 = vunpack.c.l.b16 %v163
    %v673 = vunpack.c.l.b16 %v164
    %v674 = vunpack.c.l.b16 %v165
    %v675 = vunpack.c.l.b16 %v166
    %v676 = vunpack.c.l.b16 %v167
    %v677 = vunpack.c.l.b16 %v168
    %v678 = vunpack.c.l.b16 %v169
    %v679 = vunpack.c.l.b16 %v170
    %v680 = vunpack.c.l.b16 %v171
    %v681 = vunpack.c.l.b16 %v172
    %v682 = vunpack.c.l.b16 %v173
    %v683 = vunpack.c.l.b16 %v174
    %v684 = vunpack.c.l.b16 %v175
    %v685 = vunpack.c.l.b16 %v176
    %v686 = vunpack.c.l.b16 %v177
    %v687 = vunpack.c.l.b16 %v178
    %v688 = vunpack.c.l.b16 %v179
    %v689 = vunpack.c.l.b16 %v180
    %v690 = vunpack.c.l.b16 %v181
    %v691 = vunpack.c.l.b16 %v182
    %v692 = vunpack.c.l.b16 %v183
    %v693 = vunpack.c.l.b16 %v184
    %v694 = vunpack.c.l.b16 %v185
    %v695 = vunpack.c.l.b16 %v186
    %v696 = vunpack.c.l.b16 %v187
    %v697 = vunpack.c.l.b16 %v188
    %v698 = vunpack.c.l.b16 %v189
    %v699 = vunpack.c.l.b16 %v190
    %v700 = vunpack.c.l.b16 %v191
    %v701 = vunpack.c.l.b16 %v192
    %v702 = vunpack.c.l.b16 %v193
    %v703 = vunpack.c.l.b16 %v194
    %v704 = vunpack.c.l.b16 %v195
    %v705 = vunpack.c.l.b16 %v196
    %v706 = vunpack.c.l.b16 %v197
    %v707 = vunpack.c.l.b16 %v198
    %v708 = vunpack.c.l.b16 %v199
    %v709 = vunpack.c.l.b16 %v200
    %v710 = vunpack.c.l.b16 %v201
    %v711 = vunpack.c.l.b16 %v202
    %v712 = vunpack.c.l.b16 %v203
    %v713 = vunpack.c.l.b16 %v204
    %v714 = vunpack.c.l.b16 %v205
    %v715 = vunpack.c.l.b16 %v206
    %v716 = vunpack.c.l.b16 %v207
    %v717 = vunpack.c.l.b16 %v208
    %v718 = vunpack.c.l.b16 %v209
    %v719 = vunpack.c.l.b16 %v210
    %v720 = vunpack.c.l.b16 %v211
    %v721 = vunpack.c.l.b16 %v212
    %v722 = vunpack.c.l.b16 %v213
    %v723 = vunpack.c.l.b16 %v214
    %v724 = vunpack.c.l.b16 %v215
    %v725 = vunpack.c.l.b16 %v216
    %v726 = vunpack.c.l.b16 %v217
    %v727 = vunpack.c.l.b16 %v218
    %v728 = vunpack.c.l.b16 %v219
    %v729 = vunpack.c.l.b16 %v220
    %v730 = vunpack.c.l.b16 %v221
    %v731 = vunpack.c.l.b16 %v222
    %v732 = vunpack.c.l.b16 %v223
    %v733 = vunpack.c.l.b16 %v224
    %v734 = vunpack.c.l.b16 %v225
    %v735 = vunpack.c.l.b16 %v226
    %v736 = vpack.c.b16 %v537, %v536
    %v737 = vpack.c.b16 %v539, %v538
    %v738 = vpack.c.b16 %v541, %v540
    %v739 = vpack.c.b16 %v543, %v542
    %v740 = vpack.c.b16 %v545, %v544
    %v741 = vpack.c.b16 %v547, %v546
    %v742 = vpack.c.b16 %v549, %v548
    %v743 = vpack.c.b16 %v551, %v550
    %v744 = vpack.c.b16 %v553, %v552
    %v745 = vpack.c.b16 %v555, %v554
    %v746 = vpack.c.b16 %v557, %v556
    %v747 = vpack.c.b16 %v559, %v558
    %v748 = vpack.c.b16 %v561, %v560
    %v749 = vpack.c.b16 %v563, %v562
    %v750 = vpack.c.b16 %v565, %v564
    %v751 = vpack.c.b16 %v567, %v566
    %v752 = vpack.c.b16 %v569, %v568
    %v753 = vpack.c.b16 %v571, %v570
    %v754 = vpack.c.b16 %v573, %v572
    %v755 = vpack.c.b16 %v575, %v574
    %v756 = vpack.c.b16 %v577, %v576
    %v757 = vpack.c.b16 %v579, %v578
    %v758 = vpack.c.b16 %v581, %v580
    %v759 = vpack.c.b16 %v583, %v582
    %v760 = vpack.c.b16 %v585, %v584
    %v761 = vpack.c.b16 %v587, %v586
    %v762 = vpack.c.b16 %v589, %v588
    %v763 = vpack.c.b16 %v591, %v590
    %v764 = vpack.c.b16 %v593, %v592
    %v765 = vpack.c.b16 %v595, %v594
    %v766 = vpack.c.b16 %v597, %v596
    %v767 = vpack.c.b16 %v599, %v598
    %v768 = vpack.c.b16 %v601, %v600
    %v769 = vpack.c.b16 %v603, %v602
    %v770 = vpack.c.b16 %v605, %v604
    %v771 = vpack.c.b16 %v607, %v606
    %v772 = vpack.c.b16 %v609, %v608
    %v773 = vpack.c.b16 %v611, %v610
    %v774 = vpack.c.b16 %v613, %v612
    %v775 = vpack.c.b16 %v615, %v614
    %v776 = vpack.c.b16 %v617, %v616
    %v777 = vpack.c.b16 %v619, %v618
    %v778 = vpack.c.b16 %v621, %v620
    %v779 = vpack.c.b16 %v623, %v622
    %v780 = vpack.c.b16 %v625, %v624
    %v781 = vpack.c.b16 %v627, %v626
    %v782 = vpack.c.b16 %v629, %v628
    %v783 = vpack.c.b16 %v631, %v630
    %v784 = vpack.c.b16 %v633, %v632
    %v785 = vpack.c.b16 %v635, %v634
    %v786 = vpack.c.b16 %v637, %v636
    %v787 = vpack.c.b16 %v639, %v638
    %v788 = vpack.c.b16 %v641, %v640
    %v789 = vpack.c.b16 %v643, %v642
    %v790 = vpack.c.b16 %v645, %v644
    %v791 = vpack.c.b16 %v647, %v646
    %v792 = vpack.c.b16 %v649, %v648
    %v793 = vpack.c.b16 %v651, %v650
    %v794 = vpack.c.b16 %v653, %v652
    %v795 = vpack.c.b16 %v655, %v654
    %v796 = vpack.c.b16 %v657, %v656
    %v797 = vpack.c.b16 %v659, %v658
    %v798 = vpack.c.b16 %v661, %v660
    %v799 = vpack.c.b16 %v663, %v662
    %v800 = vpack.c.b16 %v665, %v664
    %v801 = vpack.c.b16 %v667, %v666
    %v802 = vpack.c.b16 %v669, %v668
    %v803 = vpack.c.b16 %v671, %v670
    %v804 = vpack.c.b16 %v673, %v672
    %v805 = vpack.c.b16 %v675, %v674
    %v806 = vpack.c.b16 %v677, %v676
    %v807 = vpack.c.b16 %v679, %v678
    %v808 = vpack.c.b16 %v681, %v680
    %v809 = vpack.c.b16 %v683, %v682
    %v810 = vpack.c.b16 %v685, %v684
    %v811 = vpack.c.b16 %v687, %v686
    %v812 = vpack.c.b16 %v689, %v688
    %v813 = vpack.c.b16 %v691, %v690
    %v814 = vpack.c.b16 %v693, %v692
    %v815 = vpack.c.b16 %v695, %v694
    %v816 = vpack.c.b16 %v697, %v696
    %v817 = vpack.c.b16 %v699, %v698
    %v818 = vpack.c.b16 %v701, %v700
    %v819 = vpack.c.b16 %v703, %v702
    %v820 = vpack.c.b16 %v705, %v704
    %v821 = vpack.c.b16 %v707, %v706
    %v822 = vpack.c.b16 %v709, %v708
    %v823 = vpack.c.b16 %v711, %v710
    %v824 = vpack.c.b16 %v713, %v712
    %v825 = vpack.c.b16 %v715, %v714
    %v826 = vpack.c.b16 %v717, %v716
    %v827 = vpack.c.b16 %v719, %v718
    %v828 = vpack.c.b16 %v721, %v720
    %v829 = vpack.c.b16 %v723, %v722
    %v830 = vpack.c.b16 %v725, %v724
    %v831 = vpack.c.b16 %v727, %v726
    %v832 = vpack.c.b16 %v729, %v728
    %v833 = vpack.c.b16 %v731, %v730
    %v834 = vpack.c.b16 %v733, %v732
    %v835 = vpack.c.b16 %v735, %v734
    %vm936 = vcmask 523264
    %v938 = vsel %vm936, %v314, 0
    %940 = vmatprep.subr.bf16.mxu0 0
    %941 = vmatpush1.bf16.msra.mxu0 %v736
    %942 = vmatprep.subr.bf16.mxu0 0
    %943 = vmatpush1.bf16.msra.mxu0 %v737
    %944 = vmatprep.subr.bf16.mxu0 0
    %945 = vmatpush1.bf16.msra.mxu0 %v738
    %946 = vmatprep.subr.bf16.mxu0 0
    %947 = vmatpush1.bf16.msra.mxu0 %v739
    %948 = vmatprep.subr.bf16.mxu0 0
    %949 = vmatpush1.bf16.msra.mxu0 %v740
    %950 = vmatprep.subr.bf16.mxu0 0
    %951 = vmatpush1.bf16.msra.mxu0 %v741
    %952 = vmatprep.subr.bf16.mxu0 0
    %953 = vmatpush1.bf16.msra.mxu0 %v742
    %954 = vmatprep.subr.bf16.mxu0 0
    %955 = vmatpush1.bf16.msra.mxu0 %v743
    %956 = vmatprep.subr.bf16.mxu0 0
    %957 = vmatpush1.bf16.msra.mxu0 %v744
    %958 = vmatprep.subr.bf16.mxu0 0
    %959 = vmatpush1.bf16.msra.mxu0 %v745
    %960 = vmatprep.subr.bf16.mxu0 0
    %961 = vmatpush1.bf16.msra.mxu0 %v746
    %962 = vmatprep.subr.bf16.mxu0 0
    %963 = vmatpush1.bf16.msra.mxu0 %v747
    %964 = vmatprep.subr.bf16.mxu0 0
    %965 = vmatpush1.bf16.msra.mxu0 %v748
    %966 = vmatprep.subr.bf16.mxu0 0
    %967 = vmatpush1.bf16.msra.mxu0 %v749
    %968 = vmatprep.subr.bf16.mxu0 0
    %969 = vmatpush1.bf16.msra.mxu0 %v750
    %970 = vmatprep.subr.bf16.mxu0 0
    %971 = vmatpush1.bf16.msra.mxu0 %v751
    %972 = vmatprep.mubr.bf16.mxu0 %v273
    %973 = vmatmul.mubr.bf16.gmra.mrb[0].mxu0 %v259
    %v974 = vpop.f32.mrb[0].mxu0
    %v975 = vadd.f32 %v232, %v974
    %v976 = vpop.f32.mrb[0].mxu0
    %v977 = vpop.f32.mrb[0].mxu0
    %v978 = vpop.f32.mrb[0].mxu0
    %979 = vdwg.mxu0
    %980 = vmatprep.subr.bf16.mxu0 0
    %981 = vmatpush1.bf16.msra.mxu0 %v752
    %982 = vmatprep.subr.bf16.mxu0 0
    %983 = vmatpush1.bf16.msra.mxu0 %v753
    %984 = vmatprep.subr.bf16.mxu0 0
    %985 = vmatpush1.bf16.msra.mxu0 %v754
    %986 = vmatprep.subr.bf16.mxu0 0
    %987 = vmatpush1.bf16.msra.mxu0 %v755
    %988 = vmatprep.subr.bf16.mxu0 0
    %989 = vmatpush1.bf16.msra.mxu0 %v756
    %990 = vmatprep.subr.bf16.mxu0 0
    %991 = vmatpush1.bf16.msra.mxu0 %v757
    %992 = vmatprep.subr.bf16.mxu0 0
    %993 = vmatpush1.bf16.msra.mxu0 %v758
    %994 = vmatprep.subr.bf16.mxu0 0
    %995 = vmatpush1.bf16.msra.mxu0 %v759
    %996 = vmatprep.subr.bf16.mxu0 0
    %997 = vmatpush1.bf16.msra.mxu0 %v760
    %998 = vmatprep.subr.bf16.mxu0 0
    %999 = vmatpush1.bf16.msra.mxu0 %v761
    %1000 = vmatprep.subr.bf16.mxu0 0
    %1001 = vmatpush1.bf16.msra.mxu0 %v762
    %1002 = vmatprep.subr.bf16.mxu0 0
    %1003 = vmatpush1.bf16.msra.mxu0 %v763
    %1004 = vmatprep.subr.bf16.mxu0 0
    %1005 = vmatpush1.bf16.msra.mxu0 %v764
    %1006 = vmatprep.subr.bf16.mxu0 0
    %1007 = vmatpush1.bf16.msra.mxu0 %v765
    %1008 = vmatprep.subr.bf16.mxu0 0
    %1009 = vmatpush1.bf16.msra.mxu0 %v766
    %1010 = vmatprep.subr.bf16.mxu0 0
    %1011 = vmatpush1.bf16.msra.mxu0 %v767
    %1012 = vmatprep.mubr.bf16.mxu0 %v283
    %1013 = vmatmul.mubr.bf16.gmra.mrb[0].mxu0 %v281
    %v1014 = vpop.f32.mrb[0].mxu0
    %v1015 = vadd.f32 %v975, %v1014
    %v1016 = vpop.f32.mrb[0].mxu0
    %v1017 = vpop.f32.mrb[0].mxu0
    %v1018 = vpop.f32.mrb[0].mxu0
    %1019 = vdwg.mxu0
    %1020 = vmatprep.subr.bf16.mxu0 0
    %1021 = vmatpush1.bf16.msra.mxu0 %v768
    %1022 = vmatprep.subr.bf16.mxu0 0
    %1023 = vmatpush1.bf16.msra.mxu0 %v769
    %1024 = vmatprep.subr.bf16.mxu0 0
    %1025 = vmatpush1.bf16.msra.mxu0 %v770
    %1026 = vmatprep.subr.bf16.mxu0 0
    %1027 = vmatpush1.bf16.msra.mxu0 %v771
    %1028 = vmatprep.subr.bf16.mxu0 0
    %1029 = vmatpush1.bf16.msra.mxu0 %v772
    %1030 = vmatprep.subr.bf16.mxu0 0
    %1031 = vmatpush1.bf16.msra.mxu0 %v773
    %1032 = vmatprep.subr.bf16.mxu0 0
    %1033 = vmatpush1.bf16.msra.mxu0 %v774
    %1034 = vmatprep.subr.bf16.mxu0 0
    %1035 = vmatpush1.bf16.msra.mxu0 %v775
    %1036 = vmatprep.subr.bf16.mxu0 0
    %1037 = vmatpush1.bf16.msra.mxu0 %v776
    %1038 = vmatprep.subr.bf16.mxu0 0
    %1039 = vmatpush1.bf16.msra.mxu0 %v777
    %1040 = vmatprep.subr.bf16.mxu0 0
    %1041 = vmatpush1.bf16.msra.mxu0 %v778
    %1042 = vmatprep.subr.bf16.mxu0 0
    %1043 = vmatpush1.bf16.msra.mxu0 %v779
    %1044 = vmatprep.subr.bf16.mxu0 0
    %1045 = vmatpush1.bf16.msra.mxu0 %v780
    %1046 = vmatprep.subr.bf16.mxu0 0
    %1047 = vmatpush1.bf16.msra.mxu0 %v781
    %1048 = vmatprep.subr.bf16.mxu0 0
    %1049 = vmatpush1.bf16.msra.mxu0 %v782
    %1050 = vmatprep.subr.bf16.mxu0 0
    %1051 = vmatpush1.bf16.msra.mxu0 %v783
    %1052 = vmatprep.mubr.bf16.mxu0 %v280
    %1053 = vmatmul.mubr.bf16.gmra.mrb[0].mxu0 %v266
    %v1054 = vpop.f32.mrb[0].mxu0
    %v1055 = vadd.f32 %v1015, %v1054
    %v1056 = vpop.f32.mrb[0].mxu0
    %v1057 = vpop.f32.mrb[0].mxu0
    %v1058 = vpop.f32.mrb[0].mxu0
    %1059 = vdwg.mxu0
    %1060 = vmatprep.subr.bf16.mxu0 0
    %1061 = vmatpush1.bf16.msra.mxu0 %v784
    %1062 = vmatprep.subr.bf16.mxu0 0
    %1063 = vmatpush1.bf16.msra.mxu0 %v785
    %1064 = vmatprep.subr.bf16.mxu0 0
    %1065 = vmatpush1.bf16.msra.mxu0 %v786
    %1066 = vmatprep.subr.bf16.mxu0 0
    %1067 = vmatpush1.bf16.msra.mxu0 %v787
    %1068 = vmatprep.subr.bf16.mxu0 0
    %1069 = vmatpush1.bf16.msra.mxu0 %v788
    %1070 = vmatprep.subr.bf16.mxu0 0
    %1071 = vmatpush1.bf16.msra.mxu0 %v789
    %1072 = vmatprep.subr.bf16.mxu0 0
    %1073 = vmatpush1.bf16.msra.mxu0 %v790
    %1074 = vmatprep.subr.bf16.mxu0 0
    %1075 = vmatpush1.bf16.msra.mxu0 %v791
    %1076 = vmatprep.subr.bf16.mxu0 0
    %1077 = vmatpush1.bf16.msra.mxu0 %v792
    %1078 = vmatprep.subr.bf16.mxu0 0
    %1079 = vmatpush1.bf16.msra.mxu0 %v793
    %1080 = vmatprep.subr.bf16.mxu0 0
    %1081 = vmatpush1.bf16.msra.mxu0 %v794
    %1082 = vmatprep.subr.bf16.mxu0 0
    %1083 = vmatpush1.bf16.msra.mxu0 %v795
    %1084 = vmatprep.subr.bf16.mxu0 0
    %1085 = vmatpush1.bf16.msra.mxu0 %v796
    %1086 = vmatprep.subr.bf16.mxu0 0
    %1087 = vmatpush1.bf16.msra.mxu0 %v797
    %1088 = vmatprep.subr.bf16.mxu0 0
    %1089 = vmatpush1.bf16.msra.mxu0 %v798
    %1090 = vmatprep.subr.bf16.mxu0 0
    %1091 = vmatpush1.bf16.msra.mxu0 %v799
    %1092 = vmatprep.mubr.bf16.mxu0 %v284
    %1093 = vmatmul.mubr.bf16.gmra.mrb[0].mxu0 %v282
    %v1094 = vpop.f32.mrb[0].mxu0
    %v1095 = vadd.f32 %v1055, %v1094
    %v1096 = vpop.f32.mrb[0].mxu0
    %v1097 = vpop.f32.mrb[0].mxu0
    %v1098 = vpop.f32.mrb[0].mxu0
    %1099 = vdwg.mxu0
    %1100 = vmatprep.subr.bf16.mxu0 0
    %1101 = vmatpush1.bf16.msra.mxu0 %v800
    %1102 = vmatprep.subr.bf16.mxu0 0
    %1103 = vmatpush1.bf16.msra.mxu0 %v801
    %1104 = vmatprep.subr.bf16.mxu0 0
    %1105 = vmatpush1.bf16.msra.mxu0 %v802
    %1106 = vmatprep.subr.bf16.mxu0 0
    %1107 = vmatpush1.bf16.msra.mxu0 %v803
    %1108 = vmatprep.subr.bf16.mxu0 0
    %1109 = vmatpush1.bf16.msra.mxu0 %v804
    %1110 = vmatprep.subr.bf16.mxu0 0
    %1111 = vmatpush1.bf16.msra.mxu0 %v805
    %1112 = vmatprep.subr.bf16.mxu0 0
    %1113 = vmatpush1.bf16.msra.mxu0 %v806
    %1114 = vmatprep.subr.bf16.mxu0 0
    %1115 = vmatpush1.bf16.msra.mxu0 %v807
    %1116 = vmatprep.subr.bf16.mxu0 0
    %1117 = vmatpush1.bf16.msra.mxu0 %v808
    %1118 = vmatprep.subr.bf16.mxu0 0
    %1119 = vmatpush1.bf16.msra.mxu0 %v809
    %1120 = vmatprep.subr.bf16.mxu0 0
    %1121 = vmatpush1.bf16.msra.mxu0 %v810
    %1122 = vmatprep.subr.bf16.mxu0 0
    %1123 = vmatpush1.bf16.msra.mxu0 %v811
    %1124 = vmatprep.subr.bf16.mxu0 0
    %1125 = vmatpush1.bf16.msra.mxu0 %v812
    %1126 = vmatprep.subr.bf16.mxu0 0
    %1127 = vmatpush1.bf16.msra.mxu0 %v813
    %1128 = vmatprep.subr.bf16.mxu0 0
    %1129 = vmatpush1.bf16.msra.mxu0 %v814
    %1130 = vmatprep.subr.bf16.mxu0 0
    %1131 = vmatpush1.bf16.msra.mxu0 %v815
    %1132 = vmatprep.mubr.bf16.mxu0 %v321
    %1133 = vmatmul.mubr.bf16.gmra.mrb[0].mxu0 %v307
    %v1134 = vpop.f32.mrb[0].mxu0
    %v1135 = vadd.f32 %v1095, %v1134
    %v1136 = vpop.f32.mrb[0].mxu0
    %v1137 = vpop.f32.mrb[0].mxu0
    %v1138 = vpop.f32.mrb[0].mxu0
    %1139 = vdwg.mxu0
    %1140 = vmatprep.subr.bf16.mxu0 0
    %1141 = vmatpush1.bf16.msra.mxu0 %v816
    %1142 = vmatprep.subr.bf16.mxu0 0
    %1143 = vmatpush1.bf16.msra.mxu0 %v817
    %1144 = vmatprep.subr.bf16.mxu0 0
    %1145 = vmatpush1.bf16.msra.mxu0 %v818
    %1146 = vmatprep.subr.bf16.mxu0 0
    %1147 = vmatpush1.bf16.msra.mxu0 %v819
    %1148 = vmatprep.subr.bf16.mxu0 0
    %1149 = vmatpush1.bf16.msra.mxu0 %v820
    %1150 = vmatprep.subr.bf16.mxu0 0
    %1151 = vmatpush1.bf16.msra.mxu0 %v821
    %1152 = vmatprep.subr.bf16.mxu0 0
    %1153 = vmatpush1.bf16.msra.mxu0 %v822
    %1154 = vmatprep.subr.bf16.mxu0 0
    %1155 = vmatpush1.bf16.msra.mxu0 %v823
    %1156 = vmatprep.subr.bf16.mxu0 0
    %1157 = vmatpush1.bf16.msra.mxu0 %v824
    %1158 = vmatprep.subr.bf16.mxu0 0
    %1159 = vmatpush1.bf16.msra.mxu0 %v825
    %1160 = vmatprep.subr.bf16.mxu0 0
    %1161 = vmatpush1.bf16.msra.mxu0 %v826
    %1162 = vmatprep.subr.bf16.mxu0 0
    %1163 = vmatpush1.bf16.msra.mxu0 %v827
    %1164 = vmatprep.subr.bf16.mxu0 0
    %1165 = vmatpush1.bf16.msra.mxu0 %v828
    %1166 = vmatprep.subr.bf16.mxu0 0
    %1167 = vmatpush1.bf16.msra.mxu0 %v829
    %1168 = vmatprep.subr.bf16.mxu0 0
    %1169 = vmatpush1.bf16.msra.mxu0 %v830
    %1170 = vmatprep.subr.bf16.mxu0 0
    %1171 = vmatpush1.bf16.msra.mxu0 %v831
    %1172 = vmatprep.mubr.bf16.mxu0 %v323
    %1173 = vmatmul.mubr.bf16.gmra.mrb[0].mxu0 %v322
    %v1174 = vpop.f32.mrb[0].mxu0
    %v1175 = vadd.f32 %v1135, %v1174
    %v1176 = vpop.f32.mrb[0].mxu0
    %v1177 = vpop.f32.mrb[0].mxu0
    %v1178 = vpop.f32.mrb[0].mxu0
    %1179 = vdwg.mxu0
    %1180 = vmatprep.subr.bf16.mxu0 0
    %1181 = vmatpush1.bf16.msra.mxu0 %v832
    %1182 = vmatprep.subr.bf16.mxu0 0
    %1183 = vmatpush1.bf16.msra.mxu0 %v833
    %1184 = vmatprep.subr.bf16.mxu0 0
    %1185 = vmatpush1.bf16.msra.mxu0 %v834
    %1186 = vmatprep.subr.bf16.mxu0 0
    %1187 = vmatpush1.bf16.msra.mxu0 %v835
    %1188 = vmatprep.subr.bf16.mxu0 0
    %1189 = vmatpush1.bf16.msra.mxu0 0
    %1190 = vmatprep.subr.bf16.mxu0 0
    %1191 = vmatpush1.bf16.msra.mxu0 0
    %1192 = vmatprep.subr.bf16.mxu0 0
    %1193 = vmatpush1.bf16.msra.mxu0 0
    %1194 = vmatprep.subr.bf16.mxu0 0
    %1195 = vmatpush1.bf16.msra.mxu0 0
    %1196 = vmatprep.subr.bf16.mxu0 0
    %1197 = vmatpush1.bf16.msra.mxu0 0
    %1198 = vmatprep.subr.bf16.mxu0 0
    %1199 = vmatpush1.bf16.msra.mxu0 0
    %1200 = vmatprep.subr.bf16.mxu0 0
    %1201 = vmatpush1.bf16.msra.mxu0 0
    %1202 = vmatprep.subr.bf16.mxu0 0
    %1203 = vmatpush1.bf16.msra.mxu0 0
    %1204 = vmatprep.subr.bf16.mxu0 0
    %1205 = vmatpush1.bf16.msra.mxu0 0
    %1206 = vmatprep.subr.bf16.mxu0 0
    %1207 = vmatpush1.bf16.msra.mxu0 0
    %1208 = vmatprep.subr.bf16.mxu0 0
    %1209 = vmatpush1.bf16.msra.mxu0 0
    %1210 = vmatprep.subr.bf16.mxu0 0
    %1211 = vmatpush1.bf16.msra.mxu0 0
    %1212 = vmatprep.mubr.bf16.mxu0 0
    %1213 = vmatmul.mubr.bf16.gmra.mrb[0].mxu0 %v938
    %v1214 = vpop.f32.mrb[0].mxu0
    %v1215 = vadd.f32 %v1175, %v1214
    %v1216 = vpop.f32.mrb[0].mxu0
    %v1217 = vpop.f32.mrb[0].mxu0
    %v1218 = vpop.f32.mrb[0].mxu0
    %1219 = vdwg.mxu0
    %v1220 = vmax.f32 %v1215, 0.0
    %v1221 = vld [vmem:[%s3] sm:$0x3]
    %v1222 = vmul.f32 %v1220, %v1221
    %v1223 = vpack.c.bf16 %v1222, %v1222
    %v1224 = vld [vmem:[%s4] sm:$0xf]
    %v1225 = vld [vmem:[%s4 + $0x4] sm:$0xf]
    %v1226 = vld [vmem:[%s4 + $0x8] sm:$0xf]
    %v1227 = vld [vmem:[%s4 + $0xc] sm:$0xf]
    %v1228 = vld [vmem:[%s4 + $0x10] sm:$0xf]
    %v1229 = vld [vmem:[%s4 + $0x14] sm:$0xf]
    %v1230 = vld [vmem:[%s4 + $0x18] sm:$0xf]
    %v1231 = vld [vmem:[%s4 + $0x1c] sm:$0xf]
    %v1232 = vld [vmem:[%s4 + $0x20] sm:$0xf]
    %v1233 = vld [vmem:[%s4 + $0x24] sm:$0xf]
    %v1234 = vld [vmem:[%s4 + $0x28] sm:$0xf]
    %v1235 = vld [vmem:[%s4 + $0x2c] sm:$0xf]
    %v1236 = vld [vmem:[%s4 + $0x30] sm:$0xf]
    %v1237 = vld [vmem:[%s4 + $0x34] sm:$0xf]
    %v1238 = vld [vmem:[%s4 + $0x38] sm:$0xf]
    %v1239 = vld [vmem:[%s4 + $0x3c] sm:$0xf]
    %v1240 = vld [vmem:[%s5] sm:$0x1]
    %v1242 = vlaneseq
    %v1243 = vshrl.u32 %v1242, 7
    %v1244 = vsub.s32 0, %v1243
    %v1245 = vrot.slane %v1240, %v1244
    %v1263 = vunpack.c.l.b16 %v1224
    %v1264 = vunpack.c.l.b16 %v1225
    %v1265 = vunpack.c.l.b16 %v1226
    %v1266 = vunpack.c.l.b16 %v1227
    %v1267 = vunpack.c.l.b16 %v1228
    %v1268 = vunpack.c.l.b16 %v1229
    %v1269 = vunpack.c.l.b16 %v1230
    %v1270 = vunpack.c.l.b16 %v1231
    %v1271 = vunpack.c.l.b16 %v1232
    %v1272 = vunpack.c.l.b16 %v1233
    %v1273 = vunpack.c.l.b16 %v1234
    %v1274 = vunpack.c.l.b16 %v1235
    %v1275 = vunpack.c.l.b16 %v1236
    %v1276 = vunpack.c.l.b16 %v1237
    %v1277 = vunpack.c.l.b16 %v1238
    %v1278 = vunpack.c.l.b16 %v1239
    %v1279 = vpack.c.b16 %v1264, %v1263
    %v1280 = vpack.c.b16 %v1266, %v1265
    %v1281 = vpack.c.b16 %v1268, %v1267
    %v1282 = vpack.c.b16 %v1270, %v1269
    %v1283 = vpack.c.b16 %v1272, %v1271
    %v1284 = vpack.c.b16 %v1274, %v1273
    %v1285 = vpack.c.b16 %v1276, %v1275
    %v1286 = vpack.c.b16 %v1278, %v1277
    %1295 = vmatprep.subr.bf16.mxu0 0
    %1296 = vmatpush1.bf16.msra.mxu0 %v1279
    %1297 = vmatprep.subr.bf16.mxu0 0
    %1298 = vmatpush1.bf16.msra.mxu0 %v1280
    %1299 = vmatprep.subr.bf16.mxu0 0
    %1300 = vmatpush1.bf16.msra.mxu0 %v1281
    %1301 = vmatprep.subr.bf16.mxu0 0
    %1302 = vmatpush1.bf16.msra.mxu0 %v1282
    %1303 = vmatprep.subr.bf16.mxu0 0
    %1304 = vmatpush1.bf16.msra.mxu0 %v1283
    %1305 = vmatprep.subr.bf16.mxu0 0
    %1306 = vmatpush1.bf16.msra.mxu0 %v1284
    %1307 = vmatprep.subr.bf16.mxu0 0
    %1308 = vmatpush1.bf16.msra.mxu0 %v1285
    %1309 = vmatprep.subr.bf16.mxu0 0
    %1310 = vmatpush1.bf16.msra.mxu0 %v1286
    %1311 = vmatprep.subr.bf16.mxu0 0
    %1312 = vmatpush1.bf16.msra.mxu0 0
    %1313 = vmatprep.subr.bf16.mxu0 0
    %1314 = vmatpush1.bf16.msra.mxu0 0
    %1315 = vmatprep.subr.bf16.mxu0 0
    %1316 = vmatpush1.bf16.msra.mxu0 0
    %1317 = vmatprep.subr.bf16.mxu0 0
    %1318 = vmatpush1.bf16.msra.mxu0 0
    %1319 = vmatprep.subr.bf16.mxu0 0
    %1320 = vmatpush1.bf16.msra.mxu0 0
    %1321 = vmatprep.subr.bf16.mxu0 0
    %1322 = vmatpush1.bf16.msra.mxu0 0
    %1323 = vmatprep.subr.bf16.mxu0 0
    %1324 = vmatpush1.bf16.msra.mxu0 0
    %1325 = vmatprep.subr.bf16.mxu0 0
    %1326 = vmatpush1.bf16.msra.mxu0 0
    %1327 = vmatprep.mubr.bf16.mxu0 0
    %1328 = vmatmul.mubr.bf16.gmra.mrb[0].mxu0 %v1223
    %v1329 = vpop.f32.mrb[0].mxu0
    %v1330 = vadd.f32 %v1245, %v1329
    %v1331 = vpop.f32.mrb[0].mxu0
    %v1332 = vpop.f32.mrb[0].mxu0
    %v1333 = vpop.f32.mrb[0].mxu0
    %1334 = vdwg.mxu0
    %1335 = vst [vmem:[#allocation2] sm:$0x3] %v1330
    // Predicated region
    $region26: #{forward.5} parent=1 // pred_check
      _
    $region27: #{forward.5} parent=1 // pred_check_branch
      %1337 = sbr.rel (0) target = $region29
    $region28: #{forward.5} parent=1 // pred_region
      %s1339 = ssub.s32 32, 32
      %1340 = vsyncadd [#allocation3], %s1339
      %s1342 = sshll.u32 [#allocation2], 4
      %s1343 = int_to_ptr.vmem [resolvable:$true] %s1342
      %1345 = dma.vmem_to_hbm [thread:$0]  %s1343, 32, %s6, [#allocation3]
    $region29: #{forward.5} parent=1 // pred_fallthru
      _
    // Predicated region
    $region30: #{forward.5} parent=1 // pred_check
      _
    $region31: #{forward.5} parent=1 // pred_check_branch
      %1347 = sbr.rel (0) target = $region33
    $region32: #{forward.5} parent=1 // pred_region
      %1348 = dma.done [#allocation3], 32
    $region33: #{forward.5} parent=1 // pred_fallthru
      _
    %1349 = vsyncpa [#allocation3], 1

</llo_original>
